<compile_context>
chip_gen: v6e
topology: v6e:2x2x1
jax: 0.10.0
libtpu: 0.0.40
codegen_flags: <defaults>
</compile_context>

<pallas_src>
import functools

import jax
import jax.numpy as jnp
from jax.experimental import pallas as pl
from jax.experimental.pallas import tpu as pltpu


def _tree_sum(terms):
    """Balanced-tree sum of a list of arrays (short dependency chain)."""
    while len(terms) > 1:
        nxt = [terms[i] + terms[i + 1] for i in range(0, len(terms) - 1, 2)]
        if len(terms) % 2:
            nxt.append(terms[-1])
        terms = nxt
    return terms[0]


def _tg_recovery_kernel(x_ref, p_ref, out_ref, *, layout, num_layers, hidden,
                        batch, time_steps, apply_sigmoid):
    """x_ref:   (T*B, D_in) time-major flattened input (row = t*B + b)
    p_ref:   (rows, 4H)   packed parameters (see _pack_params for layout)
    out_ref: (T*B, H)     time-major flattened output
    """
    B, T, H = batch, time_steps, hidden
    G = 4 * H

    def blk(i):
        off, r, c = layout[i]
        return p_ref[off:off + r, 0:c]

    cur = x_ref[...].astype(jnp.float32)                     # (T*B, D_in)

    for l in range(num_layers):
        w_ihT = blk(3 * l + 0)          # (D_l, 4H), gate-scaled
        w_hhT = blk(3 * l + 1)          # (H,   4H), gate-scaled
        bias = blk(3 * l + 2)           # (1,   4H), gate-scaled
        # One big input projection for all T steps (single MXU op per layer,
        # bias folded in once).
        gx = jnp.dot(cur, w_ihT, preferred_element_type=jnp.float32) + bias
        gx = gx.reshape(T, B, G)        # time-major: gx[t] is one clean tile

        # Hoist the lane-broadcast of the recurrent weight rows out of the
        # t-loop (broadcast_in_dim is not CSE'd by JAX).
        rows = [jnp.broadcast_to(w_hhT[k:k + 1, :], (B, G)) for k in range(H)]

        h = jnp.zeros((B, H), jnp.float32)
        c = jnp.zeros((B, H), jnp.float32)
        hs = []
        for t in range(T):
            if t == 0:
                gates = gx[0]                                  # h == 0
            else:
                # h @ W_hh^T as a VPU outer-product sum: keeps the tiny
                # recurrent matmul off the MXU (no fill/MRF latency per step).
                terms = [h[:, k:k + 1] * rows[k] for k in range(H)]
                gates = gx[t] + _tree_sum(terms)
            # The 0.5 scale on the i/f/o gate columns was folded into the
            # weights, so one tanh yields sigmoid(i,f,o) via 0.5*u + 0.5 and
            # tanh(g) directly -> 2 EUP pushes per step instead of 4.
            u = jnp.tanh(gates)
            i_g = 0.5 * u[:, 0 * H:1 * H] + 0.5
            f_g = 0.5 * u[:, 1 * H:2 * H] + 0.5
            g_g = u[:, 2 * H:3 * H]
            o_g = 0.5 * u[:, 3 * H:4 * H] + 0.5
            c = i_g * g_g if t == 0 else f_g * c + i_g * g_g
            h = o_g * jnp.tanh(c)
            hs.append(h)
        # Whole layer output stays in vregs (no VMEM scratch roundtrip).
        cur = jnp.concatenate(hs, axis=0)                     # (T*B, H)

    # Single FC (+ sigmoid) over the whole sequence, single output store.
    fc_wT = blk(3 * num_layers + 0)     # (H, H)
    fc_b = blk(3 * num_layers + 1)      # (1, H)
    y = jnp.dot(cur, fc_wT, preferred_element_type=jnp.float32) + fc_b
    if apply_sigmoid:
        y = jax.nn.sigmoid(y)
    out_ref[...] = y.astype(out_ref.dtype)


def _pack_params(params):
    """Pack all LSTM + FC parameters into one (rows, 4H) f32 buffer.

    The 0.5 sigmoid-via-tanh scale is folded into the i/f/o gate columns of the
    LSTM weights/biases (parameter-sized one-time prep, NOT activation
    pre-scaling).  Every block is padded to a multiple of 8 rows so in-kernel
    static slices are sublane-aligned.  Returns (packed, layout) where layout
    is a static tuple of (row_offset, rows, cols) per block.
    """
    H = params["fc_b"].shape[-1]
    G = 4 * H
    scale = jnp.concatenate([
        jnp.full((H,), 0.5, jnp.float32),   # i
        jnp.full((H,), 0.5, jnp.float32),   # f
        jnp.ones((H,), jnp.float32),        # g (real tanh gate)
        jnp.full((H,), 0.5, jnp.float32),   # o
    ])

    blocks = []
    for (w_ih, w_hh, b_ih, b_hh) in params["lstm"]:
        blocks.append(w_ih.T.astype(jnp.float32) * scale)                  # (D_l, 4H)
        blocks.append(w_hh.T.astype(jnp.float32) * scale)                  # (H,   4H)
        blocks.append(((b_ih + b_hh).astype(jnp.float32) * scale)[None])   # (1,   4H)
    blocks.append(params["fc_w"].T.astype(jnp.float32))                    # (H, H)
    blocks.append(params["fc_b"].astype(jnp.float32)[None])                # (1, H)

    packed, layout, off = [], [], 0
    for b in blocks:
        r, c = b.shape
        rp = -(-r // 8) * 8
        buf = jnp.zeros((rp, G), jnp.float32).at[:r, :c].set(b)
        packed.append(buf)
        layout.append((off, r, c))
        off += rp
    return jnp.concatenate(packed, axis=0), tuple(layout)


@functools.partial(jax.jit, static_argnames=("apply_sigmoid",))
def tg_recovery_forward(x, params, apply_sigmoid=True):
    """x: (B, T, hidden_dim) batch-first, like the PyTorch module.
    Returns (B, T, output_size)."""
    B, T, D_in = x.shape
    H = params["fc_b"].shape[-1]
    L = len(params["lstm"])
    G = 4 * H

    packed, layout = _pack_params(params)
    # Time-major, flattened to 2-D (row = t*B + b).  Tiny one-time prep in the
    # jitted wrapper, keeps all in-kernel per-step slices tile-clean.
    x_tm = jnp.transpose(x, (1, 0, 2)).reshape(T * B, D_in)

    # Advisory cost estimate so XLA can overlap neighbours with this
    # latency-bound custom call.
    flops = 2 * T * B * (D_in * G + (L - 1) * H * G)   # input projections
    flops += 2 * L * T * B * H * G                     # recurrent outer-products
    flops += 2 * T * B * H * H                         # FC
    transcendentals = L * T * B * (G + H) + T * B * H
    bytes_accessed = 4 * (x_tm.size + packed.size + T * B * H)

    kernel = functools.partial(
        _tg_recovery_kernel, layout=layout, num_layers=L, hidden=H,
        batch=B, time_steps=T, apply_sigmoid=apply_sigmoid)

    y = pl.pallas_call(
        kernel,
        out_shape=jax.ShapeDtypeStruct((T * B, H), x.dtype),
        in_specs=[pl.BlockSpec(memory_space=pltpu.MemorySpace.VMEM)] * 2,
        out_specs=pl.BlockSpec(memory_space=pltpu.MemorySpace.VMEM),
        cost_estimate=pl.CostEstimate(flops=flops,
                                      transcendentals=transcendentals,
                                      bytes_accessed=bytes_accessed),
    )(x_tm, packed)

    return jnp.transpose(y.reshape(T, B, H), (1, 0, 2))      # back to (B, T, H)


def init_params(key, hidden_dim, output_size, num_layer):
    """Deterministic synthetic parameters matching the PyTorch module's shapes."""
    params = {"lstm": []}
    bound = 1.0 / (output_size ** 0.5)
    keys = jax.random.split(key, 4 * num_layer + 2)
    ki = 0
    for l in range(num_layer):
        in_dim = hidden_dim if l == 0 else output_size
        w_ih = jax.random.uniform(keys[ki], (4 * output_size, in_dim),
                                  jnp.float32, -bound, bound); ki += 1
        w_hh = jax.random.uniform(keys[ki], (4 * output_size, output_size),
                                  jnp.float32, -bound, bound); ki += 1
        b_ih = jax.random.uniform(keys[ki], (4 * output_size,),
                                  jnp.float32, -bound, bound); ki += 1
        b_hh = jax.random.uniform(keys[ki], (4 * output_size,),
                                  jnp.float32, -bound, bound); ki += 1
        params["lstm"].append((w_ih, w_hh, b_ih, b_hh))
    params["fc_w"] = jax.random.uniform(keys[ki], (output_size, output_size),
                                        jnp.float32, -bound, bound); ki += 1
    params["fc_b"] = jax.random.uniform(keys[ki], (output_size,),
                                        jnp.float32, -bound, bound)
    return params


def tg_recovery_reference(x, params, apply_sigmoid=True):
    """Pure-JAX reference (PyTorch LSTM semantics) for a correctness check."""
    B, T, _ = x.shape
    H = params["fc_b"].shape[-1]
    seq = x.astype(jnp.float32)
    for (w_ih, w_hh, b_ih, b_hh) in params["lstm"]:
        h = jnp.zeros((B, H), jnp.float32)
        c = jnp.zeros((B, H), jnp.float32)
        outs = []
        for t in range(T):
            gates = seq[:, t, :] @ w_ih.T + h @ w_hh.T + b_ih + b_hh
            i = jax.nn.sigmoid(gates[:, 0 * H:1 * H])
            f = jax.nn.sigmoid(gates[:, 1 * H:2 * H])
            g = jnp.tanh(gates[:, 2 * H:3 * H])
            o = jax.nn.sigmoid(gates[:, 3 * H:4 * H])
            c = f * c + i * g
            h = o * jnp.tanh(c)
            outs.append(h)
        seq = jnp.stack(outs, axis=1)
    y = seq @ params["fc_w"].T + params["fc_b"]
    if apply_sigmoid:
        y = jax.nn.sigmoid(y)
    return y


if __name__ == "__main__":
    B, T = 4, 8
    hidden_dim = 24     # latent dim (LSTM input size)
    output_size = 8     # recovered data dim (LSTM hidden size, FC in/out)

    root = jax.random.PRNGKey(0)
    k_x, k_p = jax.random.split(root)
    H_latent = jax.random.normal(k_x, (B, T, hidden_dim), jnp.float32)
    params = init_params(k_p, hidden_dim, output_size, num_layer=3)

    x_tilde = tg_recovery_forward(H_latent, params, apply_sigmoid=True)
    x_tilde = jax.block_until_ready(x_tilde)

    ref = tg_recovery_reference(H_latent, params, apply_sigmoid=True)
    assert x_tilde.shape == (B, T, output_size)
    assert jnp.all(jnp.isfinite(x_tilde))
    assert jnp.allclose(x_tilde, ref, atol=1e-3, rtol=1e-3)

    print("KERNEL_OK")
</pallas_src>

<mosaic_0001>
module attributes {stable_mosaic.version = 11 : i64} {
  func.func @_tg_recovery_kernel(%arg0: memref<32x24xf32, #tpu.memory_space<vmem>>, %arg1: memref<104x32xf32, #tpu.memory_space<vmem>>, %arg2: memref<32x8xf32, #tpu.memory_space<vmem>>) attributes {dimension_semantics = [], scalar_prefetch = 0 : i64, scratch_operands = 0 : i64, tpu.core_type = #tpu.core_type<tc>} {
    %c0 = arith.constant 0 : index
    %c0_0 = arith.constant 0 : index
    %0 = vector.load %arg0[%c0, %c0_0] : memref<32x24xf32, #tpu.memory_space<vmem>>, vector<32x24xf32>
    %c0_1 = arith.constant 0 : index
    %c0_2 = arith.constant 0 : index
    %1 = vector.load %arg1[%c0_1, %c0_2] : memref<104x32xf32, #tpu.memory_space<vmem>>, vector<24x32xf32>
    %c24 = arith.constant 24 : index
    %c0_3 = arith.constant 0 : index
    %2 = vector.load %arg1[%c24, %c0_3] : memref<104x32xf32, #tpu.memory_space<vmem>>, vector<8x32xf32>
    %c32 = arith.constant 32 : index
    %c0_4 = arith.constant 0 : index
    %3 = vector.load %arg1[%c32, %c0_4] : memref<104x32xf32, #tpu.memory_space<vmem>>, vector<1x32xf32>
    %cst = arith.constant dense<0.000000e+00> : vector<32x32xf32>
    %4 = tpu.matmul %0, %1, %cst {dimension_numbers = #tpu.dot_dimension_numbers<[1], [0], [0], [1], [0, 0, 1, 1], [], []>} : vector<32x24xf32>, vector<24x32xf32>, vector<32x32xf32> -> vector<32x32xf32>
    %5 = vector.broadcast %3 : vector<1x32xf32> to vector<32x32xf32>
    %6 = arith.addf %4, %5 : vector<32x32xf32>
    %7 = vector.shape_cast %6 : vector<32x32xf32> to vector<8x4x32xf32>
    %8 = vector.extract_strided_slice %2 {offsets = [0, 0], sizes = [1, 32], strides = [1, 1]} : vector<8x32xf32> to vector<1x32xf32>
    %9 = vector.shape_cast %8 : vector<1x32xf32> to vector<1x32xf32>
    %10 = vector.broadcast %9 : vector<1x32xf32> to vector<4x32xf32>
    %11 = vector.extract_strided_slice %2 {offsets = [1, 0], sizes = [1, 32], strides = [1, 1]} : vector<8x32xf32> to vector<1x32xf32>
    %12 = vector.shape_cast %11 : vector<1x32xf32> to vector<1x32xf32>
    %13 = vector.broadcast %12 : vector<1x32xf32> to vector<4x32xf32>
    %14 = vector.extract_strided_slice %2 {offsets = [2, 0], sizes = [1, 32], strides = [1, 1]} : vector<8x32xf32> to vector<1x32xf32>
    %15 = vector.shape_cast %14 : vector<1x32xf32> to vector<1x32xf32>
    %16 = vector.broadcast %15 : vector<1x32xf32> to vector<4x32xf32>
    %17 = vector.extract_strided_slice %2 {offsets = [3, 0], sizes = [1, 32], strides = [1, 1]} : vector<8x32xf32> to vector<1x32xf32>
    %18 = vector.shape_cast %17 : vector<1x32xf32> to vector<1x32xf32>
    %19 = vector.broadcast %18 : vector<1x32xf32> to vector<4x32xf32>
    %20 = vector.extract_strided_slice %2 {offsets = [4, 0], sizes = [1, 32], strides = [1, 1]} : vector<8x32xf32> to vector<1x32xf32>
    %21 = vector.shape_cast %20 : vector<1x32xf32> to vector<1x32xf32>
    %22 = vector.broadcast %21 : vector<1x32xf32> to vector<4x32xf32>
    %23 = vector.extract_strided_slice %2 {offsets = [5, 0], sizes = [1, 32], strides = [1, 1]} : vector<8x32xf32> to vector<1x32xf32>
    %24 = vector.shape_cast %23 : vector<1x32xf32> to vector<1x32xf32>
    %25 = vector.broadcast %24 : vector<1x32xf32> to vector<4x32xf32>
    %26 = vector.extract_strided_slice %2 {offsets = [6, 0], sizes = [1, 32], strides = [1, 1]} : vector<8x32xf32> to vector<1x32xf32>
    %27 = vector.shape_cast %26 : vector<1x32xf32> to vector<1x32xf32>
    %28 = vector.broadcast %27 : vector<1x32xf32> to vector<4x32xf32>
    %29 = vector.extract_strided_slice %2 {offsets = [7, 0], sizes = [1, 32], strides = [1, 1]} : vector<8x32xf32> to vector<1x32xf32>
    %30 = vector.shape_cast %29 : vector<1x32xf32> to vector<1x32xf32>
    %31 = vector.broadcast %30 : vector<1x32xf32> to vector<4x32xf32>
    %32 = vector.extract_strided_slice %7 {offsets = [0, 0, 0], sizes = [1, 4, 32], strides = [1, 1, 1]} : vector<8x4x32xf32> to vector<1x4x32xf32>
    %33 = vector.shape_cast %32 : vector<1x4x32xf32> to vector<4x32xf32>
    %34 = math.tanh %33 : vector<4x32xf32>
    %35 = vector.extract_strided_slice %34 {offsets = [0, 0], sizes = [4, 8], strides = [1, 1]} : vector<4x32xf32> to vector<4x8xf32>
    %cst_5 = arith.constant 5.000000e-01 : f32
    %36 = vector.broadcast %cst_5 : f32 to vector<4x8xf32>
    %37 = arith.mulf %36, %35 : vector<4x8xf32>
    %cst_6 = arith.constant 5.000000e-01 : f32
    %38 = vector.broadcast %cst_6 : f32 to vector<4x8xf32>
    %39 = arith.addf %37, %38 : vector<4x8xf32>
    %40 = vector.extract_strided_slice %34 {offsets = [0, 16], sizes = [4, 8], strides = [1, 1]} : vector<4x32xf32> to vector<4x8xf32>
    %41 = vector.extract_strided_slice %34 {offsets = [0, 24], sizes = [4, 8], strides = [1, 1]} : vector<4x32xf32> to vector<4x8xf32>
    %cst_7 = arith.constant 5.000000e-01 : f32
    %42 = vector.broadcast %cst_7 : f32 to vector<4x8xf32>
    %43 = arith.mulf %42, %41 : vector<4x8xf32>
    %cst_8 = arith.constant 5.000000e-01 : f32
    %44 = vector.broadcast %cst_8 : f32 to vector<4x8xf32>
    %45 = arith.addf %43, %44 : vector<4x8xf32>
    %46 = arith.mulf %39, %40 : vector<4x8xf32>
    %47 = math.tanh %46 : vector<4x8xf32>
    %48 = arith.mulf %45, %47 : vector<4x8xf32>
    %49 = vector.extract_strided_slice %48 {offsets = [0, 0], sizes = [4, 1], strides = [1, 1]} : vector<4x8xf32> to vector<4x1xf32>
    %50 = vector.broadcast %49 : vector<4x1xf32> to vector<4x32xf32>
    %51 = arith.mulf %50, %10 : vector<4x32xf32>
    %52 = vector.extract_strided_slice %48 {offsets = [0, 1], sizes = [4, 1], strides = [1, 1]} : vector<4x8xf32> to vector<4x1xf32>
    %53 = vector.broadcast %52 : vector<4x1xf32> to vector<4x32xf32>
    %54 = arith.mulf %53, %13 : vector<4x32xf32>
    %55 = vector.extract_strided_slice %48 {offsets = [0, 2], sizes = [4, 1], strides = [1, 1]} : vector<4x8xf32> to vector<4x1xf32>
    %56 = vector.broadcast %55 : vector<4x1xf32> to vector<4x32xf32>
    %57 = arith.mulf %56, %16 : vector<4x32xf32>
    %58 = vector.extract_strided_slice %48 {offsets = [0, 3], sizes = [4, 1], strides = [1, 1]} : vector<4x8xf32> to vector<4x1xf32>
    %59 = vector.broadcast %58 : vector<4x1xf32> to vector<4x32xf32>
    %60 = arith.mulf %59, %19 : vector<4x32xf32>
    %61 = vector.extract_strided_slice %48 {offsets = [0, 4], sizes = [4, 1], strides = [1, 1]} : vector<4x8xf32> to vector<4x1xf32>
    %62 = vector.broadcast %61 : vector<4x1xf32> to vector<4x32xf32>
    %63 = arith.mulf %62, %22 : vector<4x32xf32>
    %64 = vector.extract_strided_slice %48 {offsets = [0, 5], sizes = [4, 1], strides = [1, 1]} : vector<4x8xf32> to vector<4x1xf32>
    %65 = vector.broadcast %64 : vector<4x1xf32> to vector<4x32xf32>
    %66 = arith.mulf %65, %25 : vector<4x32xf32>
    %67 = vector.extract_strided_slice %48 {offsets = [0, 6], sizes = [4, 1], strides = [1, 1]} : vector<4x8xf32> to vector<4x1xf32>
    %68 = vector.broadcast %67 : vector<4x1xf32> to vector<4x32xf32>
    %69 = arith.mulf %68, %28 : vector<4x32xf32>
    %70 = vector.extract_strided_slice %48 {offsets = [0, 7], sizes = [4, 1], strides = [1, 1]} : vector<4x8xf32> to vector<4x1xf32>
    %71 = vector.broadcast %70 : vector<4x1xf32> to vector<4x32xf32>
    %72 = arith.mulf %71, %31 : vector<4x32xf32>
    %73 = vector.extract_strided_slice %7 {offsets = [1, 0, 0], sizes = [1, 4, 32], strides = [1, 1, 1]} : vector<8x4x32xf32> to vector<1x4x32xf32>
    %74 = vector.shape_cast %73 : vector<1x4x32xf32> to vector<4x32xf32>
    %75 = arith.addf %51, %54 : vector<4x32xf32>
    %76 = arith.addf %57, %60 : vector<4x32xf32>
    %77 = arith.addf %63, %66 : vector<4x32xf32>
    %78 = arith.addf %69, %72 : vector<4x32xf32>
    %79 = arith.addf %75, %76 : vector<4x32xf32>
    %80 = arith.addf %77, %78 : vector<4x32xf32>
    %81 = arith.addf %79, %80 : vector<4x32xf32>
    %82 = arith.addf %74, %81 : vector<4x32xf32>
    %83 = math.tanh %82 : vector<4x32xf32>
    %84 = vector.extract_strided_slice %83 {offsets = [0, 0], sizes = [4, 8], strides = [1, 1]} : vector<4x32xf32> to vector<4x8xf32>
    %cst_9 = arith.constant 5.000000e-01 : f32
    %85 = vector.broadcast %cst_9 : f32 to vector<4x8xf32>
    %86 = arith.mulf %85, %84 : vector<4x8xf32>
    %cst_10 = arith.constant 5.000000e-01 : f32
    %87 = vector.broadcast %cst_10 : f32 to vector<4x8xf32>
    %88 = arith.addf %86, %87 : vector<4x8xf32>
    %89 = vector.extract_strided_slice %83 {offsets = [0, 8], sizes = [4, 8], strides = [1, 1]} : vector<4x32xf32> to vector<4x8xf32>
    %cst_11 = arith.constant 5.000000e-01 : f32
    %90 = vector.broadcast %cst_11 : f32 to vector<4x8xf32>
    %91 = arith.mulf %90, %89 : vector<4x8xf32>
    %cst_12 = arith.constant 5.000000e-01 : f32
    %92 = vector.broadcast %cst_12 : f32 to vector<4x8xf32>
    %93 = arith.addf %91, %92 : vector<4x8xf32>
    %94 = vector.extract_strided_slice %83 {offsets = [0, 16], sizes = [4, 8], strides = [1, 1]} : vector<4x32xf32> to vector<4x8xf32>
    %95 = vector.extract_strided_slice %83 {offsets = [0, 24], sizes = [4, 8], strides = [1, 1]} : vector<4x32xf32> to vector<4x8xf32>
    %cst_13 = arith.constant 5.000000e-01 : f32
    %96 = vector.broadcast %cst_13 : f32 to vector<4x8xf32>
    %97 = arith.mulf %96, %95 : vector<4x8xf32>
    %cst_14 = arith.constant 5.000000e-01 : f32
    %98 = vector.broadcast %cst_14 : f32 to vector<4x8xf32>
    %99 = arith.addf %97, %98 : vector<4x8xf32>
    %100 = arith.mulf %93, %46 : vector<4x8xf32>
    %101 = arith.mulf %88, %94 : vector<4x8xf32>
    %102 = arith.addf %100, %101 : vector<4x8xf32>
    %103 = math.tanh %102 : vector<4x8xf32>
    %104 = arith.mulf %99, %103 : vector<4x8xf32>
    %105 = vector.extract_strided_slice %104 {offsets = [0, 0], sizes = [4, 1], strides = [1, 1]} : vector<4x8xf32> to vector<4x1xf32>
    %106 = vector.broadcast %105 : vector<4x1xf32> to vector<4x32xf32>
    %107 = arith.mulf %106, %10 : vector<4x32xf32>
    %108 = vector.extract_strided_slice %104 {offsets = [0, 1], sizes = [4, 1], strides = [1, 1]} : vector<4x8xf32> to vector<4x1xf32>
    %109 = vector.broadcast %108 : vector<4x1xf32> to vector<4x32xf32>
    %110 = arith.mulf %109, %13 : vector<4x32xf32>
    %111 = vector.extract_strided_slice %104 {offsets = [0, 2], sizes = [4, 1], strides = [1, 1]} : vector<4x8xf32> to vector<4x1xf32>
    %112 = vector.broadcast %111 : vector<4x1xf32> to vector<4x32xf32>
    %113 = arith.mulf %112, %16 : vector<4x32xf32>
    %114 = vector.extract_strided_slice %104 {offsets = [0, 3], sizes = [4, 1], strides = [1, 1]} : vector<4x8xf32> to vector<4x1xf32>
    %115 = vector.broadcast %114 : vector<4x1xf32> to vector<4x32xf32>
    %116 = arith.mulf %115, %19 : vector<4x32xf32>
    %117 = vector.extract_strided_slice %104 {offsets = [0, 4], sizes = [4, 1], strides = [1, 1]} : vector<4x8xf32> to vector<4x1xf32>
    %118 = vector.broadcast %117 : vector<4x1xf32> to vector<4x32xf32>
    %119 = arith.mulf %118, %22 : vector<4x32xf32>
    %120 = vector.extract_strided_slice %104 {offsets = [0, 5], sizes = [4, 1], strides = [1, 1]} : vector<4x8xf32> to vector<4x1xf32>
    %121 = vector.broadcast %120 : vector<4x1xf32> to vector<4x32xf32>
    %122 = arith.mulf %121, %25 : vector<4x32xf32>
    %123 = vector.extract_strided_slice %104 {offsets = [0, 6], sizes = [4, 1], strides = [1, 1]} : vector<4x8xf32> to vector<4x1xf32>
    %124 = vector.broadcast %123 : vector<4x1xf32> to vector<4x32xf32>
    %125 = arith.mulf %124, %28 : vector<4x32xf32>
    %126 = vector.extract_strided_slice %104 {offsets = [0, 7], sizes = [4, 1], strides = [1, 1]} : vector<4x8xf32> to vector<4x1xf32>
    %127 = vector.broadcast %126 : vector<4x1xf32> to vector<4x32xf32>
    %128 = arith.mulf %127, %31 : vector<4x32xf32>
    %129 = vector.extract_strided_slice %7 {offsets = [2, 0, 0], sizes = [1, 4, 32], strides = [1, 1, 1]} : vector<8x4x32xf32> to vector<1x4x32xf32>
    %130 = vector.shape_cast %129 : vector<1x4x32xf32> to vector<4x32xf32>
    %131 = arith.addf %107, %110 : vector<4x32xf32>
    %132 = arith.addf %113, %116 : vector<4x32xf32>
    %133 = arith.addf %119, %122 : vector<4x32xf32>
    %134 = arith.addf %125, %128 : vector<4x32xf32>
    %135 = arith.addf %131, %132 : vector<4x32xf32>
    %136 = arith.addf %133, %134 : vector<4x32xf32>
    %137 = arith.addf %135, %136 : vector<4x32xf32>
    %138 = arith.addf %130, %137 : vector<4x32xf32>
    %139 = math.tanh %138 : vector<4x32xf32>
    %140 = vector.extract_strided_slice %139 {offsets = [0, 0], sizes = [4, 8], strides = [1, 1]} : vector<4x32xf32> to vector<4x8xf32>
    %cst_15 = arith.constant 5.000000e-01 : f32
    %141 = vector.broadcast %cst_15 : f32 to vector<4x8xf32>
    %142 = arith.mulf %141, %140 : vector<4x8xf32>
    %cst_16 = arith.constant 5.000000e-01 : f32
    %143 = vector.broadcast %cst_16 : f32 to vector<4x8xf32>
    %144 = arith.addf %142, %143 : vector<4x8xf32>
    %145 = vector.extract_strided_slice %139 {offsets = [0, 8], sizes = [4, 8], strides = [1, 1]} : vector<4x32xf32> to vector<4x8xf32>
    %cst_17 = arith.constant 5.000000e-01 : f32
    %146 = vector.broadcast %cst_17 : f32 to vector<4x8xf32>
    %147 = arith.mulf %146, %145 : vector<4x8xf32>
    %cst_18 = arith.constant 5.000000e-01 : f32
    %148 = vector.broadcast %cst_18 : f32 to vector<4x8xf32>
    %149 = arith.addf %147, %148 : vector<4x8xf32>
    %150 = vector.extract_strided_slice %139 {offsets = [0, 16], sizes = [4, 8], strides = [1, 1]} : vector<4x32xf32> to vector<4x8xf32>
    %151 = vector.extract_strided_slice %139 {offsets = [0, 24], sizes = [4, 8], strides = [1, 1]} : vector<4x32xf32> to vector<4x8xf32>
    %cst_19 = arith.constant 5.000000e-01 : f32
    %152 = vector.broadcast %cst_19 : f32 to vector<4x8xf32>
    %153 = arith.mulf %152, %151 : vector<4x8xf32>
    %cst_20 = arith.constant 5.000000e-01 : f32
    %154 = vector.broadcast %cst_20 : f32 to vector<4x8xf32>
    %155 = arith.addf %153, %154 : vector<4x8xf32>
    %156 = arith.mulf %149, %102 : vector<4x8xf32>
    %157 = arith.mulf %144, %150 : vector<4x8xf32>
    %158 = arith.addf %156, %157 : vector<4x8xf32>
    %159 = math.tanh %158 : vector<4x8xf32>
    %160 = arith.mulf %155, %159 : vector<4x8xf32>
    %161 = vector.extract_strided_slice %160 {offsets = [0, 0], sizes = [4, 1], strides = [1, 1]} : vector<4x8xf32> to vector<4x1xf32>
    %162 = vector.broadcast %161 : vector<4x1xf32> to vector<4x32xf32>
    %163 = arith.mulf %162, %10 : vector<4x32xf32>
    %164 = vector.extract_strided_slice %160 {offsets = [0, 1], sizes = [4, 1], strides = [1, 1]} : vector<4x8xf32> to vector<4x1xf32>
    %165 = vector.broadcast %164 : vector<4x1xf32> to vector<4x32xf32>
    %166 = arith.mulf %165, %13 : vector<4x32xf32>
    %167 = vector.extract_strided_slice %160 {offsets = [0, 2], sizes = [4, 1], strides = [1, 1]} : vector<4x8xf32> to vector<4x1xf32>
    %168 = vector.broadcast %167 : vector<4x1xf32> to vector<4x32xf32>
    %169 = arith.mulf %168, %16 : vector<4x32xf32>
    %170 = vector.extract_strided_slice %160 {offsets = [0, 3], sizes = [4, 1], strides = [1, 1]} : vector<4x8xf32> to vector<4x1xf32>
    %171 = vector.broadcast %170 : vector<4x1xf32> to vector<4x32xf32>
    %172 = arith.mulf %171, %19 : vector<4x32xf32>
    %173 = vector.extract_strided_slice %160 {offsets = [0, 4], sizes = [4, 1], strides = [1, 1]} : vector<4x8xf32> to vector<4x1xf32>
    %174 = vector.broadcast %173 : vector<4x1xf32> to vector<4x32xf32>
    %175 = arith.mulf %174, %22 : vector<4x32xf32>
    %176 = vector.extract_strided_slice %160 {offsets = [0, 5], sizes = [4, 1], strides = [1, 1]} : vector<4x8xf32> to vector<4x1xf32>
    %177 = vector.broadcast %176 : vector<4x1xf32> to vector<4x32xf32>
    %178 = arith.mulf %177, %25 : vector<4x32xf32>
    %179 = vector.extract_strided_slice %160 {offsets = [0, 6], sizes = [4, 1], strides = [1, 1]} : vector<4x8xf32> to vector<4x1xf32>
    %180 = vector.broadcast %179 : vector<4x1xf32> to vector<4x32xf32>
    %181 = arith.mulf %180, %28 : vector<4x32xf32>
    %182 = vector.extract_strided_slice %160 {offsets = [0, 7], sizes = [4, 1], strides = [1, 1]} : vector<4x8xf32> to vector<4x1xf32>
    %183 = vector.broadcast %182 : vector<4x1xf32> to vector<4x32xf32>
    %184 = arith.mulf %183, %31 : vector<4x32xf32>
    %185 = vector.extract_strided_slice %7 {offsets = [3, 0, 0], sizes = [1, 4, 32], strides = [1, 1, 1]} : vector<8x4x32xf32> to vector<1x4x32xf32>
    %186 = vector.shape_cast %185 : vector<1x4x32xf32> to vector<4x32xf32>
    %187 = arith.addf %163, %166 : vector<4x32xf32>
    %188 = arith.addf %169, %172 : vector<4x32xf32>
    %189 = arith.addf %175, %178 : vector<4x32xf32>
    %190 = arith.addf %181, %184 : vector<4x32xf32>
    %191 = arith.addf %187, %188 : vector<4x32xf32>
    %192 = arith.addf %189, %190 : vector<4x32xf32>
    %193 = arith.addf %191, %192 : vector<4x32xf32>
    %194 = arith.addf %186, %193 : vector<4x32xf32>
    %195 = math.tanh %194 : vector<4x32xf32>
    %196 = vector.extract_strided_slice %195 {offsets = [0, 0], sizes = [4, 8], strides = [1, 1]} : vector<4x32xf32> to vector<4x8xf32>
    %cst_21 = arith.constant 5.000000e-01 : f32
    %197 = vector.broadcast %cst_21 : f32 to vector<4x8xf32>
    %198 = arith.mulf %197, %196 : vector<4x8xf32>
    %cst_22 = arith.constant 5.000000e-01 : f32
    %199 = vector.broadcast %cst_22 : f32 to vector<4x8xf32>
    %200 = arith.addf %198, %199 : vector<4x8xf32>
    %201 = vector.extract_strided_slice %195 {offsets = [0, 8], sizes = [4, 8], strides = [1, 1]} : vector<4x32xf32> to vector<4x8xf32>
    %cst_23 = arith.constant 5.000000e-01 : f32
    %202 = vector.broadcast %cst_23 : f32 to vector<4x8xf32>
    %203 = arith.mulf %202, %201 : vector<4x8xf32>
    %cst_24 = arith.constant 5.000000e-01 : f32
    %204 = vector.broadcast %cst_24 : f32 to vector<4x8xf32>
    %205 = arith.addf %203, %204 : vector<4x8xf32>
    %206 = vector.extract_strided_slice %195 {offsets = [0, 16], sizes = [4, 8], strides = [1, 1]} : vector<4x32xf32> to vector<4x8xf32>
    %207 = vector.extract_strided_slice %195 {offsets = [0, 24], sizes = [4, 8], strides = [1, 1]} : vector<4x32xf32> to vector<4x8xf32>
    %cst_25 = arith.constant 5.000000e-01 : f32
    %208 = vector.broadcast %cst_25 : f32 to vector<4x8xf32>
    %209 = arith.mulf %208, %207 : vector<4x8xf32>
    %cst_26 = arith.constant 5.000000e-01 : f32
    %210 = vector.broadcast %cst_26 : f32 to vector<4x8xf32>
    %211 = arith.addf %209, %210 : vector<4x8xf32>
    %212 = arith.mulf %205, %158 : vector<4x8xf32>
    %213 = arith.mulf %200, %206 : vector<4x8xf32>
    %214 = arith.addf %212, %213 : vector<4x8xf32>
    %215 = math.tanh %214 : vector<4x8xf32>
    %216 = arith.mulf %211, %215 : vector<4x8xf32>
    %217 = vector.extract_strided_slice %216 {offsets = [0, 0], sizes = [4, 1], strides = [1, 1]} : vector<4x8xf32> to vector<4x1xf32>
    %218 = vector.broadcast %217 : vector<4x1xf32> to vector<4x32xf32>
    %219 = arith.mulf %218, %10 : vector<4x32xf32>
    %220 = vector.extract_strided_slice %216 {offsets = [0, 1], sizes = [4, 1], strides = [1, 1]} : vector<4x8xf32> to vector<4x1xf32>
    %221 = vector.broadcast %220 : vector<4x1xf32> to vector<4x32xf32>
    %222 = arith.mulf %221, %13 : vector<4x32xf32>
    %223 = vector.extract_strided_slice %216 {offsets = [0, 2], sizes = [4, 1], strides = [1, 1]} : vector<4x8xf32> to vector<4x1xf32>
    %224 = vector.broadcast %223 : vector<4x1xf32> to vector<4x32xf32>
    %225 = arith.mulf %224, %16 : vector<4x32xf32>
    %226 = vector.extract_strided_slice %216 {offsets = [0, 3], sizes = [4, 1], strides = [1, 1]} : vector<4x8xf32> to vector<4x1xf32>
    %227 = vector.broadcast %226 : vector<4x1xf32> to vector<4x32xf32>
    %228 = arith.mulf %227, %19 : vector<4x32xf32>
    %229 = vector.extract_strided_slice %216 {offsets = [0, 4], sizes = [4, 1], strides = [1, 1]} : vector<4x8xf32> to vector<4x1xf32>
    %230 = vector.broadcast %229 : vector<4x1xf32> to vector<4x32xf32>
    %231 = arith.mulf %230, %22 : vector<4x32xf32>
    %232 = vector.extract_strided_slice %216 {offsets = [0, 5], sizes = [4, 1], strides = [1, 1]} : vector<4x8xf32> to vector<4x1xf32>
    %233 = vector.broadcast %232 : vector<4x1xf32> to vector<4x32xf32>
    %234 = arith.mulf %233, %25 : vector<4x32xf32>
    %235 = vector.extract_strided_slice %216 {offsets = [0, 6], sizes = [4, 1], strides = [1, 1]} : vector<4x8xf32> to vector<4x1xf32>
    %236 = vector.broadcast %235 : vector<4x1xf32> to vector<4x32xf32>
    %237 = arith.mulf %236, %28 : vector<4x32xf32>
    %238 = vector.extract_strided_slice %216 {offsets = [0, 7], sizes = [4, 1], strides = [1, 1]} : vector<4x8xf32> to vector<4x1xf32>
    %239 = vector.broadcast %238 : vector<4x1xf32> to vector<4x32xf32>
    %240 = arith.mulf %239, %31 : vector<4x32xf32>
    %241 = vector.extract_strided_slice %7 {offsets = [4, 0, 0], sizes = [1, 4, 32], strides = [1, 1, 1]} : vector<8x4x32xf32> to vector<1x4x32xf32>
    %242 = vector.shape_cast %241 : vector<1x4x32xf32> to vector<4x32xf32>
    %243 = arith.addf %219, %222 : vector<4x32xf32>
    %244 = arith.addf %225, %228 : vector<4x32xf32>
    %245 = arith.addf %231, %234 : vector<4x32xf32>
    %246 = arith.addf %237, %240 : vector<4x32xf32>
    %247 = arith.addf %243, %244 : vector<4x32xf32>
    %248 = arith.addf %245, %246 : vector<4x32xf32>
    %249 = arith.addf %247, %248 : vector<4x32xf32>
    %250 = arith.addf %242, %249 : vector<4x32xf32>
    %251 = math.tanh %250 : vector<4x32xf32>
    %252 = vector.extract_strided_slice %251 {offsets = [0, 0], sizes = [4, 8], strides = [1, 1]} : vector<4x32xf32> to vector<4x8xf32>
    %cst_27 = arith.constant 5.000000e-01 : f32
    %253 = vector.broadcast %cst_27 : f32 to vector<4x8xf32>
    %254 = arith.mulf %253, %252 : vector<4x8xf32>
    %cst_28 = arith.constant 5.000000e-01 : f32
    %255 = vector.broadcast %cst_28 : f32 to vector<4x8xf32>
    %256 = arith.addf %254, %255 : vector<4x8xf32>
    %257 = vector.extract_strided_slice %251 {offsets = [0, 8], sizes = [4, 8], strides = [1, 1]} : vector<4x32xf32> to vector<4x8xf32>
    %cst_29 = arith.constant 5.000000e-01 : f32
    %258 = vector.broadcast %cst_29 : f32 to vector<4x8xf32>
    %259 = arith.mulf %258, %257 : vector<4x8xf32>
    %cst_30 = arith.constant 5.000000e-01 : f32
    %260 = vector.broadcast %cst_30 : f32 to vector<4x8xf32>
    %261 = arith.addf %259, %260 : vector<4x8xf32>
    %262 = vector.extract_strided_slice %251 {offsets = [0, 16], sizes = [4, 8], strides = [1, 1]} : vector<4x32xf32> to vector<4x8xf32>
    %263 = vector.extract_strided_slice %251 {offsets = [0, 24], sizes = [4, 8], strides = [1, 1]} : vector<4x32xf32> to vector<4x8xf32>
    %cst_31 = arith.constant 5.000000e-01 : f32
    %264 = vector.broadcast %cst_31 : f32 to vector<4x8xf32>
    %265 = arith.mulf %264, %263 : vector<4x8xf32>
    %cst_32 = arith.constant 5.000000e-01 : f32
    %266 = vector.broadcast %cst_32 : f32 to vector<4x8xf32>
    %267 = arith.addf %265, %266 : vector<4x8xf32>
    %268 = arith.mulf %261, %214 : vector<4x8xf32>
    %269 = arith.mulf %256, %262 : vector<4x8xf32>
    %270 = arith.addf %268, %269 : vector<4x8xf32>
    %271 = math.tanh %270 : vector<4x8xf32>
    %272 = arith.mulf %267, %271 : vector<4x8xf32>
    %273 = vector.extract_strided_slice %272 {offsets = [0, 0], sizes = [4, 1], strides = [1, 1]} : vector<4x8xf32> to vector<4x1xf32>
    %274 = vector.broadcast %273 : vector<4x1xf32> to vector<4x32xf32>
    %275 = arith.mulf %274, %10 : vector<4x32xf32>
    %276 = vector.extract_strided_slice %272 {offsets = [0, 1], sizes = [4, 1], strides = [1, 1]} : vector<4x8xf32> to vector<4x1xf32>
    %277 = vector.broadcast %276 : vector<4x1xf32> to vector<4x32xf32>
    %278 = arith.mulf %277, %13 : vector<4x32xf32>
    %279 = vector.extract_strided_slice %272 {offsets = [0, 2], sizes = [4, 1], strides = [1, 1]} : vector<4x8xf32> to vector<4x1xf32>
    %280 = vector.broadcast %279 : vector<4x1xf32> to vector<4x32xf32>
    %281 = arith.mulf %280, %16 : vector<4x32xf32>
    %282 = vector.extract_strided_slice %272 {offsets = [0, 3], sizes = [4, 1], strides = [1, 1]} : vector<4x8xf32> to vector<4x1xf32>
    %283 = vector.broadcast %282 : vector<4x1xf32> to vector<4x32xf32>
    %284 = arith.mulf %283, %19 : vector<4x32xf32>
    %285 = vector.extract_strided_slice %272 {offsets = [0, 4], sizes = [4, 1], strides = [1, 1]} : vector<4x8xf32> to vector<4x1xf32>
    %286 = vector.broadcast %285 : vector<4x1xf32> to vector<4x32xf32>
    %287 = arith.mulf %286, %22 : vector<4x32xf32>
    %288 = vector.extract_strided_slice %272 {offsets = [0, 5], sizes = [4, 1], strides = [1, 1]} : vector<4x8xf32> to vector<4x1xf32>
    %289 = vector.broadcast %288 : vector<4x1xf32> to vector<4x32xf32>
    %290 = arith.mulf %289, %25 : vector<4x32xf32>
    %291 = vector.extract_strided_slice %272 {offsets = [0, 6], sizes = [4, 1], strides = [1, 1]} : vector<4x8xf32> to vector<4x1xf32>
    %292 = vector.broadcast %291 : vector<4x1xf32> to vector<4x32xf32>
    %293 = arith.mulf %292, %28 : vector<4x32xf32>
    %294 = vector.extract_strided_slice %272 {offsets = [0, 7], sizes = [4, 1], strides = [1, 1]} : vector<4x8xf32> to vector<4x1xf32>
    %295 = vector.broadcast %294 : vector<4x1xf32> to vector<4x32xf32>
    %296 = arith.mulf %295, %31 : vector<4x32xf32>
    %297 = vector.extract_strided_slice %7 {offsets = [5, 0, 0], sizes = [1, 4, 32], strides = [1, 1, 1]} : vector<8x4x32xf32> to vector<1x4x32xf32>
    %298 = vector.shape_cast %297 : vector<1x4x32xf32> to vector<4x32xf32>
    %299 = arith.addf %275, %278 : vector<4x32xf32>
    %300 = arith.addf %281, %284 : vector<4x32xf32>
    %301 = arith.addf %287, %290 : vector<4x32xf32>
    %302 = arith.addf %293, %296 : vector<4x32xf32>
    %303 = arith.addf %299, %300 : vector<4x32xf32>
    %304 = arith.addf %301, %302 : vector<4x32xf32>
    %305 = arith.addf %303, %304 : vector<4x32xf32>
    %306 = arith.addf %298, %305 : vector<4x32xf32>
    %307 = math.tanh %306 : vector<4x32xf32>
    %308 = vector.extract_strided_slice %307 {offsets = [0, 0], sizes = [4, 8], strides = [1, 1]} : vector<4x32xf32> to vector<4x8xf32>
    %cst_33 = arith.constant 5.000000e-01 : f32
    %309 = vector.broadcast %cst_33 : f32 to vector<4x8xf32>
    %310 = arith.mulf %309, %308 : vector<4x8xf32>
    %cst_34 = arith.constant 5.000000e-01 : f32
    %311 = vector.broadcast %cst_34 : f32 to vector<4x8xf32>
    %312 = arith.addf %310, %311 : vector<4x8xf32>
    %313 = vector.extract_strided_slice %307 {offsets = [0, 8], sizes = [4, 8], strides = [1, 1]} : vector<4x32xf32> to vector<4x8xf32>
    %cst_35 = arith.constant 5.000000e-01 : f32
    %314 = vector.broadcast %cst_35 : f32 to vector<4x8xf32>
    %315 = arith.mulf %314, %313 : vector<4x8xf32>
    %cst_36 = arith.constant 5.000000e-01 : f32
    %316 = vector.broadcast %cst_36 : f32 to vector<4x8xf32>
    %317 = arith.addf %315, %316 : vector<4x8xf32>
    %318 = vector.extract_strided_slice %307 {offsets = [0, 16], sizes = [4, 8], strides = [1, 1]} : vector<4x32xf32> to vector<4x8xf32>
    %319 = vector.extract_strided_slice %307 {offsets = [0, 24], sizes = [4, 8], strides = [1, 1]} : vector<4x32xf32> to vector<4x8xf32>
    %cst_37 = arith.constant 5.000000e-01 : f32
    %320 = vector.broadcast %cst_37 : f32 to vector<4x8xf32>
    %321 = arith.mulf %320, %319 : vector<4x8xf32>
    %cst_38 = arith.constant 5.000000e-01 : f32
    %322 = vector.broadcast %cst_38 : f32 to vector<4x8xf32>
    %323 = arith.addf %321, %322 : vector<4x8xf32>
    %324 = arith.mulf %317, %270 : vector<4x8xf32>
    %325 = arith.mulf %312, %318 : vector<4x8xf32>
    %326 = arith.addf %324, %325 : vector<4x8xf32>
    %327 = math.tanh %326 : vector<4x8xf32>
    %328 = arith.mulf %323, %327 : vector<4x8xf32>
    %329 = vector.extract_strided_slice %328 {offsets = [0, 0], sizes = [4, 1], strides = [1, 1]} : vector<4x8xf32> to vector<4x1xf32>
    %330 = vector.broadcast %329 : vector<4x1xf32> to vector<4x32xf32>
    %331 = arith.mulf %330, %10 : vector<4x32xf32>
    %332 = vector.extract_strided_slice %328 {offsets = [0, 1], sizes = [4, 1], strides = [1, 1]} : vector<4x8xf32> to vector<4x1xf32>
    %333 = vector.broadcast %332 : vector<4x1xf32> to vector<4x32xf32>
    %334 = arith.mulf %333, %13 : vector<4x32xf32>
    %335 = vector.extract_strided_slice %328 {offsets = [0, 2], sizes = [4, 1], strides = [1, 1]} : vector<4x8xf32> to vector<4x1xf32>
    %336 = vector.broadcast %335 : vector<4x1xf32> to vector<4x32xf32>
    %337 = arith.mulf %336, %16 : vector<4x32xf32>
    %338 = vector.extract_strided_slice %328 {offsets = [0, 3], sizes = [4, 1], strides = [1, 1]} : vector<4x8xf32> to vector<4x1xf32>
    %339 = vector.broadcast %338 : vector<4x1xf32> to vector<4x32xf32>
    %340 = arith.mulf %339, %19 : vector<4x32xf32>
    %341 = vector.extract_strided_slice %328 {offsets = [0, 4], sizes = [4, 1], strides = [1, 1]} : vector<4x8xf32> to vector<4x1xf32>
    %342 = vector.broadcast %341 : vector<4x1xf32> to vector<4x32xf32>
    %343 = arith.mulf %342, %22 : vector<4x32xf32>
    %344 = vector.extract_strided_slice %328 {offsets = [0, 5], sizes = [4, 1], strides = [1, 1]} : vector<4x8xf32> to vector<4x1xf32>
    %345 = vector.broadcast %344 : vector<4x1xf32> to vector<4x32xf32>
    %346 = arith.mulf %345, %25 : vector<4x32xf32>
    %347 = vector.extract_strided_slice %328 {offsets = [0, 6], sizes = [4, 1], strides = [1, 1]} : vector<4x8xf32> to vector<4x1xf32>
    %348 = vector.broadcast %347 : vector<4x1xf32> to vector<4x32xf32>
    %349 = arith.mulf %348, %28 : vector<4x32xf32>
    %350 = vector.extract_strided_slice %328 {offsets = [0, 7], sizes = [4, 1], strides = [1, 1]} : vector<4x8xf32> to vector<4x1xf32>
    %351 = vector.broadcast %350 : vector<4x1xf32> to vector<4x32xf32>
    %352 = arith.mulf %351, %31 : vector<4x32xf32>
    %353 = vector.extract_strided_slice %7 {offsets = [6, 0, 0], sizes = [1, 4, 32], strides = [1, 1, 1]} : vector<8x4x32xf32> to vector<1x4x32xf32>
    %354 = vector.shape_cast %353 : vector<1x4x32xf32> to vector<4x32xf32>
    %355 = arith.addf %331, %334 : vector<4x32xf32>
    %356 = arith.addf %337, %340 : vector<4x32xf32>
    %357 = arith.addf %343, %346 : vector<4x32xf32>
    %358 = arith.addf %349, %352 : vector<4x32xf32>
    %359 = arith.addf %355, %356 : vector<4x32xf32>
    %360 = arith.addf %357, %358 : vector<4x32xf32>
    %361 = arith.addf %359, %360 : vector<4x32xf32>
    %362 = arith.addf %354, %361 : vector<4x32xf32>
    %363 = math.tanh %362 : vector<4x32xf32>
    %364 = vector.extract_strided_slice %363 {offsets = [0, 0], sizes = [4, 8], strides = [1, 1]} : vector<4x32xf32> to vector<4x8xf32>
    %cst_39 = arith.constant 5.000000e-01 : f32
    %365 = vector.broadcast %cst_39 : f32 to vector<4x8xf32>
    %366 = arith.mulf %365, %364 : vector<4x8xf32>
    %cst_40 = arith.constant 5.000000e-01 : f32
    %367 = vector.broadcast %cst_40 : f32 to vector<4x8xf32>
    %368 = arith.addf %366, %367 : vector<4x8xf32>
    %369 = vector.extract_strided_slice %363 {offsets = [0, 8], sizes = [4, 8], strides = [1, 1]} : vector<4x32xf32> to vector<4x8xf32>
    %cst_41 = arith.constant 5.000000e-01 : f32
    %370 = vector.broadcast %cst_41 : f32 to vector<4x8xf32>
    %371 = arith.mulf %370, %369 : vector<4x8xf32>
    %cst_42 = arith.constant 5.000000e-01 : f32
    %372 = vector.broadcast %cst_42 : f32 to vector<4x8xf32>
    %373 = arith.addf %371, %372 : vector<4x8xf32>
    %374 = vector.extract_strided_slice %363 {offsets = [0, 16], sizes = [4, 8], strides = [1, 1]} : vector<4x32xf32> to vector<4x8xf32>
    %375 = vector.extract_strided_slice %363 {offsets = [0, 24], sizes = [4, 8], strides = [1, 1]} : vector<4x32xf32> to vector<4x8xf32>
    %cst_43 = arith.constant 5.000000e-01 : f32
    %376 = vector.broadcast %cst_43 : f32 to vector<4x8xf32>
    %377 = arith.mulf %376, %375 : vector<4x8xf32>
    %cst_44 = arith.constant 5.000000e-01 : f32
    %378 = vector.broadcast %cst_44 : f32 to vector<4x8xf32>
    %379 = arith.addf %377, %378 : vector<4x8xf32>
    %380 = arith.mulf %373, %326 : vector<4x8xf32>
    %381 = arith.mulf %368, %374 : vector<4x8xf32>
    %382 = arith.addf %380, %381 : vector<4x8xf32>
    %383 = math.tanh %382 : vector<4x8xf32>
    %384 = arith.mulf %379, %383 : vector<4x8xf32>
    %385 = vector.extract_strided_slice %384 {offsets = [0, 0], sizes = [4, 1], strides = [1, 1]} : vector<4x8xf32> to vector<4x1xf32>
    %386 = vector.broadcast %385 : vector<4x1xf32> to vector<4x32xf32>
    %387 = arith.mulf %386, %10 : vector<4x32xf32>
    %388 = vector.extract_strided_slice %384 {offsets = [0, 1], sizes = [4, 1], strides = [1, 1]} : vector<4x8xf32> to vector<4x1xf32>
    %389 = vector.broadcast %388 : vector<4x1xf32> to vector<4x32xf32>
    %390 = arith.mulf %389, %13 : vector<4x32xf32>
    %391 = vector.extract_strided_slice %384 {offsets = [0, 2], sizes = [4, 1], strides = [1, 1]} : vector<4x8xf32> to vector<4x1xf32>
    %392 = vector.broadcast %391 : vector<4x1xf32> to vector<4x32xf32>
    %393 = arith.mulf %392, %16 : vector<4x32xf32>
    %394 = vector.extract_strided_slice %384 {offsets = [0, 3], sizes = [4, 1], strides = [1, 1]} : vector<4x8xf32> to vector<4x1xf32>
    %395 = vector.broadcast %394 : vector<4x1xf32> to vector<4x32xf32>
    %396 = arith.mulf %395, %19 : vector<4x32xf32>
    %397 = vector.extract_strided_slice %384 {offsets = [0, 4], sizes = [4, 1], strides = [1, 1]} : vector<4x8xf32> to vector<4x1xf32>
    %398 = vector.broadcast %397 : vector<4x1xf32> to vector<4x32xf32>
    %399 = arith.mulf %398, %22 : vector<4x32xf32>
    %400 = vector.extract_strided_slice %384 {offsets = [0, 5], sizes = [4, 1], strides = [1, 1]} : vector<4x8xf32> to vector<4x1xf32>
    %401 = vector.broadcast %400 : vector<4x1xf32> to vector<4x32xf32>
    %402 = arith.mulf %401, %25 : vector<4x32xf32>
    %403 = vector.extract_strided_slice %384 {offsets = [0, 6], sizes = [4, 1], strides = [1, 1]} : vector<4x8xf32> to vector<4x1xf32>
    %404 = vector.broadcast %403 : vector<4x1xf32> to vector<4x32xf32>
    %405 = arith.mulf %404, %28 : vector<4x32xf32>
    %406 = vector.extract_strided_slice %384 {offsets = [0, 7], sizes = [4, 1], strides = [1, 1]} : vector<4x8xf32> to vector<4x1xf32>
    %407 = vector.broadcast %406 : vector<4x1xf32> to vector<4x32xf32>
    %408 = arith.mulf %407, %31 : vector<4x32xf32>
    %409 = vector.extract_strided_slice %7 {offsets = [7, 0, 0], sizes = [1, 4, 32], strides = [1, 1, 1]} : vector<8x4x32xf32> to vector<1x4x32xf32>
    %410 = vector.shape_cast %409 : vector<1x4x32xf32> to vector<4x32xf32>
    %411 = arith.addf %387, %390 : vector<4x32xf32>
    %412 = arith.addf %393, %396 : vector<4x32xf32>
    %413 = arith.addf %399, %402 : vector<4x32xf32>
    %414 = arith.addf %405, %408 : vector<4x32xf32>
    %415 = arith.addf %411, %412 : vector<4x32xf32>
    %416 = arith.addf %413, %414 : vector<4x32xf32>
    %417 = arith.addf %415, %416 : vector<4x32xf32>
    %418 = arith.addf %410, %417 : vector<4x32xf32>
    %419 = math.tanh %418 : vector<4x32xf32>
    %420 = vector.extract_strided_slice %419 {offsets = [0, 0], sizes = [4, 8], strides = [1, 1]} : vector<4x32xf32> to vector<4x8xf32>
    %cst_45 = arith.constant 5.000000e-01 : f32
    %421 = vector.broadcast %cst_45 : f32 to vector<4x8xf32>
    %422 = arith.mulf %421, %420 : vector<4x8xf32>
    %cst_46 = arith.constant 5.000000e-01 : f32
    %423 = vector.broadcast %cst_46 : f32 to vector<4x8xf32>
    %424 = arith.addf %422, %423 : vector<4x8xf32>
    %425 = vector.extract_strided_slice %419 {offsets = [0, 8], sizes = [4, 8], strides = [1, 1]} : vector<4x32xf32> to vector<4x8xf32>
    %cst_47 = arith.constant 5.000000e-01 : f32
    %426 = vector.broadcast %cst_47 : f32 to vector<4x8xf32>
    %427 = arith.mulf %426, %425 : vector<4x8xf32>
    %cst_48 = arith.constant 5.000000e-01 : f32
    %428 = vector.broadcast %cst_48 : f32 to vector<4x8xf32>
    %429 = arith.addf %427, %428 : vector<4x8xf32>
    %430 = vector.extract_strided_slice %419 {offsets = [0, 16], sizes = [4, 8], strides = [1, 1]} : vector<4x32xf32> to vector<4x8xf32>
    %431 = vector.extract_strided_slice %419 {offsets = [0, 24], sizes = [4, 8], strides = [1, 1]} : vector<4x32xf32> to vector<4x8xf32>
    %cst_49 = arith.constant 5.000000e-01 : f32
    %432 = vector.broadcast %cst_49 : f32 to vector<4x8xf32>
    %433 = arith.mulf %432, %431 : vector<4x8xf32>
    %cst_50 = arith.constant 5.000000e-01 : f32
    %434 = vector.broadcast %cst_50 : f32 to vector<4x8xf32>
    %435 = arith.addf %433, %434 : vector<4x8xf32>
    %436 = arith.mulf %429, %382 : vector<4x8xf32>
    %437 = arith.mulf %424, %430 : vector<4x8xf32>
    %438 = arith.addf %436, %437 : vector<4x8xf32>
    %439 = math.tanh %438 : vector<4x8xf32>
    %440 = arith.mulf %435, %439 : vector<4x8xf32>
    %441 = tpu.concatenate %48, %104, %160, %216, %272, %328, %384, %440 in 0 : vector<4x8xf32>, vector<4x8xf32>, vector<4x8xf32>, vector<4x8xf32>, vector<4x8xf32>, vector<4x8xf32>, vector<4x8xf32>, vector<4x8xf32> -> vector<32x8xf32>
    %c40 = arith.constant 40 : index
    %c0_51 = arith.constant 0 : index
    %442 = vector.load %arg1[%c40, %c0_51] : memref<104x32xf32, #tpu.memory_space<vmem>>, vector<8x32xf32>
    %c48 = arith.constant 48 : index
    %c0_52 = arith.constant 0 : index
    %443 = vector.load %arg1[%c48, %c0_52] : memref<104x32xf32, #tpu.memory_space<vmem>>, vector<8x32xf32>
    %c56 = arith.constant 56 : index
    %c0_53 = arith.constant 0 : index
    %444 = vector.load %arg1[%c56, %c0_53] : memref<104x32xf32, #tpu.memory_space<vmem>>, vector<1x32xf32>
    %cst_54 = arith.constant dense<0.000000e+00> : vector<32x32xf32>
    %445 = tpu.matmul %441, %442, %cst_54 {dimension_numbers = #tpu.dot_dimension_numbers<[1], [0], [0], [1], [0, 0, 1, 1], [], []>} : vector<32x8xf32>, vector<8x32xf32>, vector<32x32xf32> -> vector<32x32xf32>
    %446 = vector.broadcast %444 : vector<1x32xf32> to vector<32x32xf32>
    %447 = arith.addf %445, %446 : vector<32x32xf32>
    %448 = vector.shape_cast %447 : vector<32x32xf32> to vector<8x4x32xf32>
    %449 = vector.extract_strided_slice %443 {offsets = [0, 0], sizes = [1, 32], strides = [1, 1]} : vector<8x32xf32> to vector<1x32xf32>
    %450 = vector.shape_cast %449 : vector<1x32xf32> to vector<1x32xf32>
    %451 = vector.broadcast %450 : vector<1x32xf32> to vector<4x32xf32>
    %452 = vector.extract_strided_slice %443 {offsets = [1, 0], sizes = [1, 32], strides = [1, 1]} : vector<8x32xf32> to vector<1x32xf32>
    %453 = vector.shape_cast %452 : vector<1x32xf32> to vector<1x32xf32>
    %454 = vector.broadcast %453 : vector<1x32xf32> to vector<4x32xf32>
    %455 = vector.extract_strided_slice %443 {offsets = [2, 0], sizes = [1, 32], strides = [1, 1]} : vector<8x32xf32> to vector<1x32xf32>
    %456 = vector.shape_cast %455 : vector<1x32xf32> to vector<1x32xf32>
    %457 = vector.broadcast %456 : vector<1x32xf32> to vector<4x32xf32>
    %458 = vector.extract_strided_slice %443 {offsets = [3, 0], sizes = [1, 32], strides = [1, 1]} : vector<8x32xf32> to vector<1x32xf32>
    %459 = vector.shape_cast %458 : vector<1x32xf32> to vector<1x32xf32>
    %460 = vector.broadcast %459 : vector<1x32xf32> to vector<4x32xf32>
    %461 = vector.extract_strided_slice %443 {offsets = [4, 0], sizes = [1, 32], strides = [1, 1]} : vector<8x32xf32> to vector<1x32xf32>
    %462 = vector.shape_cast %461 : vector<1x32xf32> to vector<1x32xf32>
    %463 = vector.broadcast %462 : vector<1x32xf32> to vector<4x32xf32>
    %464 = vector.extract_strided_slice %443 {offsets = [5, 0], sizes = [1, 32], strides = [1, 1]} : vector<8x32xf32> to vector<1x32xf32>
    %465 = vector.shape_cast %464 : vector<1x32xf32> to vector<1x32xf32>
    %466 = vector.broadcast %465 : vector<1x32xf32> to vector<4x32xf32>
    %467 = vector.extract_strided_slice %443 {offsets = [6, 0], sizes = [1, 32], strides = [1, 1]} : vector<8x32xf32> to vector<1x32xf32>
    %468 = vector.shape_cast %467 : vector<1x32xf32> to vector<1x32xf32>
    %469 = vector.broadcast %468 : vector<1x32xf32> to vector<4x32xf32>
    %470 = vector.extract_strided_slice %443 {offsets = [7, 0], sizes = [1, 32], strides = [1, 1]} : vector<8x32xf32> to vector<1x32xf32>
    %471 = vector.shape_cast %470 : vector<1x32xf32> to vector<1x32xf32>
    %472 = vector.broadcast %471 : vector<1x32xf32> to vector<4x32xf32>
    %473 = vector.extract_strided_slice %448 {offsets = [0, 0, 0], sizes = [1, 4, 32], strides = [1, 1, 1]} : vector<8x4x32xf32> to vector<1x4x32xf32>
    %474 = vector.shape_cast %473 : vector<1x4x32xf32> to vector<4x32xf32>
    %475 = math.tanh %474 : vector<4x32xf32>
    %476 = vector.extract_strided_slice %475 {offsets = [0, 0], sizes = [4, 8], strides = [1, 1]} : vector<4x32xf32> to vector<4x8xf32>
    %cst_55 = arith.constant 5.000000e-01 : f32
    %477 = vector.broadcast %cst_55 : f32 to vector<4x8xf32>
    %478 = arith.mulf %477, %476 : vector<4x8xf32>
    %cst_56 = arith.constant 5.000000e-01 : f32
    %479 = vector.broadcast %cst_56 : f32 to vector<4x8xf32>
    %480 = arith.addf %478, %479 : vector<4x8xf32>
    %481 = vector.extract_strided_slice %475 {offsets = [0, 16], sizes = [4, 8], strides = [1, 1]} : vector<4x32xf32> to vector<4x8xf32>
    %482 = vector.extract_strided_slice %475 {offsets = [0, 24], sizes = [4, 8], strides = [1, 1]} : vector<4x32xf32> to vector<4x8xf32>
    %cst_57 = arith.constant 5.000000e-01 : f32
    %483 = vector.broadcast %cst_57 : f32 to vector<4x8xf32>
    %484 = arith.mulf %483, %482 : vector<4x8xf32>
    %cst_58 = arith.constant 5.000000e-01 : f32
    %485 = vector.broadcast %cst_58 : f32 to vector<4x8xf32>
    %486 = arith.addf %484, %485 : vector<4x8xf32>
    %487 = arith.mulf %480, %481 : vector<4x8xf32>
    %488 = math.tanh %487 : vector<4x8xf32>
    %489 = arith.mulf %486, %488 : vector<4x8xf32>
    %490 = vector.extract_strided_slice %489 {offsets = [0, 0], sizes = [4, 1], strides = [1, 1]} : vector<4x8xf32> to vector<4x1xf32>
    %491 = vector.broadcast %490 : vector<4x1xf32> to vector<4x32xf32>
    %492 = arith.mulf %491, %451 : vector<4x32xf32>
    %493 = vector.extract_strided_slice %489 {offsets = [0, 1], sizes = [4, 1], strides = [1, 1]} : vector<4x8xf32> to vector<4x1xf32>
    %494 = vector.broadcast %493 : vector<4x1xf32> to vector<4x32xf32>
    %495 = arith.mulf %494, %454 : vector<4x32xf32>
    %496 = vector.extract_strided_slice %489 {offsets = [0, 2], sizes = [4, 1], strides = [1, 1]} : vector<4x8xf32> to vector<4x1xf32>
    %497 = vector.broadcast %496 : vector<4x1xf32> to vector<4x32xf32>
    %498 = arith.mulf %497, %457 : vector<4x32xf32>
    %499 = vector.extract_strided_slice %489 {offsets = [0, 3], sizes = [4, 1], strides = [1, 1]} : vector<4x8xf32> to vector<4x1xf32>
    %500 = vector.broadcast %499 : vector<4x1xf32> to vector<4x32xf32>
    %501 = arith.mulf %500, %460 : vector<4x32xf32>
    %502 = vector.extract_strided_slice %489 {offsets = [0, 4], sizes = [4, 1], strides = [1, 1]} : vector<4x8xf32> to vector<4x1xf32>
    %503 = vector.broadcast %502 : vector<4x1xf32> to vector<4x32xf32>
    %504 = arith.mulf %503, %463 : vector<4x32xf32>
    %505 = vector.extract_strided_slice %489 {offsets = [0, 5], sizes = [4, 1], strides = [1, 1]} : vector<4x8xf32> to vector<4x1xf32>
    %506 = vector.broadcast %505 : vector<4x1xf32> to vector<4x32xf32>
    %507 = arith.mulf %506, %466 : vector<4x32xf32>
    %508 = vector.extract_strided_slice %489 {offsets = [0, 6], sizes = [4, 1], strides = [1, 1]} : vector<4x8xf32> to vector<4x1xf32>
    %509 = vector.broadcast %508 : vector<4x1xf32> to vector<4x32xf32>
    %510 = arith.mulf %509, %469 : vector<4x32xf32>
    %511 = vector.extract_strided_slice %489 {offsets = [0, 7], sizes = [4, 1], strides = [1, 1]} : vector<4x8xf32> to vector<4x1xf32>
    %512 = vector.broadcast %511 : vector<4x1xf32> to vector<4x32xf32>
    %513 = arith.mulf %512, %472 : vector<4x32xf32>
    %514 = vector.extract_strided_slice %448 {offsets = [1, 0, 0], sizes = [1, 4, 32], strides = [1, 1, 1]} : vector<8x4x32xf32> to vector<1x4x32xf32>
    %515 = vector.shape_cast %514 : vector<1x4x32xf32> to vector<4x32xf32>
    %516 = arith.addf %492, %495 : vector<4x32xf32>
    %517 = arith.addf %498, %501 : vector<4x32xf32>
    %518 = arith.addf %504, %507 : vector<4x32xf32>
    %519 = arith.addf %510, %513 : vector<4x32xf32>
    %520 = arith.addf %516, %517 : vector<4x32xf32>
    %521 = arith.addf %518, %519 : vector<4x32xf32>
    %522 = arith.addf %520, %521 : vector<4x32xf32>
    %523 = arith.addf %515, %522 : vector<4x32xf32>
    %524 = math.tanh %523 : vector<4x32xf32>
    %525 = vector.extract_strided_slice %524 {offsets = [0, 0], sizes = [4, 8], strides = [1, 1]} : vector<4x32xf32> to vector<4x8xf32>
    %cst_59 = arith.constant 5.000000e-01 : f32
    %526 = vector.broadcast %cst_59 : f32 to vector<4x8xf32>
    %527 = arith.mulf %526, %525 : vector<4x8xf32>
    %cst_60 = arith.constant 5.000000e-01 : f32
    %528 = vector.broadcast %cst_60 : f32 to vector<4x8xf32>
    %529 = arith.addf %527, %528 : vector<4x8xf32>
    %530 = vector.extract_strided_slice %524 {offsets = [0, 8], sizes = [4, 8], strides = [1, 1]} : vector<4x32xf32> to vector<4x8xf32>
    %cst_61 = arith.constant 5.000000e-01 : f32
    %531 = vector.broadcast %cst_61 : f32 to vector<4x8xf32>
    %532 = arith.mulf %531, %530 : vector<4x8xf32>
    %cst_62 = arith.constant 5.000000e-01 : f32
    %533 = vector.broadcast %cst_62 : f32 to vector<4x8xf32>
    %534 = arith.addf %532, %533 : vector<4x8xf32>
    %535 = vector.extract_strided_slice %524 {offsets = [0, 16], sizes = [4, 8], strides = [1, 1]} : vector<4x32xf32> to vector<4x8xf32>
    %536 = vector.extract_strided_slice %524 {offsets = [0, 24], sizes = [4, 8], strides = [1, 1]} : vector<4x32xf32> to vector<4x8xf32>
    %cst_63 = arith.constant 5.000000e-01 : f32
    %537 = vector.broadcast %cst_63 : f32 to vector<4x8xf32>
    %538 = arith.mulf %537, %536 : vector<4x8xf32>
    %cst_64 = arith.constant 5.000000e-01 : f32
    %539 = vector.broadcast %cst_64 : f32 to vector<4x8xf32>
    %540 = arith.addf %538, %539 : vector<4x8xf32>
    %541 = arith.mulf %534, %487 : vector<4x8xf32>
    %542 = arith.mulf %529, %535 : vector<4x8xf32>
    %543 = arith.addf %541, %542 : vector<4x8xf32>
    %544 = math.tanh %543 : vector<4x8xf32>
    %545 = arith.mulf %540, %544 : vector<4x8xf32>
    %546 = vector.extract_strided_slice %545 {offsets = [0, 0], sizes = [4, 1], strides = [1, 1]} : vector<4x8xf32> to vector<4x1xf32>
    %547 = vector.broadcast %546 : vector<4x1xf32> to vector<4x32xf32>
    %548 = arith.mulf %547, %451 : vector<4x32xf32>
    %549 = vector.extract_strided_slice %545 {offsets = [0, 1], sizes = [4, 1], strides = [1, 1]} : vector<4x8xf32> to vector<4x1xf32>
    %550 = vector.broadcast %549 : vector<4x1xf32> to vector<4x32xf32>
    %551 = arith.mulf %550, %454 : vector<4x32xf32>
    %552 = vector.extract_strided_slice %545 {offsets = [0, 2], sizes = [4, 1], strides = [1, 1]} : vector<4x8xf32> to vector<4x1xf32>
    %553 = vector.broadcast %552 : vector<4x1xf32> to vector<4x32xf32>
    %554 = arith.mulf %553, %457 : vector<4x32xf32>
    %555 = vector.extract_strided_slice %545 {offsets = [0, 3], sizes = [4, 1], strides = [1, 1]} : vector<4x8xf32> to vector<4x1xf32>
    %556 = vector.broadcast %555 : vector<4x1xf32> to vector<4x32xf32>
    %557 = arith.mulf %556, %460 : vector<4x32xf32>
    %558 = vector.extract_strided_slice %545 {offsets = [0, 4], sizes = [4, 1], strides = [1, 1]} : vector<4x8xf32> to vector<4x1xf32>
    %559 = vector.broadcast %558 : vector<4x1xf32> to vector<4x32xf32>
    %560 = arith.mulf %559, %463 : vector<4x32xf32>
    %561 = vector.extract_strided_slice %545 {offsets = [0, 5], sizes = [4, 1], strides = [1, 1]} : vector<4x8xf32> to vector<4x1xf32>
    %562 = vector.broadcast %561 : vector<4x1xf32> to vector<4x32xf32>
    %563 = arith.mulf %562, %466 : vector<4x32xf32>
    %564 = vector.extract_strided_slice %545 {offsets = [0, 6], sizes = [4, 1], strides = [1, 1]} : vector<4x8xf32> to vector<4x1xf32>
    %565 = vector.broadcast %564 : vector<4x1xf32> to vector<4x32xf32>
    %566 = arith.mulf %565, %469 : vector<4x32xf32>
    %567 = vector.extract_strided_slice %545 {offsets = [0, 7], sizes = [4, 1], strides = [1, 1]} : vector<4x8xf32> to vector<4x1xf32>
    %568 = vector.broadcast %567 : vector<4x1xf32> to vector<4x32xf32>
    %569 = arith.mulf %568, %472 : vector<4x32xf32>
    %570 = vector.extract_strided_slice %448 {offsets = [2, 0, 0], sizes = [1, 4, 32], strides = [1, 1, 1]} : vector<8x4x32xf32> to vector<1x4x32xf32>
    %571 = vector.shape_cast %570 : vector<1x4x32xf32> to vector<4x32xf32>
    %572 = arith.addf %548, %551 : vector<4x32xf32>
    %573 = arith.addf %554, %557 : vector<4x32xf32>
    %574 = arith.addf %560, %563 : vector<4x32xf32>
    %575 = arith.addf %566, %569 : vector<4x32xf32>
    %576 = arith.addf %572, %573 : vector<4x32xf32>
    %577 = arith.addf %574, %575 : vector<4x32xf32>
    %578 = arith.addf %576, %577 : vector<4x32xf32>
    %579 = arith.addf %571, %578 : vector<4x32xf32>
    %580 = math.tanh %579 : vector<4x32xf32>
    %581 = vector.extract_strided_slice %580 {offsets = [0, 0], sizes = [4, 8], strides = [1, 1]} : vector<4x32xf32> to vector<4x8xf32>
    %cst_65 = arith.constant 5.000000e-01 : f32
    %582 = vector.broadcast %cst_65 : f32 to vector<4x8xf32>
    %583 = arith.mulf %582, %581 : vector<4x8xf32>
    %cst_66 = arith.constant 5.000000e-01 : f32
    %584 = vector.broadcast %cst_66 : f32 to vector<4x8xf32>
    %585 = arith.addf %583, %584 : vector<4x8xf32>
    %586 = vector.extract_strided_slice %580 {offsets = [0, 8], sizes = [4, 8], strides = [1, 1]} : vector<4x32xf32> to vector<4x8xf32>
    %cst_67 = arith.constant 5.000000e-01 : f32
    %587 = vector.broadcast %cst_67 : f32 to vector<4x8xf32>
    %588 = arith.mulf %587, %586 : vector<4x8xf32>
    %cst_68 = arith.constant 5.000000e-01 : f32
    %589 = vector.broadcast %cst_68 : f32 to vector<4x8xf32>
    %590 = arith.addf %588, %589 : vector<4x8xf32>
    %591 = vector.extract_strided_slice %580 {offsets = [0, 16], sizes = [4, 8], strides = [1, 1]} : vector<4x32xf32> to vector<4x8xf32>
    %592 = vector.extract_strided_slice %580 {offsets = [0, 24], sizes = [4, 8], strides = [1, 1]} : vector<4x32xf32> to vector<4x8xf32>
    %cst_69 = arith.constant 5.000000e-01 : f32
    %593 = vector.broadcast %cst_69 : f32 to vector<4x8xf32>
    %594 = arith.mulf %593, %592 : vector<4x8xf32>
    %cst_70 = arith.constant 5.000000e-01 : f32
    %595 = vector.broadcast %cst_70 : f32 to vector<4x8xf32>
    %596 = arith.addf %594, %595 : vector<4x8xf32>
    %597 = arith.mulf %590, %543 : vector<4x8xf32>
    %598 = arith.mulf %585, %591 : vector<4x8xf32>
    %599 = arith.addf %597, %598 : vector<4x8xf32>
    %600 = math.tanh %599 : vector<4x8xf32>
    %601 = arith.mulf %596, %600 : vector<4x8xf32>
    %602 = vector.extract_strided_slice %601 {offsets = [0, 0], sizes = [4, 1], strides = [1, 1]} : vector<4x8xf32> to vector<4x1xf32>
    %603 = vector.broadcast %602 : vector<4x1xf32> to vector<4x32xf32>
    %604 = arith.mulf %603, %451 : vector<4x32xf32>
    %605 = vector.extract_strided_slice %601 {offsets = [0, 1], sizes = [4, 1], strides = [1, 1]} : vector<4x8xf32> to vector<4x1xf32>
    %606 = vector.broadcast %605 : vector<4x1xf32> to vector<4x32xf32>
    %607 = arith.mulf %606, %454 : vector<4x32xf32>
    %608 = vector.extract_strided_slice %601 {offsets = [0, 2], sizes = [4, 1], strides = [1, 1]} : vector<4x8xf32> to vector<4x1xf32>
    %609 = vector.broadcast %608 : vector<4x1xf32> to vector<4x32xf32>
    %610 = arith.mulf %609, %457 : vector<4x32xf32>
    %611 = vector.extract_strided_slice %601 {offsets = [0, 3], sizes = [4, 1], strides = [1, 1]} : vector<4x8xf32> to vector<4x1xf32>
    %612 = vector.broadcast %611 : vector<4x1xf32> to vector<4x32xf32>
    %613 = arith.mulf %612, %460 : vector<4x32xf32>
    %614 = vector.extract_strided_slice %601 {offsets = [0, 4], sizes = [4, 1], strides = [1, 1]} : vector<4x8xf32> to vector<4x1xf32>
    %615 = vector.broadcast %614 : vector<4x1xf32> to vector<4x32xf32>
    %616 = arith.mulf %615, %463 : vector<4x32xf32>
    %617 = vector.extract_strided_slice %601 {offsets = [0, 5], sizes = [4, 1], strides = [1, 1]} : vector<4x8xf32> to vector<4x1xf32>
    %618 = vector.broadcast %617 : vector<4x1xf32> to vector<4x32xf32>
    %619 = arith.mulf %618, %466 : vector<4x32xf32>
    %620 = vector.extract_strided_slice %601 {offsets = [0, 6], sizes = [4, 1], strides = [1, 1]} : vector<4x8xf32> to vector<4x1xf32>
    %621 = vector.broadcast %620 : vector<4x1xf32> to vector<4x32xf32>
    %622 = arith.mulf %621, %469 : vector<4x32xf32>
    %623 = vector.extract_strided_slice %601 {offsets = [0, 7], sizes = [4, 1], strides = [1, 1]} : vector<4x8xf32> to vector<4x1xf32>
    %624 = vector.broadcast %623 : vector<4x1xf32> to vector<4x32xf32>
    %625 = arith.mulf %624, %472 : vector<4x32xf32>
    %626 = vector.extract_strided_slice %448 {offsets = [3, 0, 0], sizes = [1, 4, 32], strides = [1, 1, 1]} : vector<8x4x32xf32> to vector<1x4x32xf32>
    %627 = vector.shape_cast %626 : vector<1x4x32xf32> to vector<4x32xf32>
    %628 = arith.addf %604, %607 : vector<4x32xf32>
    %629 = arith.addf %610, %613 : vector<4x32xf32>
    %630 = arith.addf %616, %619 : vector<4x32xf32>
    %631 = arith.addf %622, %625 : vector<4x32xf32>
    %632 = arith.addf %628, %629 : vector<4x32xf32>
    %633 = arith.addf %630, %631 : vector<4x32xf32>
    %634 = arith.addf %632, %633 : vector<4x32xf32>
    %635 = arith.addf %627, %634 : vector<4x32xf32>
    %636 = math.tanh %635 : vector<4x32xf32>
    %637 = vector.extract_strided_slice %636 {offsets = [0, 0], sizes = [4, 8], strides = [1, 1]} : vector<4x32xf32> to vector<4x8xf32>
    %cst_71 = arith.constant 5.000000e-01 : f32
    %638 = vector.broadcast %cst_71 : f32 to vector<4x8xf32>
    %639 = arith.mulf %638, %637 : vector<4x8xf32>
    %cst_72 = arith.constant 5.000000e-01 : f32
    %640 = vector.broadcast %cst_72 : f32 to vector<4x8xf32>
    %641 = arith.addf %639, %640 : vector<4x8xf32>
    %642 = vector.extract_strided_slice %636 {offsets = [0, 8], sizes = [4, 8], strides = [1, 1]} : vector<4x32xf32> to vector<4x8xf32>
    %cst_73 = arith.constant 5.000000e-01 : f32
    %643 = vector.broadcast %cst_73 : f32 to vector<4x8xf32>
    %644 = arith.mulf %643, %642 : vector<4x8xf32>
    %cst_74 = arith.constant 5.000000e-01 : f32
    %645 = vector.broadcast %cst_74 : f32 to vector<4x8xf32>
    %646 = arith.addf %644, %645 : vector<4x8xf32>
    %647 = vector.extract_strided_slice %636 {offsets = [0, 16], sizes = [4, 8], strides = [1, 1]} : vector<4x32xf32> to vector<4x8xf32>
    %648 = vector.extract_strided_slice %636 {offsets = [0, 24], sizes = [4, 8], strides = [1, 1]} : vector<4x32xf32> to vector<4x8xf32>
    %cst_75 = arith.constant 5.000000e-01 : f32
    %649 = vector.broadcast %cst_75 : f32 to vector<4x8xf32>
    %650 = arith.mulf %649, %648 : vector<4x8xf32>
    %cst_76 = arith.constant 5.000000e-01 : f32
    %651 = vector.broadcast %cst_76 : f32 to vector<4x8xf32>
    %652 = arith.addf %650, %651 : vector<4x8xf32>
    %653 = arith.mulf %646, %599 : vector<4x8xf32>
    %654 = arith.mulf %641, %647 : vector<4x8xf32>
    %655 = arith.addf %653, %654 : vector<4x8xf32>
    %656 = math.tanh %655 : vector<4x8xf32>
    %657 = arith.mulf %652, %656 : vector<4x8xf32>
    %658 = vector.extract_strided_slice %657 {offsets = [0, 0], sizes = [4, 1], strides = [1, 1]} : vector<4x8xf32> to vector<4x1xf32>
    %659 = vector.broadcast %658 : vector<4x1xf32> to vector<4x32xf32>
    %660 = arith.mulf %659, %451 : vector<4x32xf32>
    %661 = vector.extract_strided_slice %657 {offsets = [0, 1], sizes = [4, 1], strides = [1, 1]} : vector<4x8xf32> to vector<4x1xf32>
    %662 = vector.broadcast %661 : vector<4x1xf32> to vector<4x32xf32>
    %663 = arith.mulf %662, %454 : vector<4x32xf32>
    %664 = vector.extract_strided_slice %657 {offsets = [0, 2], sizes = [4, 1], strides = [1, 1]} : vector<4x8xf32> to vector<4x1xf32>
    %665 = vector.broadcast %664 : vector<4x1xf32> to vector<4x32xf32>
    %666 = arith.mulf %665, %457 : vector<4x32xf32>
    %667 = vector.extract_strided_slice %657 {offsets = [0, 3], sizes = [4, 1], strides = [1, 1]} : vector<4x8xf32> to vector<4x1xf32>
    %668 = vector.broadcast %667 : vector<4x1xf32> to vector<4x32xf32>
    %669 = arith.mulf %668, %460 : vector<4x32xf32>
    %670 = vector.extract_strided_slice %657 {offsets = [0, 4], sizes = [4, 1], strides = [1, 1]} : vector<4x8xf32> to vector<4x1xf32>
    %671 = vector.broadcast %670 : vector<4x1xf32> to vector<4x32xf32>
    %672 = arith.mulf %671, %463 : vector<4x32xf32>
    %673 = vector.extract_strided_slice %657 {offsets = [0, 5], sizes = [4, 1], strides = [1, 1]} : vector<4x8xf32> to vector<4x1xf32>
    %674 = vector.broadcast %673 : vector<4x1xf32> to vector<4x32xf32>
    %675 = arith.mulf %674, %466 : vector<4x32xf32>
    %676 = vector.extract_strided_slice %657 {offsets = [0, 6], sizes = [4, 1], strides = [1, 1]} : vector<4x8xf32> to vector<4x1xf32>
    %677 = vector.broadcast %676 : vector<4x1xf32> to vector<4x32xf32>
    %678 = arith.mulf %677, %469 : vector<4x32xf32>
    %679 = vector.extract_strided_slice %657 {offsets = [0, 7], sizes = [4, 1], strides = [1, 1]} : vector<4x8xf32> to vector<4x1xf32>
    %680 = vector.broadcast %679 : vector<4x1xf32> to vector<4x32xf32>
    %681 = arith.mulf %680, %472 : vector<4x32xf32>
    %682 = vector.extract_strided_slice %448 {offsets = [4, 0, 0], sizes = [1, 4, 32], strides = [1, 1, 1]} : vector<8x4x32xf32> to vector<1x4x32xf32>
    %683 = vector.shape_cast %682 : vector<1x4x32xf32> to vector<4x32xf32>
    %684 = arith.addf %660, %663 : vector<4x32xf32>
    %685 = arith.addf %666, %669 : vector<4x32xf32>
    %686 = arith.addf %672, %675 : vector<4x32xf32>
    %687 = arith.addf %678, %681 : vector<4x32xf32>
    %688 = arith.addf %684, %685 : vector<4x32xf32>
    %689 = arith.addf %686, %687 : vector<4x32xf32>
    %690 = arith.addf %688, %689 : vector<4x32xf32>
    %691 = arith.addf %683, %690 : vector<4x32xf32>
    %692 = math.tanh %691 : vector<4x32xf32>
    %693 = vector.extract_strided_slice %692 {offsets = [0, 0], sizes = [4, 8], strides = [1, 1]} : vector<4x32xf32> to vector<4x8xf32>
    %cst_77 = arith.constant 5.000000e-01 : f32
    %694 = vector.broadcast %cst_77 : f32 to vector<4x8xf32>
    %695 = arith.mulf %694, %693 : vector<4x8xf32>
    %cst_78 = arith.constant 5.000000e-01 : f32
    %696 = vector.broadcast %cst_78 : f32 to vector<4x8xf32>
    %697 = arith.addf %695, %696 : vector<4x8xf32>
    %698 = vector.extract_strided_slice %692 {offsets = [0, 8], sizes = [4, 8], strides = [1, 1]} : vector<4x32xf32> to vector<4x8xf32>
    %cst_79 = arith.constant 5.000000e-01 : f32
    %699 = vector.broadcast %cst_79 : f32 to vector<4x8xf32>
    %700 = arith.mulf %699, %698 : vector<4x8xf32>
    %cst_80 = arith.constant 5.000000e-01 : f32
    %701 = vector.broadcast %cst_80 : f32 to vector<4x8xf32>
    %702 = arith.addf %700, %701 : vector<4x8xf32>
    %703 = vector.extract_strided_slice %692 {offsets = [0, 16], sizes = [4, 8], strides = [1, 1]} : vector<4x32xf32> to vector<4x8xf32>
    %704 = vector.extract_strided_slice %692 {offsets = [0, 24], sizes = [4, 8], strides = [1, 1]} : vector<4x32xf32> to vector<4x8xf32>
    %cst_81 = arith.constant 5.000000e-01 : f32
    %705 = vector.broadcast %cst_81 : f32 to vector<4x8xf32>
    %706 = arith.mulf %705, %704 : vector<4x8xf32>
    %cst_82 = arith.constant 5.000000e-01 : f32
    %707 = vector.broadcast %cst_82 : f32 to vector<4x8xf32>
    %708 = arith.addf %706, %707 : vector<4x8xf32>
    %709 = arith.mulf %702, %655 : vector<4x8xf32>
    %710 = arith.mulf %697, %703 : vector<4x8xf32>
    %711 = arith.addf %709, %710 : vector<4x8xf32>
    %712 = math.tanh %711 : vector<4x8xf32>
    %713 = arith.mulf %708, %712 : vector<4x8xf32>
    %714 = vector.extract_strided_slice %713 {offsets = [0, 0], sizes = [4, 1], strides = [1, 1]} : vector<4x8xf32> to vector<4x1xf32>
    %715 = vector.broadcast %714 : vector<4x1xf32> to vector<4x32xf32>
    %716 = arith.mulf %715, %451 : vector<4x32xf32>
    %717 = vector.extract_strided_slice %713 {offsets = [0, 1], sizes = [4, 1], strides = [1, 1]} : vector<4x8xf32> to vector<4x1xf32>
    %718 = vector.broadcast %717 : vector<4x1xf32> to vector<4x32xf32>
    %719 = arith.mulf %718, %454 : vector<4x32xf32>
    %720 = vector.extract_strided_slice %713 {offsets = [0, 2], sizes = [4, 1], strides = [1, 1]} : vector<4x8xf32> to vector<4x1xf32>
    %721 = vector.broadcast %720 : vector<4x1xf32> to vector<4x32xf32>
    %722 = arith.mulf %721, %457 : vector<4x32xf32>
    %723 = vector.extract_strided_slice %713 {offsets = [0, 3], sizes = [4, 1], strides = [1, 1]} : vector<4x8xf32> to vector<4x1xf32>
    %724 = vector.broadcast %723 : vector<4x1xf32> to vector<4x32xf32>
    %725 = arith.mulf %724, %460 : vector<4x32xf32>
    %726 = vector.extract_strided_slice %713 {offsets = [0, 4], sizes = [4, 1], strides = [1, 1]} : vector<4x8xf32> to vector<4x1xf32>
    %727 = vector.broadcast %726 : vector<4x1xf32> to vector<4x32xf32>
    %728 = arith.mulf %727, %463 : vector<4x32xf32>
    %729 = vector.extract_strided_slice %713 {offsets = [0, 5], sizes = [4, 1], strides = [1, 1]} : vector<4x8xf32> to vector<4x1xf32>
    %730 = vector.broadcast %729 : vector<4x1xf32> to vector<4x32xf32>
    %731 = arith.mulf %730, %466 : vector<4x32xf32>
    %732 = vector.extract_strided_slice %713 {offsets = [0, 6], sizes = [4, 1], strides = [1, 1]} : vector<4x8xf32> to vector<4x1xf32>
    %733 = vector.broadcast %732 : vector<4x1xf32> to vector<4x32xf32>
    %734 = arith.mulf %733, %469 : vector<4x32xf32>
    %735 = vector.extract_strided_slice %713 {offsets = [0, 7], sizes = [4, 1], strides = [1, 1]} : vector<4x8xf32> to vector<4x1xf32>
    %736 = vector.broadcast %735 : vector<4x1xf32> to vector<4x32xf32>
    %737 = arith.mulf %736, %472 : vector<4x32xf32>
    %738 = vector.extract_strided_slice %448 {offsets = [5, 0, 0], sizes = [1, 4, 32], strides = [1, 1, 1]} : vector<8x4x32xf32> to vector<1x4x32xf32>
    %739 = vector.shape_cast %738 : vector<1x4x32xf32> to vector<4x32xf32>
    %740 = arith.addf %716, %719 : vector<4x32xf32>
    %741 = arith.addf %722, %725 : vector<4x32xf32>
    %742 = arith.addf %728, %731 : vector<4x32xf32>
    %743 = arith.addf %734, %737 : vector<4x32xf32>
    %744 = arith.addf %740, %741 : vector<4x32xf32>
    %745 = arith.addf %742, %743 : vector<4x32xf32>
    %746 = arith.addf %744, %745 : vector<4x32xf32>
    %747 = arith.addf %739, %746 : vector<4x32xf32>
    %748 = math.tanh %747 : vector<4x32xf32>
    %749 = vector.extract_strided_slice %748 {offsets = [0, 0], sizes = [4, 8], strides = [1, 1]} : vector<4x32xf32> to vector<4x8xf32>
    %cst_83 = arith.constant 5.000000e-01 : f32
    %750 = vector.broadcast %cst_83 : f32 to vector<4x8xf32>
    %751 = arith.mulf %750, %749 : vector<4x8xf32>
    %cst_84 = arith.constant 5.000000e-01 : f32
    %752 = vector.broadcast %cst_84 : f32 to vector<4x8xf32>
    %753 = arith.addf %751, %752 : vector<4x8xf32>
    %754 = vector.extract_strided_slice %748 {offsets = [0, 8], sizes = [4, 8], strides = [1, 1]} : vector<4x32xf32> to vector<4x8xf32>
    %cst_85 = arith.constant 5.000000e-01 : f32
    %755 = vector.broadcast %cst_85 : f32 to vector<4x8xf32>
    %756 = arith.mulf %755, %754 : vector<4x8xf32>
    %cst_86 = arith.constant 5.000000e-01 : f32
    %757 = vector.broadcast %cst_86 : f32 to vector<4x8xf32>
    %758 = arith.addf %756, %757 : vector<4x8xf32>
    %759 = vector.extract_strided_slice %748 {offsets = [0, 16], sizes = [4, 8], strides = [1, 1]} : vector<4x32xf32> to vector<4x8xf32>
    %760 = vector.extract_strided_slice %748 {offsets = [0, 24], sizes = [4, 8], strides = [1, 1]} : vector<4x32xf32> to vector<4x8xf32>
    %cst_87 = arith.constant 5.000000e-01 : f32
    %761 = vector.broadcast %cst_87 : f32 to vector<4x8xf32>
    %762 = arith.mulf %761, %760 : vector<4x8xf32>
    %cst_88 = arith.constant 5.000000e-01 : f32
    %763 = vector.broadcast %cst_88 : f32 to vector<4x8xf32>
    %764 = arith.addf %762, %763 : vector<4x8xf32>
    %765 = arith.mulf %758, %711 : vector<4x8xf32>
    %766 = arith.mulf %753, %759 : vector<4x8xf32>
    %767 = arith.addf %765, %766 : vector<4x8xf32>
    %768 = math.tanh %767 : vector<4x8xf32>
    %769 = arith.mulf %764, %768 : vector<4x8xf32>
    %770 = vector.extract_strided_slice %769 {offsets = [0, 0], sizes = [4, 1], strides = [1, 1]} : vector<4x8xf32> to vector<4x1xf32>
    %771 = vector.broadcast %770 : vector<4x1xf32> to vector<4x32xf32>
    %772 = arith.mulf %771, %451 : vector<4x32xf32>
    %773 = vector.extract_strided_slice %769 {offsets = [0, 1], sizes = [4, 1], strides = [1, 1]} : vector<4x8xf32> to vector<4x1xf32>
    %774 = vector.broadcast %773 : vector<4x1xf32> to vector<4x32xf32>
    %775 = arith.mulf %774, %454 : vector<4x32xf32>
    %776 = vector.extract_strided_slice %769 {offsets = [0, 2], sizes = [4, 1], strides = [1, 1]} : vector<4x8xf32> to vector<4x1xf32>
    %777 = vector.broadcast %776 : vector<4x1xf32> to vector<4x32xf32>
    %778 = arith.mulf %777, %457 : vector<4x32xf32>
    %779 = vector.extract_strided_slice %769 {offsets = [0, 3], sizes = [4, 1], strides = [1, 1]} : vector<4x8xf32> to vector<4x1xf32>
    %780 = vector.broadcast %779 : vector<4x1xf32> to vector<4x32xf32>
    %781 = arith.mulf %780, %460 : vector<4x32xf32>
    %782 = vector.extract_strided_slice %769 {offsets = [0, 4], sizes = [4, 1], strides = [1, 1]} : vector<4x8xf32> to vector<4x1xf32>
    %783 = vector.broadcast %782 : vector<4x1xf32> to vector<4x32xf32>
    %784 = arith.mulf %783, %463 : vector<4x32xf32>
    %785 = vector.extract_strided_slice %769 {offsets = [0, 5], sizes = [4, 1], strides = [1, 1]} : vector<4x8xf32> to vector<4x1xf32>
    %786 = vector.broadcast %785 : vector<4x1xf32> to vector<4x32xf32>
    %787 = arith.mulf %786, %466 : vector<4x32xf32>
    %788 = vector.extract_strided_slice %769 {offsets = [0, 6], sizes = [4, 1], strides = [1, 1]} : vector<4x8xf32> to vector<4x1xf32>
    %789 = vector.broadcast %788 : vector<4x1xf32> to vector<4x32xf32>
    %790 = arith.mulf %789, %469 : vector<4x32xf32>
    %791 = vector.extract_strided_slice %769 {offsets = [0, 7], sizes = [4, 1], strides = [1, 1]} : vector<4x8xf32> to vector<4x1xf32>
    %792 = vector.broadcast %791 : vector<4x1xf32> to vector<4x32xf32>
    %793 = arith.mulf %792, %472 : vector<4x32xf32>
    %794 = vector.extract_strided_slice %448 {offsets = [6, 0, 0], sizes = [1, 4, 32], strides = [1, 1, 1]} : vector<8x4x32xf32> to vector<1x4x32xf32>
    %795 = vector.shape_cast %794 : vector<1x4x32xf32> to vector<4x32xf32>
    %796 = arith.addf %772, %775 : vector<4x32xf32>
    %797 = arith.addf %778, %781 : vector<4x32xf32>
    %798 = arith.addf %784, %787 : vector<4x32xf32>
    %799 = arith.addf %790, %793 : vector<4x32xf32>
    %800 = arith.addf %796, %797 : vector<4x32xf32>
    %801 = arith.addf %798, %799 : vector<4x32xf32>
    %802 = arith.addf %800, %801 : vector<4x32xf32>
    %803 = arith.addf %795, %802 : vector<4x32xf32>
    %804 = math.tanh %803 : vector<4x32xf32>
    %805 = vector.extract_strided_slice %804 {offsets = [0, 0], sizes = [4, 8], strides = [1, 1]} : vector<4x32xf32> to vector<4x8xf32>
    %cst_89 = arith.constant 5.000000e-01 : f32
    %806 = vector.broadcast %cst_89 : f32 to vector<4x8xf32>
    %807 = arith.mulf %806, %805 : vector<4x8xf32>
    %cst_90 = arith.constant 5.000000e-01 : f32
    %808 = vector.broadcast %cst_90 : f32 to vector<4x8xf32>
    %809 = arith.addf %807, %808 : vector<4x8xf32>
    %810 = vector.extract_strided_slice %804 {offsets = [0, 8], sizes = [4, 8], strides = [1, 1]} : vector<4x32xf32> to vector<4x8xf32>
    %cst_91 = arith.constant 5.000000e-01 : f32
    %811 = vector.broadcast %cst_91 : f32 to vector<4x8xf32>
    %812 = arith.mulf %811, %810 : vector<4x8xf32>
    %cst_92 = arith.constant 5.000000e-01 : f32
    %813 = vector.broadcast %cst_92 : f32 to vector<4x8xf32>
    %814 = arith.addf %812, %813 : vector<4x8xf32>
    %815 = vector.extract_strided_slice %804 {offsets = [0, 16], sizes = [4, 8], strides = [1, 1]} : vector<4x32xf32> to vector<4x8xf32>
    %816 = vector.extract_strided_slice %804 {offsets = [0, 24], sizes = [4, 8], strides = [1, 1]} : vector<4x32xf32> to vector<4x8xf32>
    %cst_93 = arith.constant 5.000000e-01 : f32
    %817 = vector.broadcast %cst_93 : f32 to vector<4x8xf32>
    %818 = arith.mulf %817, %816 : vector<4x8xf32>
    %cst_94 = arith.constant 5.000000e-01 : f32
    %819 = vector.broadcast %cst_94 : f32 to vector<4x8xf32>
    %820 = arith.addf %818, %819 : vector<4x8xf32>
    %821 = arith.mulf %814, %767 : vector<4x8xf32>
    %822 = arith.mulf %809, %815 : vector<4x8xf32>
    %823 = arith.addf %821, %822 : vector<4x8xf32>
    %824 = math.tanh %823 : vector<4x8xf32>
    %825 = arith.mulf %820, %824 : vector<4x8xf32>
    %826 = vector.extract_strided_slice %825 {offsets = [0, 0], sizes = [4, 1], strides = [1, 1]} : vector<4x8xf32> to vector<4x1xf32>
    %827 = vector.broadcast %826 : vector<4x1xf32> to vector<4x32xf32>
    %828 = arith.mulf %827, %451 : vector<4x32xf32>
    %829 = vector.extract_strided_slice %825 {offsets = [0, 1], sizes = [4, 1], strides = [1, 1]} : vector<4x8xf32> to vector<4x1xf32>
    %830 = vector.broadcast %829 : vector<4x1xf32> to vector<4x32xf32>
    %831 = arith.mulf %830, %454 : vector<4x32xf32>
    %832 = vector.extract_strided_slice %825 {offsets = [0, 2], sizes = [4, 1], strides = [1, 1]} : vector<4x8xf32> to vector<4x1xf32>
    %833 = vector.broadcast %832 : vector<4x1xf32> to vector<4x32xf32>
    %834 = arith.mulf %833, %457 : vector<4x32xf32>
    %835 = vector.extract_strided_slice %825 {offsets = [0, 3], sizes = [4, 1], strides = [1, 1]} : vector<4x8xf32> to vector<4x1xf32>
    %836 = vector.broadcast %835 : vector<4x1xf32> to vector<4x32xf32>
    %837 = arith.mulf %836, %460 : vector<4x32xf32>
    %838 = vector.extract_strided_slice %825 {offsets = [0, 4], sizes = [4, 1], strides = [1, 1]} : vector<4x8xf32> to vector<4x1xf32>
    %839 = vector.broadcast %838 : vector<4x1xf32> to vector<4x32xf32>
    %840 = arith.mulf %839, %463 : vector<4x32xf32>
    %841 = vector.extract_strided_slice %825 {offsets = [0, 5], sizes = [4, 1], strides = [1, 1]} : vector<4x8xf32> to vector<4x1xf32>
    %842 = vector.broadcast %841 : vector<4x1xf32> to vector<4x32xf32>
    %843 = arith.mulf %842, %466 : vector<4x32xf32>
    %844 = vector.extract_strided_slice %825 {offsets = [0, 6], sizes = [4, 1], strides = [1, 1]} : vector<4x8xf32> to vector<4x1xf32>
    %845 = vector.broadcast %844 : vector<4x1xf32> to vector<4x32xf32>
    %846 = arith.mulf %845, %469 : vector<4x32xf32>
    %847 = vector.extract_strided_slice %825 {offsets = [0, 7], sizes = [4, 1], strides = [1, 1]} : vector<4x8xf32> to vector<4x1xf32>
    %848 = vector.broadcast %847 : vector<4x1xf32> to vector<4x32xf32>
    %849 = arith.mulf %848, %472 : vector<4x32xf32>
    %850 = vector.extract_strided_slice %448 {offsets = [7, 0, 0], sizes = [1, 4, 32], strides = [1, 1, 1]} : vector<8x4x32xf32> to vector<1x4x32xf32>
    %851 = vector.shape_cast %850 : vector<1x4x32xf32> to vector<4x32xf32>
    %852 = arith.addf %828, %831 : vector<4x32xf32>
    %853 = arith.addf %834, %837 : vector<4x32xf32>
    %854 = arith.addf %840, %843 : vector<4x32xf32>
    %855 = arith.addf %846, %849 : vector<4x32xf32>
    %856 = arith.addf %852, %853 : vector<4x32xf32>
    %857 = arith.addf %854, %855 : vector<4x32xf32>
    %858 = arith.addf %856, %857 : vector<4x32xf32>
    %859 = arith.addf %851, %858 : vector<4x32xf32>
    %860 = math.tanh %859 : vector<4x32xf32>
    %861 = vector.extract_strided_slice %860 {offsets = [0, 0], sizes = [4, 8], strides = [1, 1]} : vector<4x32xf32> to vector<4x8xf32>
    %cst_95 = arith.constant 5.000000e-01 : f32
    %862 = vector.broadcast %cst_95 : f32 to vector<4x8xf32>
    %863 = arith.mulf %862, %861 : vector<4x8xf32>
    %cst_96 = arith.constant 5.000000e-01 : f32
    %864 = vector.broadcast %cst_96 : f32 to vector<4x8xf32>
    %865 = arith.addf %863, %864 : vector<4x8xf32>
    %866 = vector.extract_strided_slice %860 {offsets = [0, 8], sizes = [4, 8], strides = [1, 1]} : vector<4x32xf32> to vector<4x8xf32>
    %cst_97 = arith.constant 5.000000e-01 : f32
    %867 = vector.broadcast %cst_97 : f32 to vector<4x8xf32>
    %868 = arith.mulf %867, %866 : vector<4x8xf32>
    %cst_98 = arith.constant 5.000000e-01 : f32
    %869 = vector.broadcast %cst_98 : f32 to vector<4x8xf32>
    %870 = arith.addf %868, %869 : vector<4x8xf32>
    %871 = vector.extract_strided_slice %860 {offsets = [0, 16], sizes = [4, 8], strides = [1, 1]} : vector<4x32xf32> to vector<4x8xf32>
    %872 = vector.extract_strided_slice %860 {offsets = [0, 24], sizes = [4, 8], strides = [1, 1]} : vector<4x32xf32> to vector<4x8xf32>
    %cst_99 = arith.constant 5.000000e-01 : f32
    %873 = vector.broadcast %cst_99 : f32 to vector<4x8xf32>
    %874 = arith.mulf %873, %872 : vector<4x8xf32>
    %cst_100 = arith.constant 5.000000e-01 : f32
    %875 = vector.broadcast %cst_100 : f32 to vector<4x8xf32>
    %876 = arith.addf %874, %875 : vector<4x8xf32>
    %877 = arith.mulf %870, %823 : vector<4x8xf32>
    %878 = arith.mulf %865, %871 : vector<4x8xf32>
    %879 = arith.addf %877, %878 : vector<4x8xf32>
    %880 = math.tanh %879 : vector<4x8xf32>
    %881 = arith.mulf %876, %880 : vector<4x8xf32>
    %882 = tpu.concatenate %489, %545, %601, %657, %713, %769, %825, %881 in 0 : vector<4x8xf32>, vector<4x8xf32>, vector<4x8xf32>, vector<4x8xf32>, vector<4x8xf32>, vector<4x8xf32>, vector<4x8xf32>, vector<4x8xf32> -> vector<32x8xf32>
    %c64 = arith.constant 64 : index
    %c0_101 = arith.constant 0 : index
    %883 = vector.load %arg1[%c64, %c0_101] : memref<104x32xf32, #tpu.memory_space<vmem>>, vector<8x32xf32>
    %c72 = arith.constant 72 : index
    %c0_102 = arith.constant 0 : index
    %884 = vector.load %arg1[%c72, %c0_102] : memref<104x32xf32, #tpu.memory_space<vmem>>, vector<8x32xf32>
    %c80 = arith.constant 80 : index
    %c0_103 = arith.constant 0 : index
    %885 = vector.load %arg1[%c80, %c0_103] : memref<104x32xf32, #tpu.memory_space<vmem>>, vector<1x32xf32>
    %cst_104 = arith.constant dense<0.000000e+00> : vector<32x32xf32>
    %886 = tpu.matmul %882, %883, %cst_104 {dimension_numbers = #tpu.dot_dimension_numbers<[1], [0], [0], [1], [0, 0, 1, 1], [], []>} : vector<32x8xf32>, vector<8x32xf32>, vector<32x32xf32> -> vector<32x32xf32>
    %887 = vector.broadcast %885 : vector<1x32xf32> to vector<32x32xf32>
    %888 = arith.addf %886, %887 : vector<32x32xf32>
    %889 = vector.shape_cast %888 : vector<32x32xf32> to vector<8x4x32xf32>
    %890 = vector.extract_strided_slice %884 {offsets = [0, 0], sizes = [1, 32], strides = [1, 1]} : vector<8x32xf32> to vector<1x32xf32>
    %891 = vector.shape_cast %890 : vector<1x32xf32> to vector<1x32xf32>
    %892 = vector.broadcast %891 : vector<1x32xf32> to vector<4x32xf32>
    %893 = vector.extract_strided_slice %884 {offsets = [1, 0], sizes = [1, 32], strides = [1, 1]} : vector<8x32xf32> to vector<1x32xf32>
    %894 = vector.shape_cast %893 : vector<1x32xf32> to vector<1x32xf32>
    %895 = vector.broadcast %894 : vector<1x32xf32> to vector<4x32xf32>
    %896 = vector.extract_strided_slice %884 {offsets = [2, 0], sizes = [1, 32], strides = [1, 1]} : vector<8x32xf32> to vector<1x32xf32>
    %897 = vector.shape_cast %896 : vector<1x32xf32> to vector<1x32xf32>
    %898 = vector.broadcast %897 : vector<1x32xf32> to vector<4x32xf32>
    %899 = vector.extract_strided_slice %884 {offsets = [3, 0], sizes = [1, 32], strides = [1, 1]} : vector<8x32xf32> to vector<1x32xf32>
    %900 = vector.shape_cast %899 : vector<1x32xf32> to vector<1x32xf32>
    %901 = vector.broadcast %900 : vector<1x32xf32> to vector<4x32xf32>
    %902 = vector.extract_strided_slice %884 {offsets = [4, 0], sizes = [1, 32], strides = [1, 1]} : vector<8x32xf32> to vector<1x32xf32>
    %903 = vector.shape_cast %902 : vector<1x32xf32> to vector<1x32xf32>
    %904 = vector.broadcast %903 : vector<1x32xf32> to vector<4x32xf32>
    %905 = vector.extract_strided_slice %884 {offsets = [5, 0], sizes = [1, 32], strides = [1, 1]} : vector<8x32xf32> to vector<1x32xf32>
    %906 = vector.shape_cast %905 : vector<1x32xf32> to vector<1x32xf32>
    %907 = vector.broadcast %906 : vector<1x32xf32> to vector<4x32xf32>
    %908 = vector.extract_strided_slice %884 {offsets = [6, 0], sizes = [1, 32], strides = [1, 1]} : vector<8x32xf32> to vector<1x32xf32>
    %909 = vector.shape_cast %908 : vector<1x32xf32> to vector<1x32xf32>
    %910 = vector.broadcast %909 : vector<1x32xf32> to vector<4x32xf32>
    %911 = vector.extract_strided_slice %884 {offsets = [7, 0], sizes = [1, 32], strides = [1, 1]} : vector<8x32xf32> to vector<1x32xf32>
    %912 = vector.shape_cast %911 : vector<1x32xf32> to vector<1x32xf32>
    %913 = vector.broadcast %912 : vector<1x32xf32> to vector<4x32xf32>
    %914 = vector.extract_strided_slice %889 {offsets = [0, 0, 0], sizes = [1, 4, 32], strides = [1, 1, 1]} : vector<8x4x32xf32> to vector<1x4x32xf32>
    %915 = vector.shape_cast %914 : vector<1x4x32xf32> to vector<4x32xf32>
    %916 = math.tanh %915 : vector<4x32xf32>
    %917 = vector.extract_strided_slice %916 {offsets = [0, 0], sizes = [4, 8], strides = [1, 1]} : vector<4x32xf32> to vector<4x8xf32>
    %cst_105 = arith.constant 5.000000e-01 : f32
    %918 = vector.broadcast %cst_105 : f32 to vector<4x8xf32>
    %919 = arith.mulf %918, %917 : vector<4x8xf32>
    %cst_106 = arith.constant 5.000000e-01 : f32
    %920 = vector.broadcast %cst_106 : f32 to vector<4x8xf32>
    %921 = arith.addf %919, %920 : vector<4x8xf32>
    %922 = vector.extract_strided_slice %916 {offsets = [0, 16], sizes = [4, 8], strides = [1, 1]} : vector<4x32xf32> to vector<4x8xf32>
    %923 = vector.extract_strided_slice %916 {offsets = [0, 24], sizes = [4, 8], strides = [1, 1]} : vector<4x32xf32> to vector<4x8xf32>
    %cst_107 = arith.constant 5.000000e-01 : f32
    %924 = vector.broadcast %cst_107 : f32 to vector<4x8xf32>
    %925 = arith.mulf %924, %923 : vector<4x8xf32>
    %cst_108 = arith.constant 5.000000e-01 : f32
    %926 = vector.broadcast %cst_108 : f32 to vector<4x8xf32>
    %927 = arith.addf %925, %926 : vector<4x8xf32>
    %928 = arith.mulf %921, %922 : vector<4x8xf32>
    %929 = math.tanh %928 : vector<4x8xf32>
    %930 = arith.mulf %927, %929 : vector<4x8xf32>
    %931 = vector.extract_strided_slice %930 {offsets = [0, 0], sizes = [4, 1], strides = [1, 1]} : vector<4x8xf32> to vector<4x1xf32>
    %932 = vector.broadcast %931 : vector<4x1xf32> to vector<4x32xf32>
    %933 = arith.mulf %932, %892 : vector<4x32xf32>
    %934 = vector.extract_strided_slice %930 {offsets = [0, 1], sizes = [4, 1], strides = [1, 1]} : vector<4x8xf32> to vector<4x1xf32>
    %935 = vector.broadcast %934 : vector<4x1xf32> to vector<4x32xf32>
    %936 = arith.mulf %935, %895 : vector<4x32xf32>
    %937 = vector.extract_strided_slice %930 {offsets = [0, 2], sizes = [4, 1], strides = [1, 1]} : vector<4x8xf32> to vector<4x1xf32>
    %938 = vector.broadcast %937 : vector<4x1xf32> to vector<4x32xf32>
    %939 = arith.mulf %938, %898 : vector<4x32xf32>
    %940 = vector.extract_strided_slice %930 {offsets = [0, 3], sizes = [4, 1], strides = [1, 1]} : vector<4x8xf32> to vector<4x1xf32>
    %941 = vector.broadcast %940 : vector<4x1xf32> to vector<4x32xf32>
    %942 = arith.mulf %941, %901 : vector<4x32xf32>
    %943 = vector.extract_strided_slice %930 {offsets = [0, 4], sizes = [4, 1], strides = [1, 1]} : vector<4x8xf32> to vector<4x1xf32>
    %944 = vector.broadcast %943 : vector<4x1xf32> to vector<4x32xf32>
    %945 = arith.mulf %944, %904 : vector<4x32xf32>
    %946 = vector.extract_strided_slice %930 {offsets = [0, 5], sizes = [4, 1], strides = [1, 1]} : vector<4x8xf32> to vector<4x1xf32>
    %947 = vector.broadcast %946 : vector<4x1xf32> to vector<4x32xf32>
    %948 = arith.mulf %947, %907 : vector<4x32xf32>
    %949 = vector.extract_strided_slice %930 {offsets = [0, 6], sizes = [4, 1], strides = [1, 1]} : vector<4x8xf32> to vector<4x1xf32>
    %950 = vector.broadcast %949 : vector<4x1xf32> to vector<4x32xf32>
    %951 = arith.mulf %950, %910 : vector<4x32xf32>
    %952 = vector.extract_strided_slice %930 {offsets = [0, 7], sizes = [4, 1], strides = [1, 1]} : vector<4x8xf32> to vector<4x1xf32>
    %953 = vector.broadcast %952 : vector<4x1xf32> to vector<4x32xf32>
    %954 = arith.mulf %953, %913 : vector<4x32xf32>
    %955 = vector.extract_strided_slice %889 {offsets = [1, 0, 0], sizes = [1, 4, 32], strides = [1, 1, 1]} : vector<8x4x32xf32> to vector<1x4x32xf32>
    %956 = vector.shape_cast %955 : vector<1x4x32xf32> to vector<4x32xf32>
    %957 = arith.addf %933, %936 : vector<4x32xf32>
    %958 = arith.addf %939, %942 : vector<4x32xf32>
    %959 = arith.addf %945, %948 : vector<4x32xf32>
    %960 = arith.addf %951, %954 : vector<4x32xf32>
    %961 = arith.addf %957, %958 : vector<4x32xf32>
    %962 = arith.addf %959, %960 : vector<4x32xf32>
    %963 = arith.addf %961, %962 : vector<4x32xf32>
    %964 = arith.addf %956, %963 : vector<4x32xf32>
    %965 = math.tanh %964 : vector<4x32xf32>
    %966 = vector.extract_strided_slice %965 {offsets = [0, 0], sizes = [4, 8], strides = [1, 1]} : vector<4x32xf32> to vector<4x8xf32>
    %cst_109 = arith.constant 5.000000e-01 : f32
    %967 = vector.broadcast %cst_109 : f32 to vector<4x8xf32>
    %968 = arith.mulf %967, %966 : vector<4x8xf32>
    %cst_110 = arith.constant 5.000000e-01 : f32
    %969 = vector.broadcast %cst_110 : f32 to vector<4x8xf32>
    %970 = arith.addf %968, %969 : vector<4x8xf32>
    %971 = vector.extract_strided_slice %965 {offsets = [0, 8], sizes = [4, 8], strides = [1, 1]} : vector<4x32xf32> to vector<4x8xf32>
    %cst_111 = arith.constant 5.000000e-01 : f32
    %972 = vector.broadcast %cst_111 : f32 to vector<4x8xf32>
    %973 = arith.mulf %972, %971 : vector<4x8xf32>
    %cst_112 = arith.constant 5.000000e-01 : f32
    %974 = vector.broadcast %cst_112 : f32 to vector<4x8xf32>
    %975 = arith.addf %973, %974 : vector<4x8xf32>
    %976 = vector.extract_strided_slice %965 {offsets = [0, 16], sizes = [4, 8], strides = [1, 1]} : vector<4x32xf32> to vector<4x8xf32>
    %977 = vector.extract_strided_slice %965 {offsets = [0, 24], sizes = [4, 8], strides = [1, 1]} : vector<4x32xf32> to vector<4x8xf32>
    %cst_113 = arith.constant 5.000000e-01 : f32
    %978 = vector.broadcast %cst_113 : f32 to vector<4x8xf32>
    %979 = arith.mulf %978, %977 : vector<4x8xf32>
    %cst_114 = arith.constant 5.000000e-01 : f32
    %980 = vector.broadcast %cst_114 : f32 to vector<4x8xf32>
    %981 = arith.addf %979, %980 : vector<4x8xf32>
    %982 = arith.mulf %975, %928 : vector<4x8xf32>
    %983 = arith.mulf %970, %976 : vector<4x8xf32>
    %984 = arith.addf %982, %983 : vector<4x8xf32>
    %985 = math.tanh %984 : vector<4x8xf32>
    %986 = arith.mulf %981, %985 : vector<4x8xf32>
    %987 = vector.extract_strided_slice %986 {offsets = [0, 0], sizes = [4, 1], strides = [1, 1]} : vector<4x8xf32> to vector<4x1xf32>
    %988 = vector.broadcast %987 : vector<4x1xf32> to vector<4x32xf32>
    %989 = arith.mulf %988, %892 : vector<4x32xf32>
    %990 = vector.extract_strided_slice %986 {offsets = [0, 1], sizes = [4, 1], strides = [1, 1]} : vector<4x8xf32> to vector<4x1xf32>
    %991 = vector.broadcast %990 : vector<4x1xf32> to vector<4x32xf32>
    %992 = arith.mulf %991, %895 : vector<4x32xf32>
    %993 = vector.extract_strided_slice %986 {offsets = [0, 2], sizes = [4, 1], strides = [1, 1]} : vector<4x8xf32> to vector<4x1xf32>
    %994 = vector.broadcast %993 : vector<4x1xf32> to vector<4x32xf32>
    %995 = arith.mulf %994, %898 : vector<4x32xf32>
    %996 = vector.extract_strided_slice %986 {offsets = [0, 3], sizes = [4, 1], strides = [1, 1]} : vector<4x8xf32> to vector<4x1xf32>
    %997 = vector.broadcast %996 : vector<4x1xf32> to vector<4x32xf32>
    %998 = arith.mulf %997, %901 : vector<4x32xf32>
    %999 = vector.extract_strided_slice %986 {offsets = [0, 4], sizes = [4, 1], strides = [1, 1]} : vector<4x8xf32> to vector<4x1xf32>
    %1000 = vector.broadcast %999 : vector<4x1xf32> to vector<4x32xf32>
    %1001 = arith.mulf %1000, %904 : vector<4x32xf32>
    %1002 = vector.extract_strided_slice %986 {offsets = [0, 5], sizes = [4, 1], strides = [1, 1]} : vector<4x8xf32> to vector<4x1xf32>
    %1003 = vector.broadcast %1002 : vector<4x1xf32> to vector<4x32xf32>
    %1004 = arith.mulf %1003, %907 : vector<4x32xf32>
    %1005 = vector.extract_strided_slice %986 {offsets = [0, 6], sizes = [4, 1], strides = [1, 1]} : vector<4x8xf32> to vector<4x1xf32>
    %1006 = vector.broadcast %1005 : vector<4x1xf32> to vector<4x32xf32>
    %1007 = arith.mulf %1006, %910 : vector<4x32xf32>
    %1008 = vector.extract_strided_slice %986 {offsets = [0, 7], sizes = [4, 1], strides = [1, 1]} : vector<4x8xf32> to vector<4x1xf32>
    %1009 = vector.broadcast %1008 : vector<4x1xf32> to vector<4x32xf32>
    %1010 = arith.mulf %1009, %913 : vector<4x32xf32>
    %1011 = vector.extract_strided_slice %889 {offsets = [2, 0, 0], sizes = [1, 4, 32], strides = [1, 1, 1]} : vector<8x4x32xf32> to vector<1x4x32xf32>
    %1012 = vector.shape_cast %1011 : vector<1x4x32xf32> to vector<4x32xf32>
    %1013 = arith.addf %989, %992 : vector<4x32xf32>
    %1014 = arith.addf %995, %998 : vector<4x32xf32>
    %1015 = arith.addf %1001, %1004 : vector<4x32xf32>
    %1016 = arith.addf %1007, %1010 : vector<4x32xf32>
    %1017 = arith.addf %1013, %1014 : vector<4x32xf32>
    %1018 = arith.addf %1015, %1016 : vector<4x32xf32>
    %1019 = arith.addf %1017, %1018 : vector<4x32xf32>
    %1020 = arith.addf %1012, %1019 : vector<4x32xf32>
    %1021 = math.tanh %1020 : vector<4x32xf32>
    %1022 = vector.extract_strided_slice %1021 {offsets = [0, 0], sizes = [4, 8], strides = [1, 1]} : vector<4x32xf32> to vector<4x8xf32>
    %cst_115 = arith.constant 5.000000e-01 : f32
    %1023 = vector.broadcast %cst_115 : f32 to vector<4x8xf32>
    %1024 = arith.mulf %1023, %1022 : vector<4x8xf32>
    %cst_116 = arith.constant 5.000000e-01 : f32
    %1025 = vector.broadcast %cst_116 : f32 to vector<4x8xf32>
    %1026 = arith.addf %1024, %1025 : vector<4x8xf32>
    %1027 = vector.extract_strided_slice %1021 {offsets = [0, 8], sizes = [4, 8], strides = [1, 1]} : vector<4x32xf32> to vector<4x8xf32>
    %cst_117 = arith.constant 5.000000e-01 : f32
    %1028 = vector.broadcast %cst_117 : f32 to vector<4x8xf32>
    %1029 = arith.mulf %1028, %1027 : vector<4x8xf32>
    %cst_118 = arith.constant 5.000000e-01 : f32
    %1030 = vector.broadcast %cst_118 : f32 to vector<4x8xf32>
    %1031 = arith.addf %1029, %1030 : vector<4x8xf32>
    %1032 = vector.extract_strided_slice %1021 {offsets = [0, 16], sizes = [4, 8], strides = [1, 1]} : vector<4x32xf32> to vector<4x8xf32>
    %1033 = vector.extract_strided_slice %1021 {offsets = [0, 24], sizes = [4, 8], strides = [1, 1]} : vector<4x32xf32> to vector<4x8xf32>
    %cst_119 = arith.constant 5.000000e-01 : f32
    %1034 = vector.broadcast %cst_119 : f32 to vector<4x8xf32>
    %1035 = arith.mulf %1034, %1033 : vector<4x8xf32>
    %cst_120 = arith.constant 5.000000e-01 : f32
    %1036 = vector.broadcast %cst_120 : f32 to vector<4x8xf32>
    %1037 = arith.addf %1035, %1036 : vector<4x8xf32>
    %1038 = arith.mulf %1031, %984 : vector<4x8xf32>
    %1039 = arith.mulf %1026, %1032 : vector<4x8xf32>
    %1040 = arith.addf %1038, %1039 : vector<4x8xf32>
    %1041 = math.tanh %1040 : vector<4x8xf32>
    %1042 = arith.mulf %1037, %1041 : vector<4x8xf32>
    %1043 = vector.extract_strided_slice %1042 {offsets = [0, 0], sizes = [4, 1], strides = [1, 1]} : vector<4x8xf32> to vector<4x1xf32>
    %1044 = vector.broadcast %1043 : vector<4x1xf32> to vector<4x32xf32>
    %1045 = arith.mulf %1044, %892 : vector<4x32xf32>
    %1046 = vector.extract_strided_slice %1042 {offsets = [0, 1], sizes = [4, 1], strides = [1, 1]} : vector<4x8xf32> to vector<4x1xf32>
    %1047 = vector.broadcast %1046 : vector<4x1xf32> to vector<4x32xf32>
    %1048 = arith.mulf %1047, %895 : vector<4x32xf32>
    %1049 = vector.extract_strided_slice %1042 {offsets = [0, 2], sizes = [4, 1], strides = [1, 1]} : vector<4x8xf32> to vector<4x1xf32>
    %1050 = vector.broadcast %1049 : vector<4x1xf32> to vector<4x32xf32>
    %1051 = arith.mulf %1050, %898 : vector<4x32xf32>
    %1052 = vector.extract_strided_slice %1042 {offsets = [0, 3], sizes = [4, 1], strides = [1, 1]} : vector<4x8xf32> to vector<4x1xf32>
    %1053 = vector.broadcast %1052 : vector<4x1xf32> to vector<4x32xf32>
    %1054 = arith.mulf %1053, %901 : vector<4x32xf32>
    %1055 = vector.extract_strided_slice %1042 {offsets = [0, 4], sizes = [4, 1], strides = [1, 1]} : vector<4x8xf32> to vector<4x1xf32>
    %1056 = vector.broadcast %1055 : vector<4x1xf32> to vector<4x32xf32>
    %1057 = arith.mulf %1056, %904 : vector<4x32xf32>
    %1058 = vector.extract_strided_slice %1042 {offsets = [0, 5], sizes = [4, 1], strides = [1, 1]} : vector<4x8xf32> to vector<4x1xf32>
    %1059 = vector.broadcast %1058 : vector<4x1xf32> to vector<4x32xf32>
    %1060 = arith.mulf %1059, %907 : vector<4x32xf32>
    %1061 = vector.extract_strided_slice %1042 {offsets = [0, 6], sizes = [4, 1], strides = [1, 1]} : vector<4x8xf32> to vector<4x1xf32>
    %1062 = vector.broadcast %1061 : vector<4x1xf32> to vector<4x32xf32>
    %1063 = arith.mulf %1062, %910 : vector<4x32xf32>
    %1064 = vector.extract_strided_slice %1042 {offsets = [0, 7], sizes = [4, 1], strides = [1, 1]} : vector<4x8xf32> to vector<4x1xf32>
    %1065 = vector.broadcast %1064 : vector<4x1xf32> to vector<4x32xf32>
    %1066 = arith.mulf %1065, %913 : vector<4x32xf32>
    %1067 = vector.extract_strided_slice %889 {offsets = [3, 0, 0], sizes = [1, 4, 32], strides = [1, 1, 1]} : vector<8x4x32xf32> to vector<1x4x32xf32>
    %1068 = vector.shape_cast %1067 : vector<1x4x32xf32> to vector<4x32xf32>
    %1069 = arith.addf %1045, %1048 : vector<4x32xf32>
    %1070 = arith.addf %1051, %1054 : vector<4x32xf32>
    %1071 = arith.addf %1057, %1060 : vector<4x32xf32>
    %1072 = arith.addf %1063, %1066 : vector<4x32xf32>
    %1073 = arith.addf %1069, %1070 : vector<4x32xf32>
    %1074 = arith.addf %1071, %1072 : vector<4x32xf32>
    %1075 = arith.addf %1073, %1074 : vector<4x32xf32>
    %1076 = arith.addf %1068, %1075 : vector<4x32xf32>
    %1077 = math.tanh %1076 : vector<4x32xf32>
    %1078 = vector.extract_strided_slice %1077 {offsets = [0, 0], sizes = [4, 8], strides = [1, 1]} : vector<4x32xf32> to vector<4x8xf32>
    %cst_121 = arith.constant 5.000000e-01 : f32
    %1079 = vector.broadcast %cst_121 : f32 to vector<4x8xf32>
    %1080 = arith.mulf %1079, %1078 : vector<4x8xf32>
    %cst_122 = arith.constant 5.000000e-01 : f32
    %1081 = vector.broadcast %cst_122 : f32 to vector<4x8xf32>
    %1082 = arith.addf %1080, %1081 : vector<4x8xf32>
    %1083 = vector.extract_strided_slice %1077 {offsets = [0, 8], sizes = [4, 8], strides = [1, 1]} : vector<4x32xf32> to vector<4x8xf32>
    %cst_123 = arith.constant 5.000000e-01 : f32
    %1084 = vector.broadcast %cst_123 : f32 to vector<4x8xf32>
    %1085 = arith.mulf %1084, %1083 : vector<4x8xf32>
    %cst_124 = arith.constant 5.000000e-01 : f32
    %1086 = vector.broadcast %cst_124 : f32 to vector<4x8xf32>
    %1087 = arith.addf %1085, %1086 : vector<4x8xf32>
    %1088 = vector.extract_strided_slice %1077 {offsets = [0, 16], sizes = [4, 8], strides = [1, 1]} : vector<4x32xf32> to vector<4x8xf32>
    %1089 = vector.extract_strided_slice %1077 {offsets = [0, 24], sizes = [4, 8], strides = [1, 1]} : vector<4x32xf32> to vector<4x8xf32>
    %cst_125 = arith.constant 5.000000e-01 : f32
    %1090 = vector.broadcast %cst_125 : f32 to vector<4x8xf32>
    %1091 = arith.mulf %1090, %1089 : vector<4x8xf32>
    %cst_126 = arith.constant 5.000000e-01 : f32
    %1092 = vector.broadcast %cst_126 : f32 to vector<4x8xf32>
    %1093 = arith.addf %1091, %1092 : vector<4x8xf32>
    %1094 = arith.mulf %1087, %1040 : vector<4x8xf32>
    %1095 = arith.mulf %1082, %1088 : vector<4x8xf32>
    %1096 = arith.addf %1094, %1095 : vector<4x8xf32>
    %1097 = math.tanh %1096 : vector<4x8xf32>
    %1098 = arith.mulf %1093, %1097 : vector<4x8xf32>
    %1099 = vector.extract_strided_slice %1098 {offsets = [0, 0], sizes = [4, 1], strides = [1, 1]} : vector<4x8xf32> to vector<4x1xf32>
    %1100 = vector.broadcast %1099 : vector<4x1xf32> to vector<4x32xf32>
    %1101 = arith.mulf %1100, %892 : vector<4x32xf32>
    %1102 = vector.extract_strided_slice %1098 {offsets = [0, 1], sizes = [4, 1], strides = [1, 1]} : vector<4x8xf32> to vector<4x1xf32>
    %1103 = vector.broadcast %1102 : vector<4x1xf32> to vector<4x32xf32>
    %1104 = arith.mulf %1103, %895 : vector<4x32xf32>
    %1105 = vector.extract_strided_slice %1098 {offsets = [0, 2], sizes = [4, 1], strides = [1, 1]} : vector<4x8xf32> to vector<4x1xf32>
    %1106 = vector.broadcast %1105 : vector<4x1xf32> to vector<4x32xf32>
    %1107 = arith.mulf %1106, %898 : vector<4x32xf32>
    %1108 = vector.extract_strided_slice %1098 {offsets = [0, 3], sizes = [4, 1], strides = [1, 1]} : vector<4x8xf32> to vector<4x1xf32>
    %1109 = vector.broadcast %1108 : vector<4x1xf32> to vector<4x32xf32>
    %1110 = arith.mulf %1109, %901 : vector<4x32xf32>
    %1111 = vector.extract_strided_slice %1098 {offsets = [0, 4], sizes = [4, 1], strides = [1, 1]} : vector<4x8xf32> to vector<4x1xf32>
    %1112 = vector.broadcast %1111 : vector<4x1xf32> to vector<4x32xf32>
    %1113 = arith.mulf %1112, %904 : vector<4x32xf32>
    %1114 = vector.extract_strided_slice %1098 {offsets = [0, 5], sizes = [4, 1], strides = [1, 1]} : vector<4x8xf32> to vector<4x1xf32>
    %1115 = vector.broadcast %1114 : vector<4x1xf32> to vector<4x32xf32>
    %1116 = arith.mulf %1115, %907 : vector<4x32xf32>
    %1117 = vector.extract_strided_slice %1098 {offsets = [0, 6], sizes = [4, 1], strides = [1, 1]} : vector<4x8xf32> to vector<4x1xf32>
    %1118 = vector.broadcast %1117 : vector<4x1xf32> to vector<4x32xf32>
    %1119 = arith.mulf %1118, %910 : vector<4x32xf32>
    %1120 = vector.extract_strided_slice %1098 {offsets = [0, 7], sizes = [4, 1], strides = [1, 1]} : vector<4x8xf32> to vector<4x1xf32>
    %1121 = vector.broadcast %1120 : vector<4x1xf32> to vector<4x32xf32>
    %1122 = arith.mulf %1121, %913 : vector<4x32xf32>
    %1123 = vector.extract_strided_slice %889 {offsets = [4, 0, 0], sizes = [1, 4, 32], strides = [1, 1, 1]} : vector<8x4x32xf32> to vector<1x4x32xf32>
    %1124 = vector.shape_cast %1123 : vector<1x4x32xf32> to vector<4x32xf32>
    %1125 = arith.addf %1101, %1104 : vector<4x32xf32>
    %1126 = arith.addf %1107, %1110 : vector<4x32xf32>
    %1127 = arith.addf %1113, %1116 : vector<4x32xf32>
    %1128 = arith.addf %1119, %1122 : vector<4x32xf32>
    %1129 = arith.addf %1125, %1126 : vector<4x32xf32>
    %1130 = arith.addf %1127, %1128 : vector<4x32xf32>
    %1131 = arith.addf %1129, %1130 : vector<4x32xf32>
    %1132 = arith.addf %1124, %1131 : vector<4x32xf32>
    %1133 = math.tanh %1132 : vector<4x32xf32>
    %1134 = vector.extract_strided_slice %1133 {offsets = [0, 0], sizes = [4, 8], strides = [1, 1]} : vector<4x32xf32> to vector<4x8xf32>
    %cst_127 = arith.constant 5.000000e-01 : f32
    %1135 = vector.broadcast %cst_127 : f32 to vector<4x8xf32>
    %1136 = arith.mulf %1135, %1134 : vector<4x8xf32>
    %cst_128 = arith.constant 5.000000e-01 : f32
    %1137 = vector.broadcast %cst_128 : f32 to vector<4x8xf32>
    %1138 = arith.addf %1136, %1137 : vector<4x8xf32>
    %1139 = vector.extract_strided_slice %1133 {offsets = [0, 8], sizes = [4, 8], strides = [1, 1]} : vector<4x32xf32> to vector<4x8xf32>
    %cst_129 = arith.constant 5.000000e-01 : f32
    %1140 = vector.broadcast %cst_129 : f32 to vector<4x8xf32>
    %1141 = arith.mulf %1140, %1139 : vector<4x8xf32>
    %cst_130 = arith.constant 5.000000e-01 : f32
    %1142 = vector.broadcast %cst_130 : f32 to vector<4x8xf32>
    %1143 = arith.addf %1141, %1142 : vector<4x8xf32>
    %1144 = vector.extract_strided_slice %1133 {offsets = [0, 16], sizes = [4, 8], strides = [1, 1]} : vector<4x32xf32> to vector<4x8xf32>
    %1145 = vector.extract_strided_slice %1133 {offsets = [0, 24], sizes = [4, 8], strides = [1, 1]} : vector<4x32xf32> to vector<4x8xf32>
    %cst_131 = arith.constant 5.000000e-01 : f32
    %1146 = vector.broadcast %cst_131 : f32 to vector<4x8xf32>
    %1147 = arith.mulf %1146, %1145 : vector<4x8xf32>
    %cst_132 = arith.constant 5.000000e-01 : f32
    %1148 = vector.broadcast %cst_132 : f32 to vector<4x8xf32>
    %1149 = arith.addf %1147, %1148 : vector<4x8xf32>
    %1150 = arith.mulf %1143, %1096 : vector<4x8xf32>
    %1151 = arith.mulf %1138, %1144 : vector<4x8xf32>
    %1152 = arith.addf %1150, %1151 : vector<4x8xf32>
    %1153 = math.tanh %1152 : vector<4x8xf32>
    %1154 = arith.mulf %1149, %1153 : vector<4x8xf32>
    %1155 = vector.extract_strided_slice %1154 {offsets = [0, 0], sizes = [4, 1], strides = [1, 1]} : vector<4x8xf32> to vector<4x1xf32>
    %1156 = vector.broadcast %1155 : vector<4x1xf32> to vector<4x32xf32>
    %1157 = arith.mulf %1156, %892 : vector<4x32xf32>
    %1158 = vector.extract_strided_slice %1154 {offsets = [0, 1], sizes = [4, 1], strides = [1, 1]} : vector<4x8xf32> to vector<4x1xf32>
    %1159 = vector.broadcast %1158 : vector<4x1xf32> to vector<4x32xf32>
    %1160 = arith.mulf %1159, %895 : vector<4x32xf32>
    %1161 = vector.extract_strided_slice %1154 {offsets = [0, 2], sizes = [4, 1], strides = [1, 1]} : vector<4x8xf32> to vector<4x1xf32>
    %1162 = vector.broadcast %1161 : vector<4x1xf32> to vector<4x32xf32>
    %1163 = arith.mulf %1162, %898 : vector<4x32xf32>
    %1164 = vector.extract_strided_slice %1154 {offsets = [0, 3], sizes = [4, 1], strides = [1, 1]} : vector<4x8xf32> to vector<4x1xf32>
    %1165 = vector.broadcast %1164 : vector<4x1xf32> to vector<4x32xf32>
    %1166 = arith.mulf %1165, %901 : vector<4x32xf32>
    %1167 = vector.extract_strided_slice %1154 {offsets = [0, 4], sizes = [4, 1], strides = [1, 1]} : vector<4x8xf32> to vector<4x1xf32>
    %1168 = vector.broadcast %1167 : vector<4x1xf32> to vector<4x32xf32>
    %1169 = arith.mulf %1168, %904 : vector<4x32xf32>
    %1170 = vector.extract_strided_slice %1154 {offsets = [0, 5], sizes = [4, 1], strides = [1, 1]} : vector<4x8xf32> to vector<4x1xf32>
    %1171 = vector.broadcast %1170 : vector<4x1xf32> to vector<4x32xf32>
    %1172 = arith.mulf %1171, %907 : vector<4x32xf32>
    %1173 = vector.extract_strided_slice %1154 {offsets = [0, 6], sizes = [4, 1], strides = [1, 1]} : vector<4x8xf32> to vector<4x1xf32>
    %1174 = vector.broadcast %1173 : vector<4x1xf32> to vector<4x32xf32>
    %1175 = arith.mulf %1174, %910 : vector<4x32xf32>
    %1176 = vector.extract_strided_slice %1154 {offsets = [0, 7], sizes = [4, 1], strides = [1, 1]} : vector<4x8xf32> to vector<4x1xf32>
    %1177 = vector.broadcast %1176 : vector<4x1xf32> to vector<4x32xf32>
    %1178 = arith.mulf %1177, %913 : vector<4x32xf32>
    %1179 = vector.extract_strided_slice %889 {offsets = [5, 0, 0], sizes = [1, 4, 32], strides = [1, 1, 1]} : vector<8x4x32xf32> to vector<1x4x32xf32>
    %1180 = vector.shape_cast %1179 : vector<1x4x32xf32> to vector<4x32xf32>
    %1181 = arith.addf %1157, %1160 : vector<4x32xf32>
    %1182 = arith.addf %1163, %1166 : vector<4x32xf32>
    %1183 = arith.addf %1169, %1172 : vector<4x32xf32>
    %1184 = arith.addf %1175, %1178 : vector<4x32xf32>
    %1185 = arith.addf %1181, %1182 : vector<4x32xf32>
    %1186 = arith.addf %1183, %1184 : vector<4x32xf32>
    %1187 = arith.addf %1185, %1186 : vector<4x32xf32>
    %1188 = arith.addf %1180, %1187 : vector<4x32xf32>
    %1189 = math.tanh %1188 : vector<4x32xf32>
    %1190 = vector.extract_strided_slice %1189 {offsets = [0, 0], sizes = [4, 8], strides = [1, 1]} : vector<4x32xf32> to vector<4x8xf32>
    %cst_133 = arith.constant 5.000000e-01 : f32
    %1191 = vector.broadcast %cst_133 : f32 to vector<4x8xf32>
    %1192 = arith.mulf %1191, %1190 : vector<4x8xf32>
    %cst_134 = arith.constant 5.000000e-01 : f32
    %1193 = vector.broadcast %cst_134 : f32 to vector<4x8xf32>
    %1194 = arith.addf %1192, %1193 : vector<4x8xf32>
    %1195 = vector.extract_strided_slice %1189 {offsets = [0, 8], sizes = [4, 8], strides = [1, 1]} : vector<4x32xf32> to vector<4x8xf32>
    %cst_135 = arith.constant 5.000000e-01 : f32
    %1196 = vector.broadcast %cst_135 : f32 to vector<4x8xf32>
    %1197 = arith.mulf %1196, %1195 : vector<4x8xf32>
    %cst_136 = arith.constant 5.000000e-01 : f32
    %1198 = vector.broadcast %cst_136 : f32 to vector<4x8xf32>
    %1199 = arith.addf %1197, %1198 : vector<4x8xf32>
    %1200 = vector.extract_strided_slice %1189 {offsets = [0, 16], sizes = [4, 8], strides = [1, 1]} : vector<4x32xf32> to vector<4x8xf32>
    %1201 = vector.extract_strided_slice %1189 {offsets = [0, 24], sizes = [4, 8], strides = [1, 1]} : vector<4x32xf32> to vector<4x8xf32>
    %cst_137 = arith.constant 5.000000e-01 : f32
    %1202 = vector.broadcast %cst_137 : f32 to vector<4x8xf32>
    %1203 = arith.mulf %1202, %1201 : vector<4x8xf32>
    %cst_138 = arith.constant 5.000000e-01 : f32
    %1204 = vector.broadcast %cst_138 : f32 to vector<4x8xf32>
    %1205 = arith.addf %1203, %1204 : vector<4x8xf32>
    %1206 = arith.mulf %1199, %1152 : vector<4x8xf32>
    %1207 = arith.mulf %1194, %1200 : vector<4x8xf32>
    %1208 = arith.addf %1206, %1207 : vector<4x8xf32>
    %1209 = math.tanh %1208 : vector<4x8xf32>
    %1210 = arith.mulf %1205, %1209 : vector<4x8xf32>
    %1211 = vector.extract_strided_slice %1210 {offsets = [0, 0], sizes = [4, 1], strides = [1, 1]} : vector<4x8xf32> to vector<4x1xf32>
    %1212 = vector.broadcast %1211 : vector<4x1xf32> to vector<4x32xf32>
    %1213 = arith.mulf %1212, %892 : vector<4x32xf32>
    %1214 = vector.extract_strided_slice %1210 {offsets = [0, 1], sizes = [4, 1], strides = [1, 1]} : vector<4x8xf32> to vector<4x1xf32>
    %1215 = vector.broadcast %1214 : vector<4x1xf32> to vector<4x32xf32>
    %1216 = arith.mulf %1215, %895 : vector<4x32xf32>
    %1217 = vector.extract_strided_slice %1210 {offsets = [0, 2], sizes = [4, 1], strides = [1, 1]} : vector<4x8xf32> to vector<4x1xf32>
    %1218 = vector.broadcast %1217 : vector<4x1xf32> to vector<4x32xf32>
    %1219 = arith.mulf %1218, %898 : vector<4x32xf32>
    %1220 = vector.extract_strided_slice %1210 {offsets = [0, 3], sizes = [4, 1], strides = [1, 1]} : vector<4x8xf32> to vector<4x1xf32>
    %1221 = vector.broadcast %1220 : vector<4x1xf32> to vector<4x32xf32>
    %1222 = arith.mulf %1221, %901 : vector<4x32xf32>
    %1223 = vector.extract_strided_slice %1210 {offsets = [0, 4], sizes = [4, 1], strides = [1, 1]} : vector<4x8xf32> to vector<4x1xf32>
    %1224 = vector.broadcast %1223 : vector<4x1xf32> to vector<4x32xf32>
    %1225 = arith.mulf %1224, %904 : vector<4x32xf32>
    %1226 = vector.extract_strided_slice %1210 {offsets = [0, 5], sizes = [4, 1], strides = [1, 1]} : vector<4x8xf32> to vector<4x1xf32>
    %1227 = vector.broadcast %1226 : vector<4x1xf32> to vector<4x32xf32>
    %1228 = arith.mulf %1227, %907 : vector<4x32xf32>
    %1229 = vector.extract_strided_slice %1210 {offsets = [0, 6], sizes = [4, 1], strides = [1, 1]} : vector<4x8xf32> to vector<4x1xf32>
    %1230 = vector.broadcast %1229 : vector<4x1xf32> to vector<4x32xf32>
    %1231 = arith.mulf %1230, %910 : vector<4x32xf32>
    %1232 = vector.extract_strided_slice %1210 {offsets = [0, 7], sizes = [4, 1], strides = [1, 1]} : vector<4x8xf32> to vector<4x1xf32>
    %1233 = vector.broadcast %1232 : vector<4x1xf32> to vector<4x32xf32>
    %1234 = arith.mulf %1233, %913 : vector<4x32xf32>
    %1235 = vector.extract_strided_slice %889 {offsets = [6, 0, 0], sizes = [1, 4, 32], strides = [1, 1, 1]} : vector<8x4x32xf32> to vector<1x4x32xf32>
    %1236 = vector.shape_cast %1235 : vector<1x4x32xf32> to vector<4x32xf32>
    %1237 = arith.addf %1213, %1216 : vector<4x32xf32>
    %1238 = arith.addf %1219, %1222 : vector<4x32xf32>
    %1239 = arith.addf %1225, %1228 : vector<4x32xf32>
    %1240 = arith.addf %1231, %1234 : vector<4x32xf32>
    %1241 = arith.addf %1237, %1238 : vector<4x32xf32>
    %1242 = arith.addf %1239, %1240 : vector<4x32xf32>
    %1243 = arith.addf %1241, %1242 : vector<4x32xf32>
    %1244 = arith.addf %1236, %1243 : vector<4x32xf32>
    %1245 = math.tanh %1244 : vector<4x32xf32>
    %1246 = vector.extract_strided_slice %1245 {offsets = [0, 0], sizes = [4, 8], strides = [1, 1]} : vector<4x32xf32> to vector<4x8xf32>
    %cst_139 = arith.constant 5.000000e-01 : f32
    %1247 = vector.broadcast %cst_139 : f32 to vector<4x8xf32>
    %1248 = arith.mulf %1247, %1246 : vector<4x8xf32>
    %cst_140 = arith.constant 5.000000e-01 : f32
    %1249 = vector.broadcast %cst_140 : f32 to vector<4x8xf32>
    %1250 = arith.addf %1248, %1249 : vector<4x8xf32>
    %1251 = vector.extract_strided_slice %1245 {offsets = [0, 8], sizes = [4, 8], strides = [1, 1]} : vector<4x32xf32> to vector<4x8xf32>
    %cst_141 = arith.constant 5.000000e-01 : f32
    %1252 = vector.broadcast %cst_141 : f32 to vector<4x8xf32>
    %1253 = arith.mulf %1252, %1251 : vector<4x8xf32>
    %cst_142 = arith.constant 5.000000e-01 : f32
    %1254 = vector.broadcast %cst_142 : f32 to vector<4x8xf32>
    %1255 = arith.addf %1253, %1254 : vector<4x8xf32>
    %1256 = vector.extract_strided_slice %1245 {offsets = [0, 16], sizes = [4, 8], strides = [1, 1]} : vector<4x32xf32> to vector<4x8xf32>
    %1257 = vector.extract_strided_slice %1245 {offsets = [0, 24], sizes = [4, 8], strides = [1, 1]} : vector<4x32xf32> to vector<4x8xf32>
    %cst_143 = arith.constant 5.000000e-01 : f32
    %1258 = vector.broadcast %cst_143 : f32 to vector<4x8xf32>
    %1259 = arith.mulf %1258, %1257 : vector<4x8xf32>
    %cst_144 = arith.constant 5.000000e-01 : f32
    %1260 = vector.broadcast %cst_144 : f32 to vector<4x8xf32>
    %1261 = arith.addf %1259, %1260 : vector<4x8xf32>
    %1262 = arith.mulf %1255, %1208 : vector<4x8xf32>
    %1263 = arith.mulf %1250, %1256 : vector<4x8xf32>
    %1264 = arith.addf %1262, %1263 : vector<4x8xf32>
    %1265 = math.tanh %1264 : vector<4x8xf32>
    %1266 = arith.mulf %1261, %1265 : vector<4x8xf32>
    %1267 = vector.extract_strided_slice %1266 {offsets = [0, 0], sizes = [4, 1], strides = [1, 1]} : vector<4x8xf32> to vector<4x1xf32>
    %1268 = vector.broadcast %1267 : vector<4x1xf32> to vector<4x32xf32>
    %1269 = arith.mulf %1268, %892 : vector<4x32xf32>
    %1270 = vector.extract_strided_slice %1266 {offsets = [0, 1], sizes = [4, 1], strides = [1, 1]} : vector<4x8xf32> to vector<4x1xf32>
    %1271 = vector.broadcast %1270 : vector<4x1xf32> to vector<4x32xf32>
    %1272 = arith.mulf %1271, %895 : vector<4x32xf32>
    %1273 = vector.extract_strided_slice %1266 {offsets = [0, 2], sizes = [4, 1], strides = [1, 1]} : vector<4x8xf32> to vector<4x1xf32>
    %1274 = vector.broadcast %1273 : vector<4x1xf32> to vector<4x32xf32>
    %1275 = arith.mulf %1274, %898 : vector<4x32xf32>
    %1276 = vector.extract_strided_slice %1266 {offsets = [0, 3], sizes = [4, 1], strides = [1, 1]} : vector<4x8xf32> to vector<4x1xf32>
    %1277 = vector.broadcast %1276 : vector<4x1xf32> to vector<4x32xf32>
    %1278 = arith.mulf %1277, %901 : vector<4x32xf32>
    %1279 = vector.extract_strided_slice %1266 {offsets = [0, 4], sizes = [4, 1], strides = [1, 1]} : vector<4x8xf32> to vector<4x1xf32>
    %1280 = vector.broadcast %1279 : vector<4x1xf32> to vector<4x32xf32>
    %1281 = arith.mulf %1280, %904 : vector<4x32xf32>
    %1282 = vector.extract_strided_slice %1266 {offsets = [0, 5], sizes = [4, 1], strides = [1, 1]} : vector<4x8xf32> to vector<4x1xf32>
    %1283 = vector.broadcast %1282 : vector<4x1xf32> to vector<4x32xf32>
    %1284 = arith.mulf %1283, %907 : vector<4x32xf32>
    %1285 = vector.extract_strided_slice %1266 {offsets = [0, 6], sizes = [4, 1], strides = [1, 1]} : vector<4x8xf32> to vector<4x1xf32>
    %1286 = vector.broadcast %1285 : vector<4x1xf32> to vector<4x32xf32>
    %1287 = arith.mulf %1286, %910 : vector<4x32xf32>
    %1288 = vector.extract_strided_slice %1266 {offsets = [0, 7], sizes = [4, 1], strides = [1, 1]} : vector<4x8xf32> to vector<4x1xf32>
    %1289 = vector.broadcast %1288 : vector<4x1xf32> to vector<4x32xf32>
    %1290 = arith.mulf %1289, %913 : vector<4x32xf32>
    %1291 = vector.extract_strided_slice %889 {offsets = [7, 0, 0], sizes = [1, 4, 32], strides = [1, 1, 1]} : vector<8x4x32xf32> to vector<1x4x32xf32>
    %1292 = vector.shape_cast %1291 : vector<1x4x32xf32> to vector<4x32xf32>
    %1293 = arith.addf %1269, %1272 : vector<4x32xf32>
    %1294 = arith.addf %1275, %1278 : vector<4x32xf32>
    %1295 = arith.addf %1281, %1284 : vector<4x32xf32>
    %1296 = arith.addf %1287, %1290 : vector<4x32xf32>
    %1297 = arith.addf %1293, %1294 : vector<4x32xf32>
    %1298 = arith.addf %1295, %1296 : vector<4x32xf32>
    %1299 = arith.addf %1297, %1298 : vector<4x32xf32>
    %1300 = arith.addf %1292, %1299 : vector<4x32xf32>
    %1301 = math.tanh %1300 : vector<4x32xf32>
    %1302 = vector.extract_strided_slice %1301 {offsets = [0, 0], sizes = [4, 8], strides = [1, 1]} : vector<4x32xf32> to vector<4x8xf32>
    %cst_145 = arith.constant 5.000000e-01 : f32
    %1303 = vector.broadcast %cst_145 : f32 to vector<4x8xf32>
    %1304 = arith.mulf %1303, %1302 : vector<4x8xf32>
    %cst_146 = arith.constant 5.000000e-01 : f32
    %1305 = vector.broadcast %cst_146 : f32 to vector<4x8xf32>
    %1306 = arith.addf %1304, %1305 : vector<4x8xf32>
    %1307 = vector.extract_strided_slice %1301 {offsets = [0, 8], sizes = [4, 8], strides = [1, 1]} : vector<4x32xf32> to vector<4x8xf32>
    %cst_147 = arith.constant 5.000000e-01 : f32
    %1308 = vector.broadcast %cst_147 : f32 to vector<4x8xf32>
    %1309 = arith.mulf %1308, %1307 : vector<4x8xf32>
    %cst_148 = arith.constant 5.000000e-01 : f32
    %1310 = vector.broadcast %cst_148 : f32 to vector<4x8xf32>
    %1311 = arith.addf %1309, %1310 : vector<4x8xf32>
    %1312 = vector.extract_strided_slice %1301 {offsets = [0, 16], sizes = [4, 8], strides = [1, 1]} : vector<4x32xf32> to vector<4x8xf32>
    %1313 = vector.extract_strided_slice %1301 {offsets = [0, 24], sizes = [4, 8], strides = [1, 1]} : vector<4x32xf32> to vector<4x8xf32>
    %cst_149 = arith.constant 5.000000e-01 : f32
    %1314 = vector.broadcast %cst_149 : f32 to vector<4x8xf32>
    %1315 = arith.mulf %1314, %1313 : vector<4x8xf32>
    %cst_150 = arith.constant 5.000000e-01 : f32
    %1316 = vector.broadcast %cst_150 : f32 to vector<4x8xf32>
    %1317 = arith.addf %1315, %1316 : vector<4x8xf32>
    %1318 = arith.mulf %1311, %1264 : vector<4x8xf32>
    %1319 = arith.mulf %1306, %1312 : vector<4x8xf32>
    %1320 = arith.addf %1318, %1319 : vector<4x8xf32>
    %1321 = math.tanh %1320 : vector<4x8xf32>
    %1322 = arith.mulf %1317, %1321 : vector<4x8xf32>
    %1323 = tpu.concatenate %930, %986, %1042, %1098, %1154, %1210, %1266, %1322 in 0 : vector<4x8xf32>, vector<4x8xf32>, vector<4x8xf32>, vector<4x8xf32>, vector<4x8xf32>, vector<4x8xf32>, vector<4x8xf32>, vector<4x8xf32> -> vector<32x8xf32>
    %c88 = arith.constant 88 : index
    %c0_151 = arith.constant 0 : index
    %1324 = vector.load %arg1[%c88, %c0_151] : memref<104x32xf32, #tpu.memory_space<vmem>>, vector<8x8xf32>
    %c96 = arith.constant 96 : index
    %c0_152 = arith.constant 0 : index
    %1325 = vector.load %arg1[%c96, %c0_152] : memref<104x32xf32, #tpu.memory_space<vmem>>, vector<1x8xf32>
    %cst_153 = arith.constant dense<0.000000e+00> : vector<32x8xf32>
    %1326 = tpu.matmul %1323, %1324, %cst_153 {dimension_numbers = #tpu.dot_dimension_numbers<[1], [0], [0], [1], [0, 0, 1, 1], [], []>} : vector<32x8xf32>, vector<8x8xf32>, vector<32x8xf32> -> vector<32x8xf32>
    %1327 = vector.broadcast %1325 : vector<1x8xf32> to vector<32x8xf32>
    %1328 = arith.addf %1326, %1327 : vector<32x8xf32>
    %1329 = arith.negf %1328 : vector<32x8xf32>
    %1330 = math.exp %1329 : vector<32x8xf32>
    %cst_154 = arith.constant 1.000000e+00 : f32
    %1331 = vector.broadcast %cst_154 : f32 to vector<32x8xf32>
    %1332 = arith.addf %1331, %1330 : vector<32x8xf32>
    %1333 = arith.divf %1331, %1332 : vector<32x8xf32>
    %c0_155 = arith.constant 0 : index
    %c0_156 = arith.constant 0 : index
    %1334 = vector.load %arg2[%c0_155, %c0_156] : memref<32x8xf32, #tpu.memory_space<vmem>>, vector<32x8xf32>
    tpu.vector_store %arg2[%c0_155, %c0_156], %1333 {strides = array<i32>} : memref<32x8xf32, #tpu.memory_space<vmem>>, vector<32x8xf32>,
    return
  }
}

</mosaic_0001>

<llo_original>
// kernel: tg_recovery_forward.1
$region0: #{tg_recovery_forward.1}
  #allocation0 [shape = 'u32[]', space=smem, size = 0x4, offset = 0x4, fixed_abs, tag = 'smem constant byte address 0x4 - core index']
  #allocation1 [shape = 'u32[144,128]{1,0:T(1,128)}', space=vmem, size = 0x12000, scoped, tag = 'internal scratch']
  %s0 = inlined_call_operand.vmem [shape: f32[32,24], index: 0, kind: input, shape index: {}]
  %s1 = inlined_call_operand.vmem [shape: f32[104,32], index: 1, kind: input, shape index: {}]
  %s2 = inlined_call_operand.vmem [shape: f32[32,8], index: 2, kind: output, shape index: {}]
  %s3 = sld [smem:[#allocation0]]
  $region18: #{tg_recovery_forward.1} parent=0
    _
  %s5 = ssub.s32 1, %s3
  %s6 = scalar_select 0, %s5, %s3
  // Predicated region
  $region2: #{tg_recovery_forward.1} parent=0 // pred_check
    _
  $region3: #{tg_recovery_forward.1} parent=0 // pred_check_branch
    %8 = sbr.rel (0) target = $region5
  $region4: #{tg_recovery_forward.1} parent=0 // pred_region
    _
  $region5: #{tg_recovery_forward.1} parent=0 // pred_fallthru
    _
  // Predicated region
  $region6: #{tg_recovery_forward.1} parent=0 // pred_check
    _
  $region7: #{tg_recovery_forward.1} parent=0 // pred_check_branch
    %10 = sbr.rel (0) target = $region9
  $region8: #{tg_recovery_forward.1} parent=0 // pred_region
    _
  $region9: #{tg_recovery_forward.1} parent=0 // pred_fallthru
    _
  %v11 = vld [vmem:[%s0] sm:$0xff]
  %v12 = vld [vmem:[%s0 + $0x8] sm:$0xff]
  %v13 = vld [vmem:[%s0 + $0x10] sm:$0xff]
  %v14 = vld [vmem:[%s0 + $0x18] sm:$0xff]
  %v15 = vld [vmem:[%s1] sm:$0xff]
  %v16 = vld [vmem:[%s1 + $0x8] sm:$0xff]
  %v17 = vld [vmem:[%s1 + $0x10] sm:$0xff]
  %v18 = vld [vmem:[%s1 + $0x18] sm:$0xff]
  %v19 = vld [vmem:[%s1 + $0x20] sm:$0x1]
  %v20 = vlaneseq
  %v21 = vshrl.u32 %v20, 7
  %v22 = vsub.s32 0, %v21
  %v23 = vrot.slane %v19, %v22
  %vm24 = vcmask 195584
  %v26 = vsel %vm24, %v11, 0
  %v29 = vsel %vm24, %v12, 0
  %v32 = vsel %vm24, %v13, 0
  %v35 = vsel %vm24, %v14, 0
  %37 = vmatprep.subr.mxu0 0.0
  %38 = vmatpush1.msra.mxu0 0.0
  %39 = vmatprep.subr.mxu0 0.0
  %40 = vmatpush1.msra.mxu0 0.0
  %41 = vmatprep.subr.mxu0 0.0
  %42 = vmatpush1.msra.mxu0 0.0
  %43 = vmatprep.subr.mxu0 0.0
  %44 = vmatpush1.msra.mxu0 0.0
  %45 = vmatprep.subr.mxu0 0.0
  %46 = vmatpush1.msra.mxu0 0.0
  %47 = vmatprep.subr.mxu0 0.0
  %48 = vmatpush1.msra.mxu0 0.0
  %49 = vmatprep.subr.mxu0 0.0
  %50 = vmatpush1.msra.mxu0 0.0
  %51 = vmatprep.subr.mxu0 0.0
  %52 = vmatpush1.msra.mxu0 0.0
  %53 = vmatprep.subr.mxu0 0.0
  %54 = vmatpush1.msra.mxu0 0.0
  %55 = vmatprep.subr.mxu0 0.0
  %56 = vmatpush1.msra.mxu0 0.0
  %57 = vmatprep.subr.mxu0 0.0
  %58 = vmatpush1.msra.mxu0 0.0
  %59 = vmatprep.subr.mxu0 0.0
  %60 = vmatpush1.msra.mxu0 0.0
  %61 = vmatprep.subr.mxu0 0.0
  %62 = vmatpush1.msra.mxu0 0.0
  %63 = vmatprep.subr.mxu0 0.0
  %64 = vmatpush1.msra.mxu0 %v17
  %65 = vmatprep.subr.mxu0 0.0
  %66 = vmatpush1.msra.mxu0 %v16
  %67 = vmatprep.subr.mxu0 0.0
  %68 = vmatpush1.msra.mxu0 %v15
  %69 = vmatprep.subr.mxu0 0.0
  %70 = vmatpush2.msra.mxu0 0.0
  %71 = vmatprep.subr.mxu0 0.0
  %72 = vmatpush2.msra.mxu0 0.0
  %73 = vmatprep.subr.mxu0 0.0
  %74 = vmatpush2.msra.mxu0 0.0
  %75 = vmatprep.subr.mxu0 0.0
  %76 = vmatpush2.msra.mxu0 0.0
  %77 = vmatprep.subr.mxu0 0.0
  %78 = vmatpush2.msra.mxu0 0.0
  %79 = vmatprep.subr.mxu0 0.0
  %80 = vmatpush2.msra.mxu0 0.0
  %81 = vmatprep.subr.mxu0 0.0
  %82 = vmatpush2.msra.mxu0 0.0
  %83 = vmatprep.subr.mxu0 0.0
  %84 = vmatpush2.msra.mxu0 0.0
  %85 = vmatprep.subr.mxu0 0.0
  %86 = vmatpush2.msra.mxu0 0.0
  %87 = vmatprep.subr.mxu0 0.0
  %88 = vmatpush2.msra.mxu0 0.0
  %89 = vmatprep.subr.mxu0 0.0
  %90 = vmatpush2.msra.mxu0 0.0
  %91 = vmatprep.subr.mxu0 0.0
  %92 = vmatpush2.msra.mxu0 0.0
  %93 = vmatprep.subr.mxu0 0.0
  %94 = vmatpush2.msra.mxu0 0.0
  %95 = vmatprep.subr.mxu0 0.0
  %96 = vmatpush2.msra.mxu0 0.0
  %97 = vmatprep.subr.mxu0 0.0
  %98 = vmatpush2.msra.mxu0 0.0
  %99 = vmatprep.subr.mxu0 0.0
  %100 = vmatpush2.msra.mxu0 0.0
  %101 = vmatprep.mubr.f32.mxu0 0.0
  %102 = vmatmul.mubr.f32.gmra.mxu0 %v26
  %v103 = vpop.f32.mrf.mxu0
  %v104 = vadd.f32 %v23, %v103
  %v105 = vpop.f32.mrf.mxu0
  %106 = vmatprep.mubr.f32.mxu0 0.0
  %107 = vmatmul.mubr.f32.gmra.mxu0 %v29
  %v108 = vpop.f32.mrf.mxu0
  %v109 = vadd.f32 %v23, %v108
  %v110 = vpop.f32.mrf.mxu0
  %111 = vmatprep.mubr.f32.mxu0 0.0
  %112 = vmatmul.mubr.f32.gmra.mxu0 %v32
  %v113 = vpop.f32.mrf.mxu0
  %v114 = vadd.f32 %v23, %v113
  %v115 = vpop.f32.mrf.mxu0
  %116 = vmatprep.mubr.f32.mxu0 0.0
  %117 = vmatmul.mubr.f32.gmra.mxu0 %v35
  %v118 = vpop.f32.mrf.mxu0
  %v119 = vadd.f32 %v23, %v118
  %v120 = vpop.f32.mrf.mxu0
  %121 = vdwg.mxu0
  %v126 = vcombine.high %v104, %v104
  %v127 = vcombine.high %v109, %v109
  %v128 = vcombine.high %v114, %v114
  %v129 = vcombine.high %v119, %v119
  %v134 = vlaneseq
  %v135 = vshrl.u32 %v134, 7
  %v136 = vsub.s32 0, %v135
  %v137 = vrot.slane %v18, %v136
  %v138 = vlaneseq
  %v139 = vshrl.u32 %v138, 7
  %v140 = vsub.s32 1, %v139
  %v141 = vrot.slane %v18, %v140
  %v142 = vlaneseq
  %v143 = vshrl.u32 %v142, 7
  %v144 = vsub.s32 2, %v143
  %v145 = vrot.slane %v18, %v144
  %v146 = vlaneseq
  %v147 = vshrl.u32 %v146, 7
  %v148 = vsub.s32 3, %v147
  %v149 = vrot.slane %v18, %v148
  %v150 = vlaneseq
  %v151 = vshrl.u32 %v150, 7
  %v152 = vsub.s32 4, %v151
  %v153 = vrot.slane %v18, %v152
  %v154 = vlaneseq
  %v155 = vshrl.u32 %v154, 7
  %v156 = vsub.s32 5, %v155
  %v157 = vrot.slane %v18, %v156
  %v158 = vlaneseq
  %v159 = vshrl.u32 %v158, 7
  %v160 = vsub.s32 6, %v159
  %v161 = vrot.slane %v18, %v160
  %v162 = vlaneseq
  %v163 = vshrl.u32 %v162, 7
  %v164 = vsub.s32 7, %v163
  %v165 = vrot.slane %v18, %v164
  %v166 = vtanh.pop %v104
  %v167 = vmul.f32 %v166, 0.5
  %v168 = vadd.f32 %v167, 0.5
  %170 = vrot.lane.b32.xlu0 %v166, 112
  %v171 = vpop.permute.xlu0 %170
  %v173 = vmul.f32 %v168, %v171
  %v174 = vtanh.pop %v173
  %176 = vrot.lane.b32.xlu0 %v174, 24
  %v177 = vpop.permute.xlu0 %176
  %v179 = vmul.f32 %v168, %v177
  %181 = vset.pattern.permute.xlu0 24
  %182 = vperm.xlu0 %181, %v179
  %v183 = vpop.permute.xlu0 %182
  %v186 = vunpack.c.l.s4 839922192
  %v187 = vunpack.c.0.s8 %v186
  %v188 = vlaneseq
  %v189 = vshrl.u32 %v188, 7
  %v190 = vsub.s32 %v187, %v189
  %v191 = vrot.slane %v183, %v190
  %v192 = vmul.f32 %v191, %v137
  %193 = vset.pattern.permute.xlu0 25
  %194 = vperm.xlu0 %193, %v179
  %v195 = vpop.permute.xlu0 %194
  %v198 = vunpack.c.l.s4 839922192
  %v199 = vunpack.c.0.s8 %v198
  %v200 = vlaneseq
  %v201 = vshrl.u32 %v200, 7
  %v202 = vsub.s32 %v199, %v201
  %v203 = vrot.slane %v195, %v202
  %v204 = vmul.f32 %v203, %v141
  %205 = vset.pattern.permute.xlu0 26
  %206 = vperm.xlu0 %205, %v179
  %v207 = vpop.permute.xlu0 %206
  %v210 = vunpack.c.l.s4 839922192
  %v211 = vunpack.c.0.s8 %v210
  %v212 = vlaneseq
  %v213 = vshrl.u32 %v212, 7
  %v214 = vsub.s32 %v211, %v213
  %v215 = vrot.slane %v207, %v214
  %v216 = vmul.f32 %v215, %v145
  %217 = vset.pattern.permute.xlu0 27
  %218 = vperm.xlu0 %217, %v179
  %v219 = vpop.permute.xlu0 %218
  %v222 = vunpack.c.l.s4 839922192
  %v223 = vunpack.c.0.s8 %v222
  %v224 = vlaneseq
  %v225 = vshrl.u32 %v224, 7
  %v226 = vsub.s32 %v223, %v225
  %v227 = vrot.slane %v219, %v226
  %v228 = vmul.f32 %v227, %v149
  %229 = vset.pattern.permute.xlu0 28
  %230 = vperm.xlu0 %229, %v179
  %v231 = vpop.permute.xlu0 %230
  %v234 = vunpack.c.l.s4 839922192
  %v235 = vunpack.c.0.s8 %v234
  %v236 = vlaneseq
  %v237 = vshrl.u32 %v236, 7
  %v238 = vsub.s32 %v235, %v237
  %v239 = vrot.slane %v231, %v238
  %v240 = vmul.f32 %v239, %v153
  %241 = vset.pattern.permute.xlu0 29
  %242 = vperm.xlu0 %241, %v179
  %v243 = vpop.permute.xlu0 %242
  %v246 = vunpack.c.l.s4 839922192
  %v247 = vunpack.c.0.s8 %v246
  %v248 = vlaneseq
  %v249 = vshrl.u32 %v248, 7
  %v250 = vsub.s32 %v247, %v249
  %v251 = vrot.slane %v243, %v250
  %v252 = vmul.f32 %v251, %v157
  %253 = vset.pattern.permute.xlu0 30
  %254 = vperm.xlu0 %253, %v179
  %v255 = vpop.permute.xlu0 %254
  %v258 = vunpack.c.l.s4 839922192
  %v259 = vunpack.c.0.s8 %v258
  %v260 = vlaneseq
  %v261 = vshrl.u32 %v260, 7
  %v262 = vsub.s32 %v259, %v261
  %v263 = vrot.slane %v255, %v262
  %v264 = vmul.f32 %v263, %v161
  %265 = vset.pattern.permute.xlu0 31
  %266 = vperm.xlu0 %265, %v179
  %v267 = vpop.permute.xlu0 %266
  %v270 = vunpack.c.l.s4 839922192
  %v271 = vunpack.c.0.s8 %v270
  %v272 = vlaneseq
  %v273 = vshrl.u32 %v272, 7
  %v274 = vsub.s32 %v271, %v273
  %v275 = vrot.slane %v267, %v274
  %v276 = vmul.f32 %v275, %v165
  %v277 = vadd.f32 %v192, %v204
  %v278 = vadd.f32 %v216, %v228
  %v279 = vadd.f32 %v240, %v252
  %v280 = vadd.f32 %v264, %v276
  %v281 = vadd.f32 %v277, %v278
  %v282 = vadd.f32 %v279, %v280
  %v283 = vadd.f32 %v281, %v282
  %v284 = vadd.f32 %v126, %v283
  %v285 = vtanh.pop %v284
  %v286 = vmul.f32 %v285, 0.5
  %v287 = vadd.f32 %v286, 0.5
  %289 = vrot.lane.b32.xlu0 %v173, 8
  %v290 = vpop.permute.xlu0 %289
  %v292 = vmul.f32 %v287, %v290
  %294 = vrot.lane.b32.xlu0 %v285, 112
  %v295 = vpop.permute.xlu0 %294
  %v297 = vmul.f32 %v287, %v295
  %299 = vrot.lane.b32.xlu0 %v297, 8
  %v300 = vpop.permute.xlu0 %299
  %v302 = vadd.f32 %v292, %v300
  %v303 = vtanh.pop %v302
  %305 = vrot.lane.b32.xlu0 %v303, 16
  %v306 = vpop.permute.xlu0 %305
  %v308 = vmul.f32 %v287, %v306
  %310 = vset.pattern.permute.xlu0 24
  %311 = vperm.xlu0 %310, %v308
  %v312 = vpop.permute.xlu0 %311
  %v315 = vunpack.c.l.s4 839922192
  %v316 = vunpack.c.0.s8 %v315
  %v317 = vlaneseq
  %v318 = vshrl.u32 %v317, 7
  %v319 = vsub.s32 %v316, %v318
  %v320 = vrot.slane %v312, %v319
  %v321 = vmul.f32 %v320, %v137
  %322 = vset.pattern.permute.xlu0 25
  %323 = vperm.xlu0 %322, %v308
  %v324 = vpop.permute.xlu0 %323
  %v327 = vunpack.c.l.s4 839922192
  %v328 = vunpack.c.0.s8 %v327
  %v329 = vlaneseq
  %v330 = vshrl.u32 %v329, 7
  %v331 = vsub.s32 %v328, %v330
  %v332 = vrot.slane %v324, %v331
  %v333 = vmul.f32 %v332, %v141
  %334 = vset.pattern.permute.xlu0 26
  %335 = vperm.xlu0 %334, %v308
  %v336 = vpop.permute.xlu0 %335
  %v339 = vunpack.c.l.s4 839922192
  %v340 = vunpack.c.0.s8 %v339
  %v341 = vlaneseq
  %v342 = vshrl.u32 %v341, 7
  %v343 = vsub.s32 %v340, %v342
  %v344 = vrot.slane %v336, %v343
  %v345 = vmul.f32 %v344, %v145
  %346 = vset.pattern.permute.xlu0 27
  %347 = vperm.xlu0 %346, %v308
  %v348 = vpop.permute.xlu0 %347
  %v351 = vunpack.c.l.s4 839922192
  %v352 = vunpack.c.0.s8 %v351
  %v353 = vlaneseq
  %v354 = vshrl.u32 %v353, 7
  %v355 = vsub.s32 %v352, %v354
  %v356 = vrot.slane %v348, %v355
  %v357 = vmul.f32 %v356, %v149
  %358 = vset.pattern.permute.xlu0 28
  %359 = vperm.xlu0 %358, %v308
  %v360 = vpop.permute.xlu0 %359
  %v363 = vunpack.c.l.s4 839922192
  %v364 = vunpack.c.0.s8 %v363
  %v365 = vlaneseq
  %v366 = vshrl.u32 %v365, 7
  %v367 = vsub.s32 %v364, %v366
  %v368 = vrot.slane %v360, %v367
  %v369 = vmul.f32 %v368, %v153
  %370 = vset.pattern.permute.xlu0 29
  %371 = vperm.xlu0 %370, %v308
  %v372 = vpop.permute.xlu0 %371
  %v375 = vunpack.c.l.s4 839922192
  %v376 = vunpack.c.0.s8 %v375
  %v377 = vlaneseq
  %v378 = vshrl.u32 %v377, 7
  %v379 = vsub.s32 %v376, %v378
  %v380 = vrot.slane %v372, %v379
  %v381 = vmul.f32 %v380, %v157
  %382 = vset.pattern.permute.xlu0 30
  %383 = vperm.xlu0 %382, %v308
  %v384 = vpop.permute.xlu0 %383
  %v387 = vunpack.c.l.s4 839922192
  %v388 = vunpack.c.0.s8 %v387
  %v389 = vlaneseq
  %v390 = vshrl.u32 %v389, 7
  %v391 = vsub.s32 %v388, %v390
  %v392 = vrot.slane %v384, %v391
  %v393 = vmul.f32 %v392, %v161
  %394 = vset.pattern.permute.xlu0 31
  %395 = vperm.xlu0 %394, %v308
  %v396 = vpop.permute.xlu0 %395
  %v399 = vunpack.c.l.s4 839922192
  %v400 = vunpack.c.0.s8 %v399
  %v401 = vlaneseq
  %v402 = vshrl.u32 %v401, 7
  %v403 = vsub.s32 %v400, %v402
  %v404 = vrot.slane %v396, %v403
  %v405 = vmul.f32 %v404, %v165
  %v406 = vadd.f32 %v321, %v333
  %v407 = vadd.f32 %v345, %v357
  %v408 = vadd.f32 %v369, %v381
  %v409 = vadd.f32 %v393, %v405
  %v410 = vadd.f32 %v406, %v407
  %v411 = vadd.f32 %v408, %v409
  %v412 = vadd.f32 %v410, %v411
  %v413 = vadd.f32 %v109, %v412
  %v414 = vtanh.pop %v413
  %v415 = vmul.f32 %v414, 0.5
  %v416 = vadd.f32 %v415, 0.5
  %v417 = vmul.f32 %v416, %v302
  %419 = vrot.lane.b32.xlu0 %v414, 112
  %v420 = vpop.permute.xlu0 %419
  %v422 = vmul.f32 %v416, %v420
  %424 = vrot.lane.b32.xlu0 %v422, 8
  %v425 = vpop.permute.xlu0 %424
  %v427 = vadd.f32 %v417, %v425
  %v428 = vtanh.pop %v427
  %430 = vrot.lane.b32.xlu0 %v428, 16
  %v431 = vpop.permute.xlu0 %430
  %v433 = vmul.f32 %v416, %v431
  %435 = vset.pattern.permute.xlu0 24
  %436 = vperm.xlu0 %435, %v433
  %v437 = vpop.permute.xlu0 %436
  %v440 = vunpack.c.l.s4 839922192
  %v441 = vunpack.c.0.s8 %v440
  %v442 = vlaneseq
  %v443 = vshrl.u32 %v442, 7
  %v444 = vsub.s32 %v441, %v443
  %v445 = vrot.slane %v437, %v444
  %v446 = vmul.f32 %v445, %v137
  %447 = vset.pattern.permute.xlu0 25
  %448 = vperm.xlu0 %447, %v433
  %v449 = vpop.permute.xlu0 %448
  %v452 = vunpack.c.l.s4 839922192
  %v453 = vunpack.c.0.s8 %v452
  %v454 = vlaneseq
  %v455 = vshrl.u32 %v454, 7
  %v456 = vsub.s32 %v453, %v455
  %v457 = vrot.slane %v449, %v456
  %v458 = vmul.f32 %v457, %v141
  %459 = vset.pattern.permute.xlu0 26
  %460 = vperm.xlu0 %459, %v433
  %v461 = vpop.permute.xlu0 %460
  %v464 = vunpack.c.l.s4 839922192
  %v465 = vunpack.c.0.s8 %v464
  %v466 = vlaneseq
  %v467 = vshrl.u32 %v466, 7
  %v468 = vsub.s32 %v465, %v467
  %v469 = vrot.slane %v461, %v468
  %v470 = vmul.f32 %v469, %v145
  %471 = vset.pattern.permute.xlu0 27
  %472 = vperm.xlu0 %471, %v433
  %v473 = vpop.permute.xlu0 %472
  %v476 = vunpack.c.l.s4 839922192
  %v477 = vunpack.c.0.s8 %v476
  %v478 = vlaneseq
  %v479 = vshrl.u32 %v478, 7
  %v480 = vsub.s32 %v477, %v479
  %v481 = vrot.slane %v473, %v480
  %v482 = vmul.f32 %v481, %v149
  %483 = vset.pattern.permute.xlu0 28
  %484 = vperm.xlu0 %483, %v433
  %v485 = vpop.permute.xlu0 %484
  %v488 = vunpack.c.l.s4 839922192
  %v489 = vunpack.c.0.s8 %v488
  %v490 = vlaneseq
  %v491 = vshrl.u32 %v490, 7
  %v492 = vsub.s32 %v489, %v491
  %v493 = vrot.slane %v485, %v492
  %v494 = vmul.f32 %v493, %v153
  %495 = vset.pattern.permute.xlu0 29
  %496 = vperm.xlu0 %495, %v433
  %v497 = vpop.permute.xlu0 %496
  %v500 = vunpack.c.l.s4 839922192
  %v501 = vunpack.c.0.s8 %v500
  %v502 = vlaneseq
  %v503 = vshrl.u32 %v502, 7
  %v504 = vsub.s32 %v501, %v503
  %v505 = vrot.slane %v497, %v504
  %v506 = vmul.f32 %v505, %v157
  %507 = vset.pattern.permute.xlu0 30
  %508 = vperm.xlu0 %507, %v433
  %v509 = vpop.permute.xlu0 %508
  %v512 = vunpack.c.l.s4 839922192
  %v513 = vunpack.c.0.s8 %v512
  %v514 = vlaneseq
  %v515 = vshrl.u32 %v514, 7
  %v516 = vsub.s32 %v513, %v515
  %v517 = vrot.slane %v509, %v516
  %v518 = vmul.f32 %v517, %v161
  %519 = vset.pattern.permute.xlu0 31
  %520 = vperm.xlu0 %519, %v433
  %v521 = vpop.permute.xlu0 %520
  %v524 = vunpack.c.l.s4 839922192
  %v525 = vunpack.c.0.s8 %v524
  %v526 = vlaneseq
  %v527 = vshrl.u32 %v526, 7
  %v528 = vsub.s32 %v525, %v527
  %v529 = vrot.slane %v521, %v528
  %v530 = vmul.f32 %v529, %v165
  %v531 = vadd.f32 %v446, %v458
  %v532 = vadd.f32 %v470, %v482
  %v533 = vadd.f32 %v494, %v506
  %v534 = vadd.f32 %v518, %v530
  %v535 = vadd.f32 %v531, %v532
  %v536 = vadd.f32 %v533, %v534
  %v537 = vadd.f32 %v535, %v536
  %v538 = vadd.f32 %v127, %v537
  %v539 = vtanh.pop %v538
  %v540 = vmul.f32 %v539, 0.5
  %v541 = vadd.f32 %v540, 0.5
  %v542 = vmul.f32 %v541, %v427
  %544 = vrot.lane.b32.xlu0 %v539, 112
  %v545 = vpop.permute.xlu0 %544
  %v547 = vmul.f32 %v541, %v545
  %549 = vrot.lane.b32.xlu0 %v547, 8
  %v550 = vpop.permute.xlu0 %549
  %v552 = vadd.f32 %v542, %v550
  %v553 = vtanh.pop %v552
  %555 = vrot.lane.b32.xlu0 %v553, 16
  %v556 = vpop.permute.xlu0 %555
  %v558 = vmul.f32 %v541, %v556
  %560 = vset.pattern.permute.xlu0 24
  %561 = vperm.xlu0 %560, %v558
  %v562 = vpop.permute.xlu0 %561
  %v565 = vunpack.c.l.s4 839922192
  %v566 = vunpack.c.0.s8 %v565
  %v567 = vlaneseq
  %v568 = vshrl.u32 %v567, 7
  %v569 = vsub.s32 %v566, %v568
  %v570 = vrot.slane %v562, %v569
  %v571 = vmul.f32 %v570, %v137
  %572 = vset.pattern.permute.xlu0 25
  %573 = vperm.xlu0 %572, %v558
  %v574 = vpop.permute.xlu0 %573
  %v577 = vunpack.c.l.s4 839922192
  %v578 = vunpack.c.0.s8 %v577
  %v579 = vlaneseq
  %v580 = vshrl.u32 %v579, 7
  %v581 = vsub.s32 %v578, %v580
  %v582 = vrot.slane %v574, %v581
  %v583 = vmul.f32 %v582, %v141
  %584 = vset.pattern.permute.xlu0 26
  %585 = vperm.xlu0 %584, %v558
  %v586 = vpop.permute.xlu0 %585
  %v589 = vunpack.c.l.s4 839922192
  %v590 = vunpack.c.0.s8 %v589
  %v591 = vlaneseq
  %v592 = vshrl.u32 %v591, 7
  %v593 = vsub.s32 %v590, %v592
  %v594 = vrot.slane %v586, %v593
  %v595 = vmul.f32 %v594, %v145
  %596 = vset.pattern.permute.xlu0 27
  %597 = vperm.xlu0 %596, %v558
  %v598 = vpop.permute.xlu0 %597
  %v601 = vunpack.c.l.s4 839922192
  %v602 = vunpack.c.0.s8 %v601
  %v603 = vlaneseq
  %v604 = vshrl.u32 %v603, 7
  %v605 = vsub.s32 %v602, %v604
  %v606 = vrot.slane %v598, %v605
  %v607 = vmul.f32 %v606, %v149
  %608 = vset.pattern.permute.xlu0 28
  %609 = vperm.xlu0 %608, %v558
  %v610 = vpop.permute.xlu0 %609
  %v613 = vunpack.c.l.s4 839922192
  %v614 = vunpack.c.0.s8 %v613
  %v615 = vlaneseq
  %v616 = vshrl.u32 %v615, 7
  %v617 = vsub.s32 %v614, %v616
  %v618 = vrot.slane %v610, %v617
  %v619 = vmul.f32 %v618, %v153
  %620 = vset.pattern.permute.xlu0 29
  %621 = vperm.xlu0 %620, %v558
  %v622 = vpop.permute.xlu0 %621
  %v625 = vunpack.c.l.s4 839922192
  %v626 = vunpack.c.0.s8 %v625
  %v627 = vlaneseq
  %v628 = vshrl.u32 %v627, 7
  %v629 = vsub.s32 %v626, %v628
  %v630 = vrot.slane %v622, %v629
  %v631 = vmul.f32 %v630, %v157
  %632 = vset.pattern.permute.xlu0 30
  %633 = vperm.xlu0 %632, %v558
  %v634 = vpop.permute.xlu0 %633
  %v637 = vunpack.c.l.s4 839922192
  %v638 = vunpack.c.0.s8 %v637
  %v639 = vlaneseq
  %v640 = vshrl.u32 %v639, 7
  %v641 = vsub.s32 %v638, %v640
  %v642 = vrot.slane %v634, %v641
  %v643 = vmul.f32 %v642, %v161
  %644 = vset.pattern.permute.xlu0 31
  %645 = vperm.xlu0 %644, %v558
  %v646 = vpop.permute.xlu0 %645
  %v649 = vunpack.c.l.s4 839922192
  %v650 = vunpack.c.0.s8 %v649
  %v651 = vlaneseq
  %v652 = vshrl.u32 %v651, 7
  %v653 = vsub.s32 %v650, %v652
  %v654 = vrot.slane %v646, %v653
  %v655 = vmul.f32 %v654, %v165
  %v656 = vadd.f32 %v571, %v583
  %v657 = vadd.f32 %v595, %v607
  %v658 = vadd.f32 %v619, %v631
  %v659 = vadd.f32 %v643, %v655
  %v660 = vadd.f32 %v656, %v657
  %v661 = vadd.f32 %v658, %v659
  %v662 = vadd.f32 %v660, %v661
  %v663 = vadd.f32 %v114, %v662
  %v664 = vtanh.pop %v663
  %v665 = vmul.f32 %v664, 0.5
  %v666 = vadd.f32 %v665, 0.5
  %v667 = vmul.f32 %v666, %v552
  %669 = vrot.lane.b32.xlu0 %v664, 112
  %v670 = vpop.permute.xlu0 %669
  %v672 = vmul.f32 %v666, %v670
  %674 = vrot.lane.b32.xlu0 %v672, 8
  %v675 = vpop.permute.xlu0 %674
  %v677 = vadd.f32 %v667, %v675
  %v678 = vtanh.pop %v677
  %680 = vrot.lane.b32.xlu0 %v678, 16
  %v681 = vpop.permute.xlu0 %680
  %v683 = vmul.f32 %v666, %v681
  %685 = vset.pattern.permute.xlu0 24
  %686 = vperm.xlu0 %685, %v683
  %v687 = vpop.permute.xlu0 %686
  %v690 = vunpack.c.l.s4 839922192
  %v691 = vunpack.c.0.s8 %v690
  %v692 = vlaneseq
  %v693 = vshrl.u32 %v692, 7
  %v694 = vsub.s32 %v691, %v693
  %v695 = vrot.slane %v687, %v694
  %v696 = vmul.f32 %v695, %v137
  %697 = vset.pattern.permute.xlu0 25
  %698 = vperm.xlu0 %697, %v683
  %v699 = vpop.permute.xlu0 %698
  %v702 = vunpack.c.l.s4 839922192
  %v703 = vunpack.c.0.s8 %v702
  %v704 = vlaneseq
  %v705 = vshrl.u32 %v704, 7
  %v706 = vsub.s32 %v703, %v705
  %v707 = vrot.slane %v699, %v706
  %v708 = vmul.f32 %v707, %v141
  %709 = vset.pattern.permute.xlu0 26
  %710 = vperm.xlu0 %709, %v683
  %v711 = vpop.permute.xlu0 %710
  %v714 = vunpack.c.l.s4 839922192
  %v715 = vunpack.c.0.s8 %v714
  %v716 = vlaneseq
  %v717 = vshrl.u32 %v716, 7
  %v718 = vsub.s32 %v715, %v717
  %v719 = vrot.slane %v711, %v718
  %v720 = vmul.f32 %v719, %v145
  %721 = vset.pattern.permute.xlu0 27
  %722 = vperm.xlu0 %721, %v683
  %v723 = vpop.permute.xlu0 %722
  %v726 = vunpack.c.l.s4 839922192
  %v727 = vunpack.c.0.s8 %v726
  %v728 = vlaneseq
  %v729 = vshrl.u32 %v728, 7
  %v730 = vsub.s32 %v727, %v729
  %v731 = vrot.slane %v723, %v730
  %v732 = vmul.f32 %v731, %v149
  %733 = vset.pattern.permute.xlu0 28
  %734 = vperm.xlu0 %733, %v683
  %v735 = vpop.permute.xlu0 %734
  %v738 = vunpack.c.l.s4 839922192
  %v739 = vunpack.c.0.s8 %v738
  %v740 = vlaneseq
  %v741 = vshrl.u32 %v740, 7
  %v742 = vsub.s32 %v739, %v741
  %v743 = vrot.slane %v735, %v742
  %v744 = vmul.f32 %v743, %v153
  %745 = vset.pattern.permute.xlu0 29
  %746 = vperm.xlu0 %745, %v683
  %v747 = vpop.permute.xlu0 %746
  %v750 = vunpack.c.l.s4 839922192
  %v751 = vunpack.c.0.s8 %v750
  %v752 = vlaneseq
  %v753 = vshrl.u32 %v752, 7
  %v754 = vsub.s32 %v751, %v753
  %v755 = vrot.slane %v747, %v754
  %v756 = vmul.f32 %v755, %v157
  %757 = vset.pattern.permute.xlu0 30
  %758 = vperm.xlu0 %757, %v683
  %v759 = vpop.permute.xlu0 %758
  %v762 = vunpack.c.l.s4 839922192
  %v763 = vunpack.c.0.s8 %v762
  %v764 = vlaneseq
  %v765 = vshrl.u32 %v764, 7
  %v766 = vsub.s32 %v763, %v765
  %v767 = vrot.slane %v759, %v766
  %v768 = vmul.f32 %v767, %v161
  %769 = vset.pattern.permute.xlu0 31
  %770 = vperm.xlu0 %769, %v683
  %v771 = vpop.permute.xlu0 %770
  %v774 = vunpack.c.l.s4 839922192
  %v775 = vunpack.c.0.s8 %v774
  %v776 = vlaneseq
  %v777 = vshrl.u32 %v776, 7
  %v778 = vsub.s32 %v775, %v777
  %v779 = vrot.slane %v771, %v778
  %v780 = vmul.f32 %v779, %v165
  %v781 = vadd.f32 %v696, %v708
  %v782 = vadd.f32 %v720, %v732
  %v783 = vadd.f32 %v744, %v756
  %v784 = vadd.f32 %v768, %v780
  %v785 = vadd.f32 %v781, %v782
  %v786 = vadd.f32 %v783, %v784
  %v787 = vadd.f32 %v785, %v786
  %v788 = vadd.f32 %v128, %v787
  %v789 = vtanh.pop %v788
  %v790 = vmul.f32 %v789, 0.5
  %v791 = vadd.f32 %v790, 0.5
  %v792 = vmul.f32 %v791, %v677
  %794 = vrot.lane.b32.xlu0 %v789, 112
  %v795 = vpop.permute.xlu0 %794
  %v797 = vmul.f32 %v791, %v795
  %799 = vrot.lane.b32.xlu0 %v797, 8
  %v800 = vpop.permute.xlu0 %799
  %v802 = vadd.f32 %v792, %v800
  %v803 = vtanh.pop %v802
  %805 = vrot.lane.b32.xlu0 %v803, 16
  %v806 = vpop.permute.xlu0 %805
  %v808 = vmul.f32 %v791, %v806
  %810 = vset.pattern.permute.xlu0 24
  %811 = vperm.xlu0 %810, %v808
  %v812 = vpop.permute.xlu0 %811
  %v815 = vunpack.c.l.s4 839922192
  %v816 = vunpack.c.0.s8 %v815
  %v817 = vlaneseq
  %v818 = vshrl.u32 %v817, 7
  %v819 = vsub.s32 %v816, %v818
  %v820 = vrot.slane %v812, %v819
  %v821 = vmul.f32 %v820, %v137
  %822 = vset.pattern.permute.xlu0 25
  %823 = vperm.xlu0 %822, %v808
  %v824 = vpop.permute.xlu0 %823
  %v827 = vunpack.c.l.s4 839922192
  %v828 = vunpack.c.0.s8 %v827
  %v829 = vlaneseq
  %v830 = vshrl.u32 %v829, 7
  %v831 = vsub.s32 %v828, %v830
  %v832 = vrot.slane %v824, %v831
  %v833 = vmul.f32 %v832, %v141
  %834 = vset.pattern.permute.xlu0 26
  %835 = vperm.xlu0 %834, %v808
  %v836 = vpop.permute.xlu0 %835
  %v839 = vunpack.c.l.s4 839922192
  %v840 = vunpack.c.0.s8 %v839
  %v841 = vlaneseq
  %v842 = vshrl.u32 %v841, 7
  %v843 = vsub.s32 %v840, %v842
  %v844 = vrot.slane %v836, %v843
  %v845 = vmul.f32 %v844, %v145
  %846 = vset.pattern.permute.xlu0 27
  %847 = vperm.xlu0 %846, %v808
  %v848 = vpop.permute.xlu0 %847
  %v851 = vunpack.c.l.s4 839922192
  %v852 = vunpack.c.0.s8 %v851
  %v853 = vlaneseq
  %v854 = vshrl.u32 %v853, 7
  %v855 = vsub.s32 %v852, %v854
  %v856 = vrot.slane %v848, %v855
  %v857 = vmul.f32 %v856, %v149
  %858 = vset.pattern.permute.xlu0 28
  %859 = vperm.xlu0 %858, %v808
  %v860 = vpop.permute.xlu0 %859
  %v863 = vunpack.c.l.s4 839922192
  %v864 = vunpack.c.0.s8 %v863
  %v865 = vlaneseq
  %v866 = vshrl.u32 %v865, 7
  %v867 = vsub.s32 %v864, %v866
  %v868 = vrot.slane %v860, %v867
  %v869 = vmul.f32 %v868, %v153
  %870 = vset.pattern.permute.xlu0 29
  %871 = vperm.xlu0 %870, %v808
  %v872 = vpop.permute.xlu0 %871
  %v875 = vunpack.c.l.s4 839922192
  %v876 = vunpack.c.0.s8 %v875
  %v877 = vlaneseq
  %v878 = vshrl.u32 %v877, 7
  %v879 = vsub.s32 %v876, %v878
  %v880 = vrot.slane %v872, %v879
  %v881 = vmul.f32 %v880, %v157
  %882 = vset.pattern.permute.xlu0 30
  %883 = vperm.xlu0 %882, %v808
  %v884 = vpop.permute.xlu0 %883
  %v887 = vunpack.c.l.s4 839922192
  %v888 = vunpack.c.0.s8 %v887
  %v889 = vlaneseq
  %v890 = vshrl.u32 %v889, 7
  %v891 = vsub.s32 %v888, %v890
  %v892 = vrot.slane %v884, %v891
  %v893 = vmul.f32 %v892, %v161
  %894 = vset.pattern.permute.xlu0 31
  %895 = vperm.xlu0 %894, %v808
  %v896 = vpop.permute.xlu0 %895
  %v899 = vunpack.c.l.s4 839922192
  %v900 = vunpack.c.0.s8 %v899
  %v901 = vlaneseq
  %v902 = vshrl.u32 %v901, 7
  %v903 = vsub.s32 %v900, %v902
  %v904 = vrot.slane %v896, %v903
  %v905 = vmul.f32 %v904, %v165
  %v906 = vadd.f32 %v821, %v833
  %v907 = vadd.f32 %v845, %v857
  %v908 = vadd.f32 %v869, %v881
  %v909 = vadd.f32 %v893, %v905
  %v910 = vadd.f32 %v906, %v907
  %v911 = vadd.f32 %v908, %v909
  %v912 = vadd.f32 %v910, %v911
  %v913 = vadd.f32 %v119, %v912
  %v914 = vtanh.pop %v913
  %v915 = vmul.f32 %v914, 0.5
  %v916 = vadd.f32 %v915, 0.5
  %v917 = vmul.f32 %v916, %v802
  %919 = vrot.lane.b32.xlu0 %v914, 112
  %v920 = vpop.permute.xlu0 %919
  %v922 = vmul.f32 %v916, %v920
  %924 = vrot.lane.b32.xlu0 %v922, 8
  %v925 = vpop.permute.xlu0 %924
  %v927 = vadd.f32 %v917, %v925
  %v928 = vtanh.pop %v927
  %930 = vrot.lane.b32.xlu0 %v928, 16
  %v931 = vpop.permute.xlu0 %930
  %v933 = vmul.f32 %v916, %v931
  %935 = vset.pattern.permute.xlu0 24
  %936 = vperm.xlu0 %935, %v933
  %v937 = vpop.permute.xlu0 %936
  %v940 = vunpack.c.l.s4 839922192
  %v941 = vunpack.c.0.s8 %v940
  %v942 = vlaneseq
  %v943 = vshrl.u32 %v942, 7
  %v944 = vsub.s32 %v941, %v943
  %v945 = vrot.slane %v937, %v944
  %v946 = vmul.f32 %v945, %v137
  %947 = vset.pattern.permute.xlu0 25
  %948 = vperm.xlu0 %947, %v933
  %v949 = vpop.permute.xlu0 %948
  %v952 = vunpack.c.l.s4 839922192
  %v953 = vunpack.c.0.s8 %v952
  %v954 = vlaneseq
  %v955 = vshrl.u32 %v954, 7
  %v956 = vsub.s32 %v953, %v955
  %v957 = vrot.slane %v949, %v956
  %v958 = vmul.f32 %v957, %v141
  %959 = vset.pattern.permute.xlu0 26
  %960 = vperm.xlu0 %959, %v933
  %v961 = vpop.permute.xlu0 %960
  %v964 = vunpack.c.l.s4 839922192
  %v965 = vunpack.c.0.s8 %v964
  %v966 = vlaneseq
  %v967 = vshrl.u32 %v966, 7
  %v968 = vsub.s32 %v965, %v967
  %v969 = vrot.slane %v961, %v968
  %v970 = vmul.f32 %v969, %v145
  %971 = vset.pattern.permute.xlu0 27
  %972 = vperm.xlu0 %971, %v933
  %v973 = vpop.permute.xlu0 %972
  %v976 = vunpack.c.l.s4 839922192
  %v977 = vunpack.c.0.s8 %v976
  %v978 = vlaneseq
  %v979 = vshrl.u32 %v978, 7
  %v980 = vsub.s32 %v977, %v979
  %v981 = vrot.slane %v973, %v980
  %v982 = vmul.f32 %v981, %v149
  %983 = vset.pattern.permute.xlu0 28
  %984 = vperm.xlu0 %983, %v933
  %v985 = vpop.permute.xlu0 %984
  %v988 = vunpack.c.l.s4 839922192
  %v989 = vunpack.c.0.s8 %v988
  %v990 = vlaneseq
  %v991 = vshrl.u32 %v990, 7
  %v992 = vsub.s32 %v989, %v991
  %v993 = vrot.slane %v985, %v992
  %v994 = vmul.f32 %v993, %v153
  %995 = vset.pattern.permute.xlu0 29
  %996 = vperm.xlu0 %995, %v933
  %v997 = vpop.permute.xlu0 %996
  %v1000 = vunpack.c.l.s4 839922192
  %v1001 = vunpack.c.0.s8 %v1000
  %v1002 = vlaneseq
  %v1003 = vshrl.u32 %v1002, 7
  %v1004 = vsub.s32 %v1001, %v1003
  %v1005 = vrot.slane %v997, %v1004
  %v1006 = vmul.f32 %v1005, %v157
  %1007 = vset.pattern.permute.xlu0 30
  %1008 = vperm.xlu0 %1007, %v933
  %v1009 = vpop.permute.xlu0 %1008
  %v1012 = vunpack.c.l.s4 839922192
  %v1013 = vunpack.c.0.s8 %v1012
  %v1014 = vlaneseq
  %v1015 = vshrl.u32 %v1014, 7
  %v1016 = vsub.s32 %v1013, %v1015
  %v1017 = vrot.slane %v1009, %v1016
  %v1018 = vmul.f32 %v1017, %v161
  %1019 = vset.pattern.permute.xlu0 31
  %1020 = vperm.xlu0 %1019, %v933
  %v1021 = vpop.permute.xlu0 %1020
  %v1024 = vunpack.c.l.s4 839922192
  %v1025 = vunpack.c.0.s8 %v1024
  %v1026 = vlaneseq
  %v1027 = vshrl.u32 %v1026, 7
  %v1028 = vsub.s32 %v1025, %v1027
  %v1029 = vrot.slane %v1021, %v1028
  %v1030 = vmul.f32 %v1029, %v165
  %v1031 = vadd.f32 %v946, %v958
  %v1032 = vadd.f32 %v970, %v982
  %v1033 = vadd.f32 %v994, %v1006
  %v1034 = vadd.f32 %v1018, %v1030
  %v1035 = vadd.f32 %v1031, %v1032
  %v1036 = vadd.f32 %v1033, %v1034
  %v1037 = vadd.f32 %v1035, %v1036
  %v1038 = vadd.f32 %v129, %v1037
  %v1039 = vtanh.pop %v1038
  %v1040 = vmul.f32 %v1039, 0.5
  %v1041 = vadd.f32 %v1040, 0.5
  %v1042 = vmul.f32 %v1041, %v927
  %1044 = vrot.lane.b32.xlu0 %v1039, 112
  %v1045 = vpop.permute.xlu0 %1044
  %v1047 = vmul.f32 %v1041, %v1045
  %1049 = vrot.lane.b32.xlu0 %v1047, 8
  %v1050 = vpop.permute.xlu0 %1049
  %v1052 = vadd.f32 %v1042, %v1050
  %v1053 = vtanh.pop %v1052
  %1055 = vrot.lane.b32.xlu0 %v1053, 16
  %v1056 = vpop.permute.xlu0 %1055
  %v1058 = vmul.f32 %v1041, %v1056
  %v1059 = vcombine.low %v308, %v308
  %v1061 = vcombine.low %v558, %v558
  %v1063 = vcombine.low %v808, %v808
  %v1066 = vcombine.low %v1058, %v1058
  %vm1068 = vcmask 1043456
  %v1069 = vsel %vm1068, %v179, %v1059
  %v1070 = vsel %vm1068, %v433, %v1061
  %v1071 = vsel %vm1068, %v683, %v1063
  %v1072 = vsel %vm1068, %v933, %v1066
  %v1073 = vld [vmem:[%s1 + $0x28] sm:$0xff]
  %v1074 = vld [vmem:[%s1 + $0x30] sm:$0xff]
  %v1075 = vld [vmem:[%s1 + $0x38] sm:$0x1]
  %v1076 = vlaneseq
  %v1077 = vshrl.u32 %v1076, 7
  %v1078 = vsub.s32 0, %v1077
  %v1079 = vrot.slane %v1075, %v1078
  %1084 = vrot.lane.b32.xlu0 %v1069, 104
  %v1085 = vpop.permute.xlu0 %1084
  %1086 = vrot.lane.b32.xlu0 %v1070, 104
  %v1087 = vpop.permute.xlu0 %1086
  %1088 = vrot.lane.b32.xlu0 %v1071, 104
  %v1089 = vpop.permute.xlu0 %1088
  %1090 = vrot.lane.b32.xlu0 %v1072, 104
  %v1091 = vpop.permute.xlu0 %1090
  %vm1092 = vcmask 64512
  %v1093 = vsel %vm1092, %v1085, 0
  %v1095 = vsel %vm1092, %v1087, 0
  %v1097 = vsel %vm1092, %v1089, 0
  %v1099 = vsel %vm1092, %v1091, 0
  %1101 = vmatprep.subr.mxu0 0.0
  %1102 = vmatpush1.msra.mxu0 0.0
  %1103 = vmatprep.subr.mxu0 0.0
  %1104 = vmatpush1.msra.mxu0 0.0
  %1105 = vmatprep.subr.mxu0 0.0
  %1106 = vmatpush1.msra.mxu0 0.0
  %1107 = vmatprep.subr.mxu0 0.0
  %1108 = vmatpush1.msra.mxu0 0.0
  %1109 = vmatprep.subr.mxu0 0.0
  %1110 = vmatpush1.msra.mxu0 0.0
  %1111 = vmatprep.subr.mxu0 0.0
  %1112 = vmatpush1.msra.mxu0 0.0
  %1113 = vmatprep.subr.mxu0 0.0
  %1114 = vmatpush1.msra.mxu0 0.0
  %1115 = vmatprep.subr.mxu0 0.0
  %1116 = vmatpush1.msra.mxu0 0.0
  %1117 = vmatprep.subr.mxu0 0.0
  %1118 = vmatpush1.msra.mxu0 0.0
  %1119 = vmatprep.subr.mxu0 0.0
  %1120 = vmatpush1.msra.mxu0 0.0
  %1121 = vmatprep.subr.mxu0 0.0
  %1122 = vmatpush1.msra.mxu0 0.0
  %1123 = vmatprep.subr.mxu0 0.0
  %1124 = vmatpush1.msra.mxu0 0.0
  %1125 = vmatprep.subr.mxu0 0.0
  %1126 = vmatpush1.msra.mxu0 0.0
  %1127 = vmatprep.subr.mxu0 0.0
  %1128 = vmatpush1.msra.mxu0 0.0
  %1129 = vmatprep.subr.mxu0 0.0
  %1130 = vmatpush1.msra.mxu0 0.0
  %1131 = vmatprep.subr.mxu0 0.0
  %1132 = vmatpush1.msra.mxu0 %v1073
  %1133 = vmatprep.subr.mxu0 0.0
  %1134 = vmatpush2.msra.mxu0 0.0
  %1135 = vmatprep.subr.mxu0 0.0
  %1136 = vmatpush2.msra.mxu0 0.0
  %1137 = vmatprep.subr.mxu0 0.0
  %1138 = vmatpush2.msra.mxu0 0.0
  %1139 = vmatprep.subr.mxu0 0.0
  %1140 = vmatpush2.msra.mxu0 0.0
  %1141 = vmatprep.subr.mxu0 0.0
  %1142 = vmatpush2.msra.mxu0 0.0
  %1143 = vmatprep.subr.mxu0 0.0
  %1144 = vmatpush2.msra.mxu0 0.0
  %1145 = vmatprep.subr.mxu0 0.0
  %1146 = vmatpush2.msra.mxu0 0.0
  %1147 = vmatprep.subr.mxu0 0.0
  %1148 = vmatpush2.msra.mxu0 0.0
  %1149 = vmatprep.subr.mxu0 0.0
  %1150 = vmatpush2.msra.mxu0 0.0
  %1151 = vmatprep.subr.mxu0 0.0
  %1152 = vmatpush2.msra.mxu0 0.0
  %1153 = vmatprep.subr.mxu0 0.0
  %1154 = vmatpush2.msra.mxu0 0.0
  %1155 = vmatprep.subr.mxu0 0.0
  %1156 = vmatpush2.msra.mxu0 0.0
  %1157 = vmatprep.subr.mxu0 0.0
  %1158 = vmatpush2.msra.mxu0 0.0
  %1159 = vmatprep.subr.mxu0 0.0
  %1160 = vmatpush2.msra.mxu0 0.0
  %1161 = vmatprep.subr.mxu0 0.0
  %1162 = vmatpush2.msra.mxu0 0.0
  %1163 = vmatprep.subr.mxu0 0.0
  %1164 = vmatpush2.msra.mxu0 0.0
  %1165 = vmatprep.mubr.f32.mxu0 0.0
  %1166 = vmatmul.mubr.f32.gmra.mxu0 %v1093
  %v1167 = vpop.f32.mrf.mxu0
  %v1168 = vadd.f32 %v1079, %v1167
  %v1169 = vpop.f32.mrf.mxu0
  %1170 = vmatprep.mubr.f32.mxu0 0.0
  %1171 = vmatmul.mubr.f32.gmra.mxu0 %v1095
  %v1172 = vpop.f32.mrf.mxu0
  %v1173 = vadd.f32 %v1079, %v1172
  %v1174 = vpop.f32.mrf.mxu0
  %1175 = vmatprep.mubr.f32.mxu0 0.0
  %1176 = vmatmul.mubr.f32.gmra.mxu0 %v1097
  %v1177 = vpop.f32.mrf.mxu0
  %v1178 = vadd.f32 %v1079, %v1177
  %v1179 = vpop.f32.mrf.mxu0
  %1180 = vmatprep.mubr.f32.mxu0 0.0
  %1181 = vmatmul.mubr.f32.gmra.mxu0 %v1099
  %v1182 = vpop.f32.mrf.mxu0
  %v1183 = vadd.f32 %v1079, %v1182
  %v1184 = vpop.f32.mrf.mxu0
  %1185 = vdwg.mxu0
  %v1190 = vcombine.high %v1168, %v1168
  %v1191 = vcombine.high %v1173, %v1173
  %v1192 = vcombine.high %v1178, %v1178
  %v1193 = vcombine.high %v1183, %v1183
  %v1198 = vlaneseq
  %v1199 = vshrl.u32 %v1198, 7
  %v1200 = vsub.s32 0, %v1199
  %v1201 = vrot.slane %v1074, %v1200
  %v1202 = vlaneseq
  %v1203 = vshrl.u32 %v1202, 7
  %v1204 = vsub.s32 1, %v1203
  %v1205 = vrot.slane %v1074, %v1204
  %v1206 = vlaneseq
  %v1207 = vshrl.u32 %v1206, 7
  %v1208 = vsub.s32 2, %v1207
  %v1209 = vrot.slane %v1074, %v1208
  %v1210 = vlaneseq
  %v1211 = vshrl.u32 %v1210, 7
  %v1212 = vsub.s32 3, %v1211
  %v1213 = vrot.slane %v1074, %v1212
  %v1214 = vlaneseq
  %v1215 = vshrl.u32 %v1214, 7
  %v1216 = vsub.s32 4, %v1215
  %v1217 = vrot.slane %v1074, %v1216
  %v1218 = vlaneseq
  %v1219 = vshrl.u32 %v1218, 7
  %v1220 = vsub.s32 5, %v1219
  %v1221 = vrot.slane %v1074, %v1220
  %v1222 = vlaneseq
  %v1223 = vshrl.u32 %v1222, 7
  %v1224 = vsub.s32 6, %v1223
  %v1225 = vrot.slane %v1074, %v1224
  %v1226 = vlaneseq
  %v1227 = vshrl.u32 %v1226, 7
  %v1228 = vsub.s32 7, %v1227
  %v1229 = vrot.slane %v1074, %v1228
  %v1230 = vtanh.pop %v1168
  %v1231 = vmul.f32 %v1230, 0.5
  %v1232 = vadd.f32 %v1231, 0.5
  %1234 = vrot.lane.b32.xlu0 %v1230, 112
  %v1235 = vpop.permute.xlu0 %1234
  %v1237 = vmul.f32 %v1232, %v1235
  %v1238 = vtanh.pop %v1237
  %1240 = vrot.lane.b32.xlu0 %v1238, 24
  %v1241 = vpop.permute.xlu0 %1240
  %v1243 = vmul.f32 %v1232, %v1241
  %1245 = vset.pattern.permute.xlu0 24
  %1246 = vperm.xlu0 %1245, %v1243
  %v1247 = vpop.permute.xlu0 %1246
  %v1250 = vunpack.c.l.s4 839922192
  %v1251 = vunpack.c.0.s8 %v1250
  %v1252 = vlaneseq
  %v1253 = vshrl.u32 %v1252, 7
  %v1254 = vsub.s32 %v1251, %v1253
  %v1255 = vrot.slane %v1247, %v1254
  %v1256 = vmul.f32 %v1255, %v1201
  %1257 = vset.pattern.permute.xlu0 25
  %1258 = vperm.xlu0 %1257, %v1243
  %v1259 = vpop.permute.xlu0 %1258
  %v1262 = vunpack.c.l.s4 839922192
  %v1263 = vunpack.c.0.s8 %v1262
  %v1264 = vlaneseq
  %v1265 = vshrl.u32 %v1264, 7
  %v1266 = vsub.s32 %v1263, %v1265
  %v1267 = vrot.slane %v1259, %v1266
  %v1268 = vmul.f32 %v1267, %v1205
  %1269 = vset.pattern.permute.xlu0 26
  %1270 = vperm.xlu0 %1269, %v1243
  %v1271 = vpop.permute.xlu0 %1270
  %v1274 = vunpack.c.l.s4 839922192
  %v1275 = vunpack.c.0.s8 %v1274
  %v1276 = vlaneseq
  %v1277 = vshrl.u32 %v1276, 7
  %v1278 = vsub.s32 %v1275, %v1277
  %v1279 = vrot.slane %v1271, %v1278
  %v1280 = vmul.f32 %v1279, %v1209
  %1281 = vset.pattern.permute.xlu0 27
  %1282 = vperm.xlu0 %1281, %v1243
  %v1283 = vpop.permute.xlu0 %1282
  %v1286 = vunpack.c.l.s4 839922192
  %v1287 = vunpack.c.0.s8 %v1286
  %v1288 = vlaneseq
  %v1289 = vshrl.u32 %v1288, 7
  %v1290 = vsub.s32 %v1287, %v1289
  %v1291 = vrot.slane %v1283, %v1290
  %v1292 = vmul.f32 %v1291, %v1213
  %1293 = vset.pattern.permute.xlu0 28
  %1294 = vperm.xlu0 %1293, %v1243
  %v1295 = vpop.permute.xlu0 %1294
  %v1298 = vunpack.c.l.s4 839922192
  %v1299 = vunpack.c.0.s8 %v1298
  %v1300 = vlaneseq
  %v1301 = vshrl.u32 %v1300, 7
  %v1302 = vsub.s32 %v1299, %v1301
  %v1303 = vrot.slane %v1295, %v1302
  %v1304 = vmul.f32 %v1303, %v1217
  %1305 = vset.pattern.permute.xlu0 29
  %1306 = vperm.xlu0 %1305, %v1243
  %v1307 = vpop.permute.xlu0 %1306
  %v1310 = vunpack.c.l.s4 839922192
  %v1311 = vunpack.c.0.s8 %v1310
  %v1312 = vlaneseq
  %v1313 = vshrl.u32 %v1312, 7
  %v1314 = vsub.s32 %v1311, %v1313
  %v1315 = vrot.slane %v1307, %v1314
  %v1316 = vmul.f32 %v1315, %v1221
  %1317 = vset.pattern.permute.xlu0 30
  %1318 = vperm.xlu0 %1317, %v1243
  %v1319 = vpop.permute.xlu0 %1318
  %v1322 = vunpack.c.l.s4 839922192
  %v1323 = vunpack.c.0.s8 %v1322
  %v1324 = vlaneseq
  %v1325 = vshrl.u32 %v1324, 7
  %v1326 = vsub.s32 %v1323, %v1325
  %v1327 = vrot.slane %v1319, %v1326
  %v1328 = vmul.f32 %v1327, %v1225
  %1329 = vset.pattern.permute.xlu0 31
  %1330 = vperm.xlu0 %1329, %v1243
  %v1331 = vpop.permute.xlu0 %1330
  %v1334 = vunpack.c.l.s4 839922192
  %v1335 = vunpack.c.0.s8 %v1334
  %v1336 = vlaneseq
  %v1337 = vshrl.u32 %v1336, 7
  %v1338 = vsub.s32 %v1335, %v1337
  %v1339 = vrot.slane %v1331, %v1338
  %v1340 = vmul.f32 %v1339, %v1229
  %v1341 = vadd.f32 %v1256, %v1268
  %v1342 = vadd.f32 %v1280, %v1292
  %v1343 = vadd.f32 %v1304, %v1316
  %v1344 = vadd.f32 %v1328, %v1340
  %v1345 = vadd.f32 %v1341, %v1342
  %v1346 = vadd.f32 %v1343, %v1344
  %v1347 = vadd.f32 %v1345, %v1346
  %v1348 = vadd.f32 %v1190, %v1347
  %v1349 = vtanh.pop %v1348
  %v1350 = vmul.f32 %v1349, 0.5
  %v1351 = vadd.f32 %v1350, 0.5
  %1353 = vrot.lane.b32.xlu0 %v1237, 8
  %v1354 = vpop.permute.xlu0 %1353
  %v1356 = vmul.f32 %v1351, %v1354
  %1358 = vrot.lane.b32.xlu0 %v1349, 112
  %v1359 = vpop.permute.xlu0 %1358
  %v1361 = vmul.f32 %v1351, %v1359
  %1363 = vrot.lane.b32.xlu0 %v1361, 8
  %v1364 = vpop.permute.xlu0 %1363
  %v1366 = vadd.f32 %v1356, %v1364
  %v1367 = vtanh.pop %v1366
  %1369 = vrot.lane.b32.xlu0 %v1367, 16
  %v1370 = vpop.permute.xlu0 %1369
  %v1372 = vmul.f32 %v1351, %v1370
  %1374 = vset.pattern.permute.xlu0 24
  %1375 = vperm.xlu0 %1374, %v1372
  %v1376 = vpop.permute.xlu0 %1375
  %v1379 = vunpack.c.l.s4 839922192
  %v1380 = vunpack.c.0.s8 %v1379
  %v1381 = vlaneseq
  %v1382 = vshrl.u32 %v1381, 7
  %v1383 = vsub.s32 %v1380, %v1382
  %v1384 = vrot.slane %v1376, %v1383
  %v1385 = vmul.f32 %v1384, %v1201
  %1386 = vset.pattern.permute.xlu0 25
  %1387 = vperm.xlu0 %1386, %v1372
  %v1388 = vpop.permute.xlu0 %1387
  %v1391 = vunpack.c.l.s4 839922192
  %v1392 = vunpack.c.0.s8 %v1391
  %v1393 = vlaneseq
  %v1394 = vshrl.u32 %v1393, 7
  %v1395 = vsub.s32 %v1392, %v1394
  %v1396 = vrot.slane %v1388, %v1395
  %v1397 = vmul.f32 %v1396, %v1205
  %1398 = vset.pattern.permute.xlu0 26
  %1399 = vperm.xlu0 %1398, %v1372
  %v1400 = vpop.permute.xlu0 %1399
  %v1403 = vunpack.c.l.s4 839922192
  %v1404 = vunpack.c.0.s8 %v1403
  %v1405 = vlaneseq
  %v1406 = vshrl.u32 %v1405, 7
  %v1407 = vsub.s32 %v1404, %v1406
  %v1408 = vrot.slane %v1400, %v1407
  %v1409 = vmul.f32 %v1408, %v1209
  %1410 = vset.pattern.permute.xlu0 27
  %1411 = vperm.xlu0 %1410, %v1372
  %v1412 = vpop.permute.xlu0 %1411
  %v1415 = vunpack.c.l.s4 839922192
  %v1416 = vunpack.c.0.s8 %v1415
  %v1417 = vlaneseq
  %v1418 = vshrl.u32 %v1417, 7
  %v1419 = vsub.s32 %v1416, %v1418
  %v1420 = vrot.slane %v1412, %v1419
  %v1421 = vmul.f32 %v1420, %v1213
  %1422 = vset.pattern.permute.xlu0 28
  %1423 = vperm.xlu0 %1422, %v1372
  %v1424 = vpop.permute.xlu0 %1423
  %v1427 = vunpack.c.l.s4 839922192
  %v1428 = vunpack.c.0.s8 %v1427
  %v1429 = vlaneseq
  %v1430 = vshrl.u32 %v1429, 7
  %v1431 = vsub.s32 %v1428, %v1430
  %v1432 = vrot.slane %v1424, %v1431
  %v1433 = vmul.f32 %v1432, %v1217
  %1434 = vset.pattern.permute.xlu0 29
  %1435 = vperm.xlu0 %1434, %v1372
  %v1436 = vpop.permute.xlu0 %1435
  %v1439 = vunpack.c.l.s4 839922192
  %v1440 = vunpack.c.0.s8 %v1439
  %v1441 = vlaneseq
  %v1442 = vshrl.u32 %v1441, 7
  %v1443 = vsub.s32 %v1440, %v1442
  %v1444 = vrot.slane %v1436, %v1443
  %v1445 = vmul.f32 %v1444, %v1221
  %1446 = vset.pattern.permute.xlu0 30
  %1447 = vperm.xlu0 %1446, %v1372
  %v1448 = vpop.permute.xlu0 %1447
  %v1451 = vunpack.c.l.s4 839922192
  %v1452 = vunpack.c.0.s8 %v1451
  %v1453 = vlaneseq
  %v1454 = vshrl.u32 %v1453, 7
  %v1455 = vsub.s32 %v1452, %v1454
  %v1456 = vrot.slane %v1448, %v1455
  %v1457 = vmul.f32 %v1456, %v1225
  %1458 = vset.pattern.permute.xlu0 31
  %1459 = vperm.xlu0 %1458, %v1372
  %v1460 = vpop.permute.xlu0 %1459
  %v1463 = vunpack.c.l.s4 839922192
  %v1464 = vunpack.c.0.s8 %v1463
  %v1465 = vlaneseq
  %v1466 = vshrl.u32 %v1465, 7
  %v1467 = vsub.s32 %v1464, %v1466
  %v1468 = vrot.slane %v1460, %v1467
  %v1469 = vmul.f32 %v1468, %v1229
  %v1470 = vadd.f32 %v1385, %v1397
  %v1471 = vadd.f32 %v1409, %v1421
  %v1472 = vadd.f32 %v1433, %v1445
  %v1473 = vadd.f32 %v1457, %v1469
  %v1474 = vadd.f32 %v1470, %v1471
  %v1475 = vadd.f32 %v1472, %v1473
  %v1476 = vadd.f32 %v1474, %v1475
  %v1477 = vadd.f32 %v1173, %v1476
  %v1478 = vtanh.pop %v1477
  %v1479 = vmul.f32 %v1478, 0.5
  %v1480 = vadd.f32 %v1479, 0.5
  %v1481 = vmul.f32 %v1480, %v1366
  %1483 = vrot.lane.b32.xlu0 %v1478, 112
  %v1484 = vpop.permute.xlu0 %1483
  %v1486 = vmul.f32 %v1480, %v1484
  %1488 = vrot.lane.b32.xlu0 %v1486, 8
  %v1489 = vpop.permute.xlu0 %1488
  %v1491 = vadd.f32 %v1481, %v1489
  %v1492 = vtanh.pop %v1491
  %1494 = vrot.lane.b32.xlu0 %v1492, 16
  %v1495 = vpop.permute.xlu0 %1494
  %v1497 = vmul.f32 %v1480, %v1495
  %1499 = vset.pattern.permute.xlu0 24
  %1500 = vperm.xlu0 %1499, %v1497
  %v1501 = vpop.permute.xlu0 %1500
  %v1504 = vunpack.c.l.s4 839922192
  %v1505 = vunpack.c.0.s8 %v1504
  %v1506 = vlaneseq
  %v1507 = vshrl.u32 %v1506, 7
  %v1508 = vsub.s32 %v1505, %v1507
  %v1509 = vrot.slane %v1501, %v1508
  %v1510 = vmul.f32 %v1509, %v1201
  %1511 = vset.pattern.permute.xlu0 25
  %1512 = vperm.xlu0 %1511, %v1497
  %v1513 = vpop.permute.xlu0 %1512
  %v1516 = vunpack.c.l.s4 839922192
  %v1517 = vunpack.c.0.s8 %v1516
  %v1518 = vlaneseq
  %v1519 = vshrl.u32 %v1518, 7
  %v1520 = vsub.s32 %v1517, %v1519
  %v1521 = vrot.slane %v1513, %v1520
  %v1522 = vmul.f32 %v1521, %v1205
  %1523 = vset.pattern.permute.xlu0 26
  %1524 = vperm.xlu0 %1523, %v1497
  %v1525 = vpop.permute.xlu0 %1524
  %v1528 = vunpack.c.l.s4 839922192
  %v1529 = vunpack.c.0.s8 %v1528
  %v1530 = vlaneseq
  %v1531 = vshrl.u32 %v1530, 7
  %v1532 = vsub.s32 %v1529, %v1531
  %v1533 = vrot.slane %v1525, %v1532
  %v1534 = vmul.f32 %v1533, %v1209
  %1535 = vset.pattern.permute.xlu0 27
  %1536 = vperm.xlu0 %1535, %v1497
  %v1537 = vpop.permute.xlu0 %1536
  %v1540 = vunpack.c.l.s4 839922192
  %v1541 = vunpack.c.0.s8 %v1540
  %v1542 = vlaneseq
  %v1543 = vshrl.u32 %v1542, 7
  %v1544 = vsub.s32 %v1541, %v1543
  %v1545 = vrot.slane %v1537, %v1544
  %v1546 = vmul.f32 %v1545, %v1213
  %1547 = vset.pattern.permute.xlu0 28
  %1548 = vperm.xlu0 %1547, %v1497
  %v1549 = vpop.permute.xlu0 %1548
  %v1552 = vunpack.c.l.s4 839922192
  %v1553 = vunpack.c.0.s8 %v1552
  %v1554 = vlaneseq
  %v1555 = vshrl.u32 %v1554, 7
  %v1556 = vsub.s32 %v1553, %v1555
  %v1557 = vrot.slane %v1549, %v1556
  %v1558 = vmul.f32 %v1557, %v1217
  %1559 = vset.pattern.permute.xlu0 29
  %1560 = vperm.xlu0 %1559, %v1497
  %v1561 = vpop.permute.xlu0 %1560
  %v1564 = vunpack.c.l.s4 839922192
  %v1565 = vunpack.c.0.s8 %v1564
  %v1566 = vlaneseq
  %v1567 = vshrl.u32 %v1566, 7
  %v1568 = vsub.s32 %v1565, %v1567
  %v1569 = vrot.slane %v1561, %v1568
  %v1570 = vmul.f32 %v1569, %v1221
  %1571 = vset.pattern.permute.xlu0 30
  %1572 = vperm.xlu0 %1571, %v1497
  %v1573 = vpop.permute.xlu0 %1572
  %v1576 = vunpack.c.l.s4 839922192
  %v1577 = vunpack.c.0.s8 %v1576
  %v1578 = vlaneseq
  %v1579 = vshrl.u32 %v1578, 7
  %v1580 = vsub.s32 %v1577, %v1579
  %v1581 = vrot.slane %v1573, %v1580
  %v1582 = vmul.f32 %v1581, %v1225
  %1583 = vset.pattern.permute.xlu0 31
  %1584 = vperm.xlu0 %1583, %v1497
  %v1585 = vpop.permute.xlu0 %1584
  %v1588 = vunpack.c.l.s4 839922192
  %v1589 = vunpack.c.0.s8 %v1588
  %v1590 = vlaneseq
  %v1591 = vshrl.u32 %v1590, 7
  %v1592 = vsub.s32 %v1589, %v1591
  %v1593 = vrot.slane %v1585, %v1592
  %v1594 = vmul.f32 %v1593, %v1229
  %v1595 = vadd.f32 %v1510, %v1522
  %v1596 = vadd.f32 %v1534, %v1546
  %v1597 = vadd.f32 %v1558, %v1570
  %v1598 = vadd.f32 %v1582, %v1594
  %v1599 = vadd.f32 %v1595, %v1596
  %v1600 = vadd.f32 %v1597, %v1598
  %v1601 = vadd.f32 %v1599, %v1600
  %v1602 = vadd.f32 %v1191, %v1601
  %v1603 = vtanh.pop %v1602
  %v1604 = vmul.f32 %v1603, 0.5
  %v1605 = vadd.f32 %v1604, 0.5
  %v1606 = vmul.f32 %v1605, %v1491
  %1608 = vrot.lane.b32.xlu0 %v1603, 112
  %v1609 = vpop.permute.xlu0 %1608
  %v1611 = vmul.f32 %v1605, %v1609
  %1613 = vrot.lane.b32.xlu0 %v1611, 8
  %v1614 = vpop.permute.xlu0 %1613
  %v1616 = vadd.f32 %v1606, %v1614
  %v1617 = vtanh.pop %v1616
  %1619 = vrot.lane.b32.xlu0 %v1617, 16
  %v1620 = vpop.permute.xlu0 %1619
  %v1622 = vmul.f32 %v1605, %v1620
  %1624 = vset.pattern.permute.xlu0 24
  %1625 = vperm.xlu0 %1624, %v1622
  %v1626 = vpop.permute.xlu0 %1625
  %v1629 = vunpack.c.l.s4 839922192
  %v1630 = vunpack.c.0.s8 %v1629
  %v1631 = vlaneseq
  %v1632 = vshrl.u32 %v1631, 7
  %v1633 = vsub.s32 %v1630, %v1632
  %v1634 = vrot.slane %v1626, %v1633
  %v1635 = vmul.f32 %v1634, %v1201
  %1636 = vset.pattern.permute.xlu0 25
  %1637 = vperm.xlu0 %1636, %v1622
  %v1638 = vpop.permute.xlu0 %1637
  %v1641 = vunpack.c.l.s4 839922192
  %v1642 = vunpack.c.0.s8 %v1641
  %v1643 = vlaneseq
  %v1644 = vshrl.u32 %v1643, 7
  %v1645 = vsub.s32 %v1642, %v1644
  %v1646 = vrot.slane %v1638, %v1645
  %v1647 = vmul.f32 %v1646, %v1205
  %1648 = vset.pattern.permute.xlu0 26
  %1649 = vperm.xlu0 %1648, %v1622
  %v1650 = vpop.permute.xlu0 %1649
  %v1653 = vunpack.c.l.s4 839922192
  %v1654 = vunpack.c.0.s8 %v1653
  %v1655 = vlaneseq
  %v1656 = vshrl.u32 %v1655, 7
  %v1657 = vsub.s32 %v1654, %v1656
  %v1658 = vrot.slane %v1650, %v1657
  %v1659 = vmul.f32 %v1658, %v1209
  %1660 = vset.pattern.permute.xlu0 27
  %1661 = vperm.xlu0 %1660, %v1622
  %v1662 = vpop.permute.xlu0 %1661
  %v1665 = vunpack.c.l.s4 839922192
  %v1666 = vunpack.c.0.s8 %v1665
  %v1667 = vlaneseq
  %v1668 = vshrl.u32 %v1667, 7
  %v1669 = vsub.s32 %v1666, %v1668
  %v1670 = vrot.slane %v1662, %v1669
  %v1671 = vmul.f32 %v1670, %v1213
  %1672 = vset.pattern.permute.xlu0 28
  %1673 = vperm.xlu0 %1672, %v1622
  %v1674 = vpop.permute.xlu0 %1673
  %v1677 = vunpack.c.l.s4 839922192
  %v1678 = vunpack.c.0.s8 %v1677
  %v1679 = vlaneseq
  %v1680 = vshrl.u32 %v1679, 7
  %v1681 = vsub.s32 %v1678, %v1680
  %v1682 = vrot.slane %v1674, %v1681
  %v1683 = vmul.f32 %v1682, %v1217
  %1684 = vset.pattern.permute.xlu0 29
  %1685 = vperm.xlu0 %1684, %v1622
  %v1686 = vpop.permute.xlu0 %1685
  %v1689 = vunpack.c.l.s4 839922192
  %v1690 = vunpack.c.0.s8 %v1689
  %v1691 = vlaneseq
  %v1692 = vshrl.u32 %v1691, 7
  %v1693 = vsub.s32 %v1690, %v1692
  %v1694 = vrot.slane %v1686, %v1693
  %v1695 = vmul.f32 %v1694, %v1221
  %1696 = vset.pattern.permute.xlu0 30
  %1697 = vperm.xlu0 %1696, %v1622
  %v1698 = vpop.permute.xlu0 %1697
  %v1701 = vunpack.c.l.s4 839922192
  %v1702 = vunpack.c.0.s8 %v1701
  %v1703 = vlaneseq
  %v1704 = vshrl.u32 %v1703, 7
  %v1705 = vsub.s32 %v1702, %v1704
  %v1706 = vrot.slane %v1698, %v1705
  %v1707 = vmul.f32 %v1706, %v1225
  %1708 = vset.pattern.permute.xlu0 31
  %1709 = vperm.xlu0 %1708, %v1622
  %v1710 = vpop.permute.xlu0 %1709
  %v1713 = vunpack.c.l.s4 839922192
  %v1714 = vunpack.c.0.s8 %v1713
  %v1715 = vlaneseq
  %v1716 = vshrl.u32 %v1715, 7
  %v1717 = vsub.s32 %v1714, %v1716
  %v1718 = vrot.slane %v1710, %v1717
  %v1719 = vmul.f32 %v1718, %v1229
  %v1720 = vadd.f32 %v1635, %v1647
  %v1721 = vadd.f32 %v1659, %v1671
  %v1722 = vadd.f32 %v1683, %v1695
  %v1723 = vadd.f32 %v1707, %v1719
  %v1724 = vadd.f32 %v1720, %v1721
  %v1725 = vadd.f32 %v1722, %v1723
  %v1726 = vadd.f32 %v1724, %v1725
  %v1727 = vadd.f32 %v1178, %v1726
  %v1728 = vtanh.pop %v1727
  %v1729 = vmul.f32 %v1728, 0.5
  %v1730 = vadd.f32 %v1729, 0.5
  %v1731 = vmul.f32 %v1730, %v1616
  %1733 = vrot.lane.b32.xlu0 %v1728, 112
  %v1734 = vpop.permute.xlu0 %1733
  %v1736 = vmul.f32 %v1730, %v1734
  %1738 = vrot.lane.b32.xlu0 %v1736, 8
  %v1739 = vpop.permute.xlu0 %1738
  %v1741 = vadd.f32 %v1731, %v1739
  %v1742 = vtanh.pop %v1741
  %1744 = vrot.lane.b32.xlu0 %v1742, 16
  %v1745 = vpop.permute.xlu0 %1744
  %v1747 = vmul.f32 %v1730, %v1745
  %1749 = vset.pattern.permute.xlu0 24
  %1750 = vperm.xlu0 %1749, %v1747
  %v1751 = vpop.permute.xlu0 %1750
  %v1754 = vunpack.c.l.s4 839922192
  %v1755 = vunpack.c.0.s8 %v1754
  %v1756 = vlaneseq
  %v1757 = vshrl.u32 %v1756, 7
  %v1758 = vsub.s32 %v1755, %v1757
  %v1759 = vrot.slane %v1751, %v1758
  %v1760 = vmul.f32 %v1759, %v1201
  %1761 = vset.pattern.permute.xlu0 25
  %1762 = vperm.xlu0 %1761, %v1747
  %v1763 = vpop.permute.xlu0 %1762
  %v1766 = vunpack.c.l.s4 839922192
  %v1767 = vunpack.c.0.s8 %v1766
  %v1768 = vlaneseq
  %v1769 = vshrl.u32 %v1768, 7
  %v1770 = vsub.s32 %v1767, %v1769
  %v1771 = vrot.slane %v1763, %v1770
  %v1772 = vmul.f32 %v1771, %v1205
  %1773 = vset.pattern.permute.xlu0 26
  %1774 = vperm.xlu0 %1773, %v1747
  %v1775 = vpop.permute.xlu0 %1774
  %v1778 = vunpack.c.l.s4 839922192
  %v1779 = vunpack.c.0.s8 %v1778
  %v1780 = vlaneseq
  %v1781 = vshrl.u32 %v1780, 7
  %v1782 = vsub.s32 %v1779, %v1781
  %v1783 = vrot.slane %v1775, %v1782
  %v1784 = vmul.f32 %v1783, %v1209
  %1785 = vset.pattern.permute.xlu0 27
  %1786 = vperm.xlu0 %1785, %v1747
  %v1787 = vpop.permute.xlu0 %1786
  %v1790 = vunpack.c.l.s4 839922192
  %v1791 = vunpack.c.0.s8 %v1790
  %v1792 = vlaneseq
  %v1793 = vshrl.u32 %v1792, 7
  %v1794 = vsub.s32 %v1791, %v1793
  %v1795 = vrot.slane %v1787, %v1794
  %v1796 = vmul.f32 %v1795, %v1213
  %1797 = vset.pattern.permute.xlu0 28
  %1798 = vperm.xlu0 %1797, %v1747
  %v1799 = vpop.permute.xlu0 %1798
  %v1802 = vunpack.c.l.s4 839922192
  %v1803 = vunpack.c.0.s8 %v1802
  %v1804 = vlaneseq
  %v1805 = vshrl.u32 %v1804, 7
  %v1806 = vsub.s32 %v1803, %v1805
  %v1807 = vrot.slane %v1799, %v1806
  %v1808 = vmul.f32 %v1807, %v1217
  %1809 = vset.pattern.permute.xlu0 29
  %1810 = vperm.xlu0 %1809, %v1747
  %v1811 = vpop.permute.xlu0 %1810
  %v1814 = vunpack.c.l.s4 839922192
  %v1815 = vunpack.c.0.s8 %v1814
  %v1816 = vlaneseq
  %v1817 = vshrl.u32 %v1816, 7
  %v1818 = vsub.s32 %v1815, %v1817
  %v1819 = vrot.slane %v1811, %v1818
  %v1820 = vmul.f32 %v1819, %v1221
  %1821 = vset.pattern.permute.xlu0 30
  %1822 = vperm.xlu0 %1821, %v1747
  %v1823 = vpop.permute.xlu0 %1822
  %v1826 = vunpack.c.l.s4 839922192
  %v1827 = vunpack.c.0.s8 %v1826
  %v1828 = vlaneseq
  %v1829 = vshrl.u32 %v1828, 7
  %v1830 = vsub.s32 %v1827, %v1829
  %v1831 = vrot.slane %v1823, %v1830
  %v1832 = vmul.f32 %v1831, %v1225
  %1833 = vset.pattern.permute.xlu0 31
  %1834 = vperm.xlu0 %1833, %v1747
  %v1835 = vpop.permute.xlu0 %1834
  %v1838 = vunpack.c.l.s4 839922192
  %v1839 = vunpack.c.0.s8 %v1838
  %v1840 = vlaneseq
  %v1841 = vshrl.u32 %v1840, 7
  %v1842 = vsub.s32 %v1839, %v1841
  %v1843 = vrot.slane %v1835, %v1842
  %v1844 = vmul.f32 %v1843, %v1229
  %v1845 = vadd.f32 %v1760, %v1772
  %v1846 = vadd.f32 %v1784, %v1796
  %v1847 = vadd.f32 %v1808, %v1820
  %v1848 = vadd.f32 %v1832, %v1844
  %v1849 = vadd.f32 %v1845, %v1846
  %v1850 = vadd.f32 %v1847, %v1848
  %v1851 = vadd.f32 %v1849, %v1850
  %v1852 = vadd.f32 %v1192, %v1851
  %v1853 = vtanh.pop %v1852
  %v1854 = vmul.f32 %v1853, 0.5
  %v1855 = vadd.f32 %v1854, 0.5
  %v1856 = vmul.f32 %v1855, %v1741
  %1858 = vrot.lane.b32.xlu0 %v1853, 112
  %v1859 = vpop.permute.xlu0 %1858
  %v1861 = vmul.f32 %v1855, %v1859
  %1863 = vrot.lane.b32.xlu0 %v1861, 8
  %v1864 = vpop.permute.xlu0 %1863
  %v1866 = vadd.f32 %v1856, %v1864
  %v1867 = vtanh.pop %v1866
  %1869 = vrot.lane.b32.xlu0 %v1867, 16
  %v1870 = vpop.permute.xlu0 %1869
  %v1872 = vmul.f32 %v1855, %v1870
  %1874 = vset.pattern.permute.xlu0 24
  %1875 = vperm.xlu0 %1874, %v1872
  %v1876 = vpop.permute.xlu0 %1875
  %v1879 = vunpack.c.l.s4 839922192
  %v1880 = vunpack.c.0.s8 %v1879
  %v1881 = vlaneseq
  %v1882 = vshrl.u32 %v1881, 7
  %v1883 = vsub.s32 %v1880, %v1882
  %v1884 = vrot.slane %v1876, %v1883
  %v1885 = vmul.f32 %v1884, %v1201
  %1886 = vset.pattern.permute.xlu0 25
  %1887 = vperm.xlu0 %1886, %v1872
  %v1888 = vpop.permute.xlu0 %1887
  %v1891 = vunpack.c.l.s4 839922192
  %v1892 = vunpack.c.0.s8 %v1891
  %v1893 = vlaneseq
  %v1894 = vshrl.u32 %v1893, 7
  %v1895 = vsub.s32 %v1892, %v1894
  %v1896 = vrot.slane %v1888, %v1895
  %v1897 = vmul.f32 %v1896, %v1205
  %1898 = vset.pattern.permute.xlu0 26
  %1899 = vperm.xlu0 %1898, %v1872
  %v1900 = vpop.permute.xlu0 %1899
  %v1903 = vunpack.c.l.s4 839922192
  %v1904 = vunpack.c.0.s8 %v1903
  %v1905 = vlaneseq
  %v1906 = vshrl.u32 %v1905, 7
  %v1907 = vsub.s32 %v1904, %v1906
  %v1908 = vrot.slane %v1900, %v1907
  %v1909 = vmul.f32 %v1908, %v1209
  %1910 = vset.pattern.permute.xlu0 27
  %1911 = vperm.xlu0 %1910, %v1872
  %v1912 = vpop.permute.xlu0 %1911
  %v1915 = vunpack.c.l.s4 839922192
  %v1916 = vunpack.c.0.s8 %v1915
  %v1917 = vlaneseq
  %v1918 = vshrl.u32 %v1917, 7
  %v1919 = vsub.s32 %v1916, %v1918
  %v1920 = vrot.slane %v1912, %v1919
  %v1921 = vmul.f32 %v1920, %v1213
  %1922 = vset.pattern.permute.xlu0 28
  %1923 = vperm.xlu0 %1922, %v1872
  %v1924 = vpop.permute.xlu0 %1923
  %v1927 = vunpack.c.l.s4 839922192
  %v1928 = vunpack.c.0.s8 %v1927
  %v1929 = vlaneseq
  %v1930 = vshrl.u32 %v1929, 7
  %v1931 = vsub.s32 %v1928, %v1930
  %v1932 = vrot.slane %v1924, %v1931
  %v1933 = vmul.f32 %v1932, %v1217
  %1934 = vset.pattern.permute.xlu0 29
  %1935 = vperm.xlu0 %1934, %v1872
  %v1936 = vpop.permute.xlu0 %1935
  %v1939 = vunpack.c.l.s4 839922192
  %v1940 = vunpack.c.0.s8 %v1939
  %v1941 = vlaneseq
  %v1942 = vshrl.u32 %v1941, 7
  %v1943 = vsub.s32 %v1940, %v1942
  %v1944 = vrot.slane %v1936, %v1943
  %v1945 = vmul.f32 %v1944, %v1221
  %1946 = vset.pattern.permute.xlu0 30
  %1947 = vperm.xlu0 %1946, %v1872
  %v1948 = vpop.permute.xlu0 %1947
  %v1951 = vunpack.c.l.s4 839922192
  %v1952 = vunpack.c.0.s8 %v1951
  %v1953 = vlaneseq
  %v1954 = vshrl.u32 %v1953, 7
  %v1955 = vsub.s32 %v1952, %v1954
  %v1956 = vrot.slane %v1948, %v1955
  %v1957 = vmul.f32 %v1956, %v1225
  %1958 = vset.pattern.permute.xlu0 31
  %1959 = vperm.xlu0 %1958, %v1872
  %v1960 = vpop.permute.xlu0 %1959
  %v1963 = vunpack.c.l.s4 839922192
  %v1964 = vunpack.c.0.s8 %v1963
  %v1965 = vlaneseq
  %v1966 = vshrl.u32 %v1965, 7
  %v1967 = vsub.s32 %v1964, %v1966
  %v1968 = vrot.slane %v1960, %v1967
  %v1969 = vmul.f32 %v1968, %v1229
  %v1970 = vadd.f32 %v1885, %v1897
  %v1971 = vadd.f32 %v1909, %v1921
  %v1972 = vadd.f32 %v1933, %v1945
  %v1973 = vadd.f32 %v1957, %v1969
  %v1974 = vadd.f32 %v1970, %v1971
  %v1975 = vadd.f32 %v1972, %v1973
  %v1976 = vadd.f32 %v1974, %v1975
  %v1977 = vadd.f32 %v1183, %v1976
  %v1978 = vtanh.pop %v1977
  %v1979 = vmul.f32 %v1978, 0.5
  %v1980 = vadd.f32 %v1979, 0.5
  %v1981 = vmul.f32 %v1980, %v1866
  %1983 = vrot.lane.b32.xlu0 %v1978, 112
  %v1984 = vpop.permute.xlu0 %1983
  %v1986 = vmul.f32 %v1980, %v1984
  %1988 = vrot.lane.b32.xlu0 %v1986, 8
  %v1989 = vpop.permute.xlu0 %1988
  %v1991 = vadd.f32 %v1981, %v1989
  %v1992 = vtanh.pop %v1991
  %1994 = vrot.lane.b32.xlu0 %v1992, 16
  %v1995 = vpop.permute.xlu0 %1994
  %v1997 = vmul.f32 %v1980, %v1995
  %1999 = vset.pattern.permute.xlu0 24
  %2000 = vperm.xlu0 %1999, %v1997
  %v2001 = vpop.permute.xlu0 %2000
  %v2004 = vunpack.c.l.s4 839922192
  %v2005 = vunpack.c.0.s8 %v2004
  %v2006 = vlaneseq
  %v2007 = vshrl.u32 %v2006, 7
  %v2008 = vsub.s32 %v2005, %v2007
  %v2009 = vrot.slane %v2001, %v2008
  %v2010 = vmul.f32 %v2009, %v1201
  %2011 = vset.pattern.permute.xlu0 25
  %2012 = vperm.xlu0 %2011, %v1997
  %v2013 = vpop.permute.xlu0 %2012
  %v2016 = vunpack.c.l.s4 839922192
  %v2017 = vunpack.c.0.s8 %v2016
  %v2018 = vlaneseq
  %v2019 = vshrl.u32 %v2018, 7
  %v2020 = vsub.s32 %v2017, %v2019
  %v2021 = vrot.slane %v2013, %v2020
  %v2022 = vmul.f32 %v2021, %v1205
  %2023 = vset.pattern.permute.xlu0 26
  %2024 = vperm.xlu0 %2023, %v1997
  %v2025 = vpop.permute.xlu0 %2024
  %v2028 = vunpack.c.l.s4 839922192
  %v2029 = vunpack.c.0.s8 %v2028
  %v2030 = vlaneseq
  %v2031 = vshrl.u32 %v2030, 7
  %v2032 = vsub.s32 %v2029, %v2031
  %v2033 = vrot.slane %v2025, %v2032
  %v2034 = vmul.f32 %v2033, %v1209
  %2035 = vset.pattern.permute.xlu0 27
  %2036 = vperm.xlu0 %2035, %v1997
  %v2037 = vpop.permute.xlu0 %2036
  %v2040 = vunpack.c.l.s4 839922192
  %v2041 = vunpack.c.0.s8 %v2040
  %v2042 = vlaneseq
  %v2043 = vshrl.u32 %v2042, 7
  %v2044 = vsub.s32 %v2041, %v2043
  %v2045 = vrot.slane %v2037, %v2044
  %v2046 = vmul.f32 %v2045, %v1213
  %2047 = vset.pattern.permute.xlu0 28
  %2048 = vperm.xlu0 %2047, %v1997
  %v2049 = vpop.permute.xlu0 %2048
  %v2052 = vunpack.c.l.s4 839922192
  %v2053 = vunpack.c.0.s8 %v2052
  %v2054 = vlaneseq
  %v2055 = vshrl.u32 %v2054, 7
  %v2056 = vsub.s32 %v2053, %v2055
  %v2057 = vrot.slane %v2049, %v2056
  %v2058 = vmul.f32 %v2057, %v1217
  %2059 = vset.pattern.permute.xlu0 29
  %2060 = vperm.xlu0 %2059, %v1997
  %v2061 = vpop.permute.xlu0 %2060
  %v2064 = vunpack.c.l.s4 839922192
  %v2065 = vunpack.c.0.s8 %v2064
  %v2066 = vlaneseq
  %v2067 = vshrl.u32 %v2066, 7
  %v2068 = vsub.s32 %v2065, %v2067
  %v2069 = vrot.slane %v2061, %v2068
  %v2070 = vmul.f32 %v2069, %v1221
  %2071 = vset.pattern.permute.xlu0 30
  %2072 = vperm.xlu0 %2071, %v1997
  %v2073 = vpop.permute.xlu0 %2072
  %v2076 = vunpack.c.l.s4 839922192
  %v2077 = vunpack.c.0.s8 %v2076
  %v2078 = vlaneseq
  %v2079 = vshrl.u32 %v2078, 7
  %v2080 = vsub.s32 %v2077, %v2079
  %v2081 = vrot.slane %v2073, %v2080
  %v2082 = vmul.f32 %v2081, %v1225
  %2083 = vset.pattern.permute.xlu0 31
  %2084 = vperm.xlu0 %2083, %v1997
  %v2085 = vpop.permute.xlu0 %2084
  %v2088 = vunpack.c.l.s4 839922192
  %v2089 = vunpack.c.0.s8 %v2088
  %v2090 = vlaneseq
  %v2091 = vshrl.u32 %v2090, 7
  %v2092 = vsub.s32 %v2089, %v2091
  %v2093 = vrot.slane %v2085, %v2092
  %v2094 = vmul.f32 %v2093, %v1229
  %v2095 = vadd.f32 %v2010, %v2022
  %v2096 = vadd.f32 %v2034, %v2046
  %v2097 = vadd.f32 %v2058, %v2070
  %v2098 = vadd.f32 %v2082, %v2094
  %v2099 = vadd.f32 %v2095, %v2096
  %v2100 = vadd.f32 %v2097, %v2098
  %v2101 = vadd.f32 %v2099, %v2100
  %v2102 = vadd.f32 %v1193, %v2101
  %v2103 = vtanh.pop %v2102
  %v2104 = vmul.f32 %v2103, 0.5
  %v2105 = vadd.f32 %v2104, 0.5
  %v2106 = vmul.f32 %v2105, %v1991
  %2108 = vrot.lane.b32.xlu0 %v2103, 112
  %v2109 = vpop.permute.xlu0 %2108
  %v2111 = vmul.f32 %v2105, %v2109
  %2113 = vrot.lane.b32.xlu0 %v2111, 8
  %v2114 = vpop.permute.xlu0 %2113
  %v2116 = vadd.f32 %v2106, %v2114
  %v2117 = vtanh.pop %v2116
  %2119 = vrot.lane.b32.xlu0 %v2117, 16
  %v2120 = vpop.permute.xlu0 %2119
  %v2122 = vmul.f32 %v2105, %v2120
  %v2123 = vcombine.low %v1372, %v1372
  %v2125 = vcombine.low %v1622, %v1622
  %v2127 = vcombine.low %v1872, %v1872
  %v2130 = vcombine.low %v2122, %v2122
  %v2132 = vsel %vm1068, %v1243, %v2123
  %v2133 = vsel %vm1068, %v1497, %v2125
  %v2134 = vsel %vm1068, %v1747, %v2127
  %v2135 = vsel %vm1068, %v1997, %v2130
  %v2136 = vld [vmem:[%s1 + $0x40] sm:$0xff]
  %v2137 = vld [vmem:[%s1 + $0x48] sm:$0xff]
  %v2138 = vld [vmem:[%s1 + $0x50] sm:$0x1]
  %v2139 = vlaneseq
  %v2140 = vshrl.u32 %v2139, 7
  %v2141 = vsub.s32 0, %v2140
  %v2142 = vrot.slane %v2138, %v2141
  %2147 = vrot.lane.b32.xlu0 %v2132, 104
  %v2148 = vpop.permute.xlu0 %2147
  %2149 = vrot.lane.b32.xlu0 %v2133, 104
  %v2150 = vpop.permute.xlu0 %2149
  %2151 = vrot.lane.b32.xlu0 %v2134, 104
  %v2152 = vpop.permute.xlu0 %2151
  %2153 = vrot.lane.b32.xlu0 %v2135, 104
  %v2154 = vpop.permute.xlu0 %2153
  %v2155 = vsel %vm1092, %v2148, 0
  %v2157 = vsel %vm1092, %v2150, 0
  %v2159 = vsel %vm1092, %v2152, 0
  %v2161 = vsel %vm1092, %v2154, 0
  %2163 = vmatprep.subr.mxu0 0.0
  %2164 = vmatpush1.msra.mxu0 0.0
  %2165 = vmatprep.subr.mxu0 0.0
  %2166 = vmatpush1.msra.mxu0 0.0
  %2167 = vmatprep.subr.mxu0 0.0
  %2168 = vmatpush1.msra.mxu0 0.0
  %2169 = vmatprep.subr.mxu0 0.0
  %2170 = vmatpush1.msra.mxu0 0.0
  %2171 = vmatprep.subr.mxu0 0.0
  %2172 = vmatpush1.msra.mxu0 0.0
  %2173 = vmatprep.subr.mxu0 0.0
  %2174 = vmatpush1.msra.mxu0 0.0
  %2175 = vmatprep.subr.mxu0 0.0
  %2176 = vmatpush1.msra.mxu0 0.0
  %2177 = vmatprep.subr.mxu0 0.0
  %2178 = vmatpush1.msra.mxu0 0.0
  %2179 = vmatprep.subr.mxu0 0.0
  %2180 = vmatpush1.msra.mxu0 0.0
  %2181 = vmatprep.subr.mxu0 0.0
  %2182 = vmatpush1.msra.mxu0 0.0
  %2183 = vmatprep.subr.mxu0 0.0
  %2184 = vmatpush1.msra.mxu0 0.0
  %2185 = vmatprep.subr.mxu0 0.0
  %2186 = vmatpush1.msra.mxu0 0.0
  %2187 = vmatprep.subr.mxu0 0.0
  %2188 = vmatpush1.msra.mxu0 0.0
  %2189 = vmatprep.subr.mxu0 0.0
  %2190 = vmatpush1.msra.mxu0 0.0
  %2191 = vmatprep.subr.mxu0 0.0
  %2192 = vmatpush1.msra.mxu0 0.0
  %2193 = vmatprep.subr.mxu0 0.0
  %2194 = vmatpush1.msra.mxu0 %v2136
  %2195 = vmatprep.subr.mxu0 0.0
  %2196 = vmatpush2.msra.mxu0 0.0
  %2197 = vmatprep.subr.mxu0 0.0
  %2198 = vmatpush2.msra.mxu0 0.0
  %2199 = vmatprep.subr.mxu0 0.0
  %2200 = vmatpush2.msra.mxu0 0.0
  %2201 = vmatprep.subr.mxu0 0.0
  %2202 = vmatpush2.msra.mxu0 0.0
  %2203 = vmatprep.subr.mxu0 0.0
  %2204 = vmatpush2.msra.mxu0 0.0
  %2205 = vmatprep.subr.mxu0 0.0
  %2206 = vmatpush2.msra.mxu0 0.0
  %2207 = vmatprep.subr.mxu0 0.0
  %2208 = vmatpush2.msra.mxu0 0.0
  %2209 = vmatprep.subr.mxu0 0.0
  %2210 = vmatpush2.msra.mxu0 0.0
  %2211 = vmatprep.subr.mxu0 0.0
  %2212 = vmatpush2.msra.mxu0 0.0
  %2213 = vmatprep.subr.mxu0 0.0
  %2214 = vmatpush2.msra.mxu0 0.0
  %2215 = vmatprep.subr.mxu0 0.0
  %2216 = vmatpush2.msra.mxu0 0.0
  %2217 = vmatprep.subr.mxu0 0.0
  %2218 = vmatpush2.msra.mxu0 0.0
  %2219 = vmatprep.subr.mxu0 0.0
  %2220 = vmatpush2.msra.mxu0 0.0
  %2221 = vmatprep.subr.mxu0 0.0
  %2222 = vmatpush2.msra.mxu0 0.0
  %2223 = vmatprep.subr.mxu0 0.0
  %2224 = vmatpush2.msra.mxu0 0.0
  %2225 = vmatprep.subr.mxu0 0.0
  %2226 = vmatpush2.msra.mxu0 0.0
  %2227 = vmatprep.mubr.f32.mxu0 0.0
  %2228 = vmatmul.mubr.f32.gmra.mxu0 %v2155
  %v2229 = vpop.f32.mrf.mxu0
  %v2230 = vadd.f32 %v2142, %v2229
  %v2231 = vpop.f32.mrf.mxu0
  %2232 = vmatprep.mubr.f32.mxu0 0.0
  %2233 = vmatmul.mubr.f32.gmra.mxu0 %v2157
  %v2234 = vpop.f32.mrf.mxu0
  %v2235 = vadd.f32 %v2142, %v2234
  %v2236 = vpop.f32.mrf.mxu0
  %2237 = vmatprep.mubr.f32.mxu0 0.0
  %2238 = vmatmul.mubr.f32.gmra.mxu0 %v2159
  %v2239 = vpop.f32.mrf.mxu0
  %v2240 = vadd.f32 %v2142, %v2239
  %v2241 = vpop.f32.mrf.mxu0
  %2242 = vmatprep.mubr.f32.mxu0 0.0
  %2243 = vmatmul.mubr.f32.gmra.mxu0 %v2161
  %v2244 = vpop.f32.mrf.mxu0
  %v2245 = vadd.f32 %v2142, %v2244
  %v2246 = vpop.f32.mrf.mxu0
  %2247 = vdwg.mxu0
  %v2252 = vcombine.high %v2230, %v2230
  %v2253 = vcombine.high %v2235, %v2235
  %v2254 = vcombine.high %v2240, %v2240
  %v2255 = vcombine.high %v2245, %v2245
  %v2260 = vlaneseq
  %v2261 = vshrl.u32 %v2260, 7
  %v2262 = vsub.s32 0, %v2261
  %v2263 = vrot.slane %v2137, %v2262
  %v2264 = vlaneseq
  %v2265 = vshrl.u32 %v2264, 7
  %v2266 = vsub.s32 1, %v2265
  %v2267 = vrot.slane %v2137, %v2266
  %v2268 = vlaneseq
  %v2269 = vshrl.u32 %v2268, 7
  %v2270 = vsub.s32 2, %v2269
  %v2271 = vrot.slane %v2137, %v2270
  %v2272 = vlaneseq
  %v2273 = vshrl.u32 %v2272, 7
  %v2274 = vsub.s32 3, %v2273
  %v2275 = vrot.slane %v2137, %v2274
  %v2276 = vlaneseq
  %v2277 = vshrl.u32 %v2276, 7
  %v2278 = vsub.s32 4, %v2277
  %v2279 = vrot.slane %v2137, %v2278
  %v2280 = vlaneseq
  %v2281 = vshrl.u32 %v2280, 7
  %v2282 = vsub.s32 5, %v2281
  %v2283 = vrot.slane %v2137, %v2282
  %v2284 = vlaneseq
  %v2285 = vshrl.u32 %v2284, 7
  %v2286 = vsub.s32 6, %v2285
  %v2287 = vrot.slane %v2137, %v2286
  %v2288 = vlaneseq
  %v2289 = vshrl.u32 %v2288, 7
  %v2290 = vsub.s32 7, %v2289
  %v2291 = vrot.slane %v2137, %v2290
  %v2292 = vtanh.pop %v2230
  %v2293 = vmul.f32 %v2292, 0.5
  %v2294 = vadd.f32 %v2293, 0.5
  %2296 = vrot.lane.b32.xlu0 %v2292, 112
  %v2297 = vpop.permute.xlu0 %2296
  %v2299 = vmul.f32 %v2294, %v2297
  %v2300 = vtanh.pop %v2299
  %2302 = vrot.lane.b32.xlu0 %v2300, 24
  %v2303 = vpop.permute.xlu0 %2302
  %v2305 = vmul.f32 %v2294, %v2303
  %2307 = vset.pattern.permute.xlu0 24
  %2308 = vperm.xlu0 %2307, %v2305
  %v2309 = vpop.permute.xlu0 %2308
  %v2312 = vunpack.c.l.s4 839922192
  %v2313 = vunpack.c.0.s8 %v2312
  %v2314 = vlaneseq
  %v2315 = vshrl.u32 %v2314, 7
  %v2316 = vsub.s32 %v2313, %v2315
  %v2317 = vrot.slane %v2309, %v2316
  %v2318 = vmul.f32 %v2317, %v2263
  %2319 = vset.pattern.permute.xlu0 25
  %2320 = vperm.xlu0 %2319, %v2305
  %v2321 = vpop.permute.xlu0 %2320
  %v2324 = vunpack.c.l.s4 839922192
  %v2325 = vunpack.c.0.s8 %v2324
  %v2326 = vlaneseq
  %v2327 = vshrl.u32 %v2326, 7
  %v2328 = vsub.s32 %v2325, %v2327
  %v2329 = vrot.slane %v2321, %v2328
  %v2330 = vmul.f32 %v2329, %v2267
  %2331 = vset.pattern.permute.xlu0 26
  %2332 = vperm.xlu0 %2331, %v2305
  %v2333 = vpop.permute.xlu0 %2332
  %v2336 = vunpack.c.l.s4 839922192
  %v2337 = vunpack.c.0.s8 %v2336
  %v2338 = vlaneseq
  %v2339 = vshrl.u32 %v2338, 7
  %v2340 = vsub.s32 %v2337, %v2339
  %v2341 = vrot.slane %v2333, %v2340
  %v2342 = vmul.f32 %v2341, %v2271
  %2343 = vset.pattern.permute.xlu0 27
  %2344 = vperm.xlu0 %2343, %v2305
  %v2345 = vpop.permute.xlu0 %2344
  %v2348 = vunpack.c.l.s4 839922192
  %v2349 = vunpack.c.0.s8 %v2348
  %v2350 = vlaneseq
  %v2351 = vshrl.u32 %v2350, 7
  %v2352 = vsub.s32 %v2349, %v2351
  %v2353 = vrot.slane %v2345, %v2352
  %v2354 = vmul.f32 %v2353, %v2275
  %2355 = vset.pattern.permute.xlu0 28
  %2356 = vperm.xlu0 %2355, %v2305
  %v2357 = vpop.permute.xlu0 %2356
  %v2360 = vunpack.c.l.s4 839922192
  %v2361 = vunpack.c.0.s8 %v2360
  %v2362 = vlaneseq
  %v2363 = vshrl.u32 %v2362, 7
  %v2364 = vsub.s32 %v2361, %v2363
  %v2365 = vrot.slane %v2357, %v2364
  %v2366 = vmul.f32 %v2365, %v2279
  %2367 = vset.pattern.permute.xlu0 29
  %2368 = vperm.xlu0 %2367, %v2305
  %v2369 = vpop.permute.xlu0 %2368
  %v2372 = vunpack.c.l.s4 839922192
  %v2373 = vunpack.c.0.s8 %v2372
  %v2374 = vlaneseq
  %v2375 = vshrl.u32 %v2374, 7
  %v2376 = vsub.s32 %v2373, %v2375
  %v2377 = vrot.slane %v2369, %v2376
  %v2378 = vmul.f32 %v2377, %v2283
  %2379 = vset.pattern.permute.xlu0 30
  %2380 = vperm.xlu0 %2379, %v2305
  %v2381 = vpop.permute.xlu0 %2380
  %v2384 = vunpack.c.l.s4 839922192
  %v2385 = vunpack.c.0.s8 %v2384
  %v2386 = vlaneseq
  %v2387 = vshrl.u32 %v2386, 7
  %v2388 = vsub.s32 %v2385, %v2387
  %v2389 = vrot.slane %v2381, %v2388
  %v2390 = vmul.f32 %v2389, %v2287
  %2391 = vset.pattern.permute.xlu0 31
  %2392 = vperm.xlu0 %2391, %v2305
  %v2393 = vpop.permute.xlu0 %2392
  %v2396 = vunpack.c.l.s4 839922192
  %v2397 = vunpack.c.0.s8 %v2396
  %v2398 = vlaneseq
  %v2399 = vshrl.u32 %v2398, 7
  %v2400 = vsub.s32 %v2397, %v2399
  %v2401 = vrot.slane %v2393, %v2400
  %v2402 = vmul.f32 %v2401, %v2291
  %v2403 = vadd.f32 %v2318, %v2330
  %v2404 = vadd.f32 %v2342, %v2354
  %v2405 = vadd.f32 %v2366, %v2378
  %v2406 = vadd.f32 %v2390, %v2402
  %v2407 = vadd.f32 %v2403, %v2404
  %v2408 = vadd.f32 %v2405, %v2406
  %v2409 = vadd.f32 %v2407, %v2408
  %v2410 = vadd.f32 %v2252, %v2409
  %v2411 = vtanh.pop %v2410
  %v2412 = vmul.f32 %v2411, 0.5
  %v2413 = vadd.f32 %v2412, 0.5
  %2415 = vrot.lane.b32.xlu0 %v2299, 8
  %v2416 = vpop.permute.xlu0 %2415
  %v2418 = vmul.f32 %v2413, %v2416
  %2420 = vrot.lane.b32.xlu0 %v2411, 112
  %v2421 = vpop.permute.xlu0 %2420
  %v2423 = vmul.f32 %v2413, %v2421
  %2425 = vrot.lane.b32.xlu0 %v2423, 8
  %v2426 = vpop.permute.xlu0 %2425
  %v2428 = vadd.f32 %v2418, %v2426
  %v2429 = vtanh.pop %v2428
  %2431 = vrot.lane.b32.xlu0 %v2429, 16
  %v2432 = vpop.permute.xlu0 %2431
  %v2434 = vmul.f32 %v2413, %v2432
  %2436 = vset.pattern.permute.xlu0 24
  %2437 = vperm.xlu0 %2436, %v2434
  %v2438 = vpop.permute.xlu0 %2437
  %v2441 = vunpack.c.l.s4 839922192
  %v2442 = vunpack.c.0.s8 %v2441
  %v2443 = vlaneseq
  %v2444 = vshrl.u32 %v2443, 7
  %v2445 = vsub.s32 %v2442, %v2444
  %v2446 = vrot.slane %v2438, %v2445
  %v2447 = vmul.f32 %v2446, %v2263
  %2448 = vset.pattern.permute.xlu0 25
  %2449 = vperm.xlu0 %2448, %v2434
  %v2450 = vpop.permute.xlu0 %2449
  %v2453 = vunpack.c.l.s4 839922192
  %v2454 = vunpack.c.0.s8 %v2453
  %v2455 = vlaneseq
  %v2456 = vshrl.u32 %v2455, 7
  %v2457 = vsub.s32 %v2454, %v2456
  %v2458 = vrot.slane %v2450, %v2457
  %v2459 = vmul.f32 %v2458, %v2267
  %2460 = vset.pattern.permute.xlu0 26
  %2461 = vperm.xlu0 %2460, %v2434
  %v2462 = vpop.permute.xlu0 %2461
  %v2465 = vunpack.c.l.s4 839922192
  %v2466 = vunpack.c.0.s8 %v2465
  %v2467 = vlaneseq
  %v2468 = vshrl.u32 %v2467, 7
  %v2469 = vsub.s32 %v2466, %v2468
  %v2470 = vrot.slane %v2462, %v2469
  %v2471 = vmul.f32 %v2470, %v2271
  %2472 = vset.pattern.permute.xlu0 27
  %2473 = vperm.xlu0 %2472, %v2434
  %v2474 = vpop.permute.xlu0 %2473
  %v2477 = vunpack.c.l.s4 839922192
  %v2478 = vunpack.c.0.s8 %v2477
  %v2479 = vlaneseq
  %v2480 = vshrl.u32 %v2479, 7
  %v2481 = vsub.s32 %v2478, %v2480
  %v2482 = vrot.slane %v2474, %v2481
  %v2483 = vmul.f32 %v2482, %v2275
  %2484 = vset.pattern.permute.xlu0 28
  %2485 = vperm.xlu0 %2484, %v2434
  %v2486 = vpop.permute.xlu0 %2485
  %v2489 = vunpack.c.l.s4 839922192
  %v2490 = vunpack.c.0.s8 %v2489
  %v2491 = vlaneseq
  %v2492 = vshrl.u32 %v2491, 7
  %v2493 = vsub.s32 %v2490, %v2492
  %v2494 = vrot.slane %v2486, %v2493
  %v2495 = vmul.f32 %v2494, %v2279
  %2496 = vset.pattern.permute.xlu0 29
  %2497 = vperm.xlu0 %2496, %v2434
  %v2498 = vpop.permute.xlu0 %2497
  %v2501 = vunpack.c.l.s4 839922192
  %v2502 = vunpack.c.0.s8 %v2501
  %v2503 = vlaneseq
  %v2504 = vshrl.u32 %v2503, 7
  %v2505 = vsub.s32 %v2502, %v2504
  %v2506 = vrot.slane %v2498, %v2505
  %v2507 = vmul.f32 %v2506, %v2283
  %2508 = vset.pattern.permute.xlu0 30
  %2509 = vperm.xlu0 %2508, %v2434
  %v2510 = vpop.permute.xlu0 %2509
  %v2513 = vunpack.c.l.s4 839922192
  %v2514 = vunpack.c.0.s8 %v2513
  %v2515 = vlaneseq
  %v2516 = vshrl.u32 %v2515, 7
  %v2517 = vsub.s32 %v2514, %v2516
  %v2518 = vrot.slane %v2510, %v2517
  %v2519 = vmul.f32 %v2518, %v2287
  %2520 = vset.pattern.permute.xlu0 31
  %2521 = vperm.xlu0 %2520, %v2434
  %v2522 = vpop.permute.xlu0 %2521
  %v2525 = vunpack.c.l.s4 839922192
  %v2526 = vunpack.c.0.s8 %v2525
  %v2527 = vlaneseq
  %v2528 = vshrl.u32 %v2527, 7
  %v2529 = vsub.s32 %v2526, %v2528
  %v2530 = vrot.slane %v2522, %v2529
  %v2531 = vmul.f32 %v2530, %v2291
  %v2532 = vadd.f32 %v2447, %v2459
  %v2533 = vadd.f32 %v2471, %v2483
  %v2534 = vadd.f32 %v2495, %v2507
  %v2535 = vadd.f32 %v2519, %v2531
  %v2536 = vadd.f32 %v2532, %v2533
  %v2537 = vadd.f32 %v2534, %v2535
  %v2538 = vadd.f32 %v2536, %v2537
  %v2539 = vadd.f32 %v2235, %v2538
  %v2540 = vtanh.pop %v2539
  %v2541 = vmul.f32 %v2540, 0.5
  %v2542 = vadd.f32 %v2541, 0.5
  %v2543 = vmul.f32 %v2542, %v2428
  %2545 = vrot.lane.b32.xlu0 %v2540, 112
  %v2546 = vpop.permute.xlu0 %2545
  %v2548 = vmul.f32 %v2542, %v2546
  %2550 = vrot.lane.b32.xlu0 %v2548, 8
  %v2551 = vpop.permute.xlu0 %2550
  %v2553 = vadd.f32 %v2543, %v2551
  %v2554 = vtanh.pop %v2553
  %2556 = vrot.lane.b32.xlu0 %v2554, 16
  %v2557 = vpop.permute.xlu0 %2556
  %v2559 = vmul.f32 %v2542, %v2557
  %2561 = vset.pattern.permute.xlu0 24
  %2562 = vperm.xlu0 %2561, %v2559
  %v2563 = vpop.permute.xlu0 %2562
  %v2566 = vunpack.c.l.s4 839922192
  %v2567 = vunpack.c.0.s8 %v2566
  %v2568 = vlaneseq
  %v2569 = vshrl.u32 %v2568, 7
  %v2570 = vsub.s32 %v2567, %v2569
  %v2571 = vrot.slane %v2563, %v2570
  %v2572 = vmul.f32 %v2571, %v2263
  %2573 = vset.pattern.permute.xlu0 25
  %2574 = vperm.xlu0 %2573, %v2559
  %v2575 = vpop.permute.xlu0 %2574
  %v2578 = vunpack.c.l.s4 839922192
  %v2579 = vunpack.c.0.s8 %v2578
  %v2580 = vlaneseq
  %v2581 = vshrl.u32 %v2580, 7
  %v2582 = vsub.s32 %v2579, %v2581
  %v2583 = vrot.slane %v2575, %v2582
  %v2584 = vmul.f32 %v2583, %v2267
  %2585 = vset.pattern.permute.xlu0 26
  %2586 = vperm.xlu0 %2585, %v2559
  %v2587 = vpop.permute.xlu0 %2586
  %v2590 = vunpack.c.l.s4 839922192
  %v2591 = vunpack.c.0.s8 %v2590
  %v2592 = vlaneseq
  %v2593 = vshrl.u32 %v2592, 7
  %v2594 = vsub.s32 %v2591, %v2593
  %v2595 = vrot.slane %v2587, %v2594
  %v2596 = vmul.f32 %v2595, %v2271
  %2597 = vset.pattern.permute.xlu0 27
  %2598 = vperm.xlu0 %2597, %v2559
  %v2599 = vpop.permute.xlu0 %2598
  %v2602 = vunpack.c.l.s4 839922192
  %v2603 = vunpack.c.0.s8 %v2602
  %v2604 = vlaneseq
  %v2605 = vshrl.u32 %v2604, 7
  %v2606 = vsub.s32 %v2603, %v2605
  %v2607 = vrot.slane %v2599, %v2606
  %v2608 = vmul.f32 %v2607, %v2275
  %2609 = vset.pattern.permute.xlu0 28
  %2610 = vperm.xlu0 %2609, %v2559
  %v2611 = vpop.permute.xlu0 %2610
  %v2614 = vunpack.c.l.s4 839922192
  %v2615 = vunpack.c.0.s8 %v2614
  %v2616 = vlaneseq
  %v2617 = vshrl.u32 %v2616, 7
  %v2618 = vsub.s32 %v2615, %v2617
  %v2619 = vrot.slane %v2611, %v2618
  %v2620 = vmul.f32 %v2619, %v2279
  %2621 = vset.pattern.permute.xlu0 29
  %2622 = vperm.xlu0 %2621, %v2559
  %v2623 = vpop.permute.xlu0 %2622
  %v2626 = vunpack.c.l.s4 839922192
  %v2627 = vunpack.c.0.s8 %v2626
  %v2628 = vlaneseq
  %v2629 = vshrl.u32 %v2628, 7
  %v2630 = vsub.s32 %v2627, %v2629
  %v2631 = vrot.slane %v2623, %v2630
  %v2632 = vmul.f32 %v2631, %v2283
  %2633 = vset.pattern.permute.xlu0 30
  %2634 = vperm.xlu0 %2633, %v2559
  %v2635 = vpop.permute.xlu0 %2634
  %v2638 = vunpack.c.l.s4 839922192
  %v2639 = vunpack.c.0.s8 %v2638
  %v2640 = vlaneseq
  %v2641 = vshrl.u32 %v2640, 7
  %v2642 = vsub.s32 %v2639, %v2641
  %v2643 = vrot.slane %v2635, %v2642
  %v2644 = vmul.f32 %v2643, %v2287
  %2645 = vset.pattern.permute.xlu0 31
  %2646 = vperm.xlu0 %2645, %v2559
  %v2647 = vpop.permute.xlu0 %2646
  %v2650 = vunpack.c.l.s4 839922192
  %v2651 = vunpack.c.0.s8 %v2650
  %v2652 = vlaneseq
  %v2653 = vshrl.u32 %v2652, 7
  %v2654 = vsub.s32 %v2651, %v2653
  %v2655 = vrot.slane %v2647, %v2654
  %v2656 = vmul.f32 %v2655, %v2291
  %v2657 = vadd.f32 %v2572, %v2584
  %v2658 = vadd.f32 %v2596, %v2608
  %v2659 = vadd.f32 %v2620, %v2632
  %v2660 = vadd.f32 %v2644, %v2656
  %v2661 = vadd.f32 %v2657, %v2658
  %v2662 = vadd.f32 %v2659, %v2660
  %v2663 = vadd.f32 %v2661, %v2662
  %v2664 = vadd.f32 %v2253, %v2663
  %v2665 = vtanh.pop %v2664
  %v2666 = vmul.f32 %v2665, 0.5
  %v2667 = vadd.f32 %v2666, 0.5
  %v2668 = vmul.f32 %v2667, %v2553
  %2670 = vrot.lane.b32.xlu0 %v2665, 112
  %v2671 = vpop.permute.xlu0 %2670
  %v2673 = vmul.f32 %v2667, %v2671
  %2675 = vrot.lane.b32.xlu0 %v2673, 8
  %v2676 = vpop.permute.xlu0 %2675
  %v2678 = vadd.f32 %v2668, %v2676
  %v2679 = vtanh.pop %v2678
  %2681 = vrot.lane.b32.xlu0 %v2679, 16
  %v2682 = vpop.permute.xlu0 %2681
  %v2684 = vmul.f32 %v2667, %v2682
  %2686 = vset.pattern.permute.xlu0 24
  %2687 = vperm.xlu0 %2686, %v2684
  %v2688 = vpop.permute.xlu0 %2687
  %v2691 = vunpack.c.l.s4 839922192
  %v2692 = vunpack.c.0.s8 %v2691
  %v2693 = vlaneseq
  %v2694 = vshrl.u32 %v2693, 7
  %v2695 = vsub.s32 %v2692, %v2694
  %v2696 = vrot.slane %v2688, %v2695
  %v2697 = vmul.f32 %v2696, %v2263
  %2698 = vset.pattern.permute.xlu0 25
  %2699 = vperm.xlu0 %2698, %v2684
  %v2700 = vpop.permute.xlu0 %2699
  %v2703 = vunpack.c.l.s4 839922192
  %v2704 = vunpack.c.0.s8 %v2703
  %v2705 = vlaneseq
  %v2706 = vshrl.u32 %v2705, 7
  %v2707 = vsub.s32 %v2704, %v2706
  %v2708 = vrot.slane %v2700, %v2707
  %v2709 = vmul.f32 %v2708, %v2267
  %2710 = vset.pattern.permute.xlu0 26
  %2711 = vperm.xlu0 %2710, %v2684
  %v2712 = vpop.permute.xlu0 %2711
  %v2715 = vunpack.c.l.s4 839922192
  %v2716 = vunpack.c.0.s8 %v2715
  %v2717 = vlaneseq
  %v2718 = vshrl.u32 %v2717, 7
  %v2719 = vsub.s32 %v2716, %v2718
  %v2720 = vrot.slane %v2712, %v2719
  %v2721 = vmul.f32 %v2720, %v2271
  %2722 = vset.pattern.permute.xlu0 27
  %2723 = vperm.xlu0 %2722, %v2684
  %v2724 = vpop.permute.xlu0 %2723
  %v2727 = vunpack.c.l.s4 839922192
  %v2728 = vunpack.c.0.s8 %v2727
  %v2729 = vlaneseq
  %v2730 = vshrl.u32 %v2729, 7
  %v2731 = vsub.s32 %v2728, %v2730
  %v2732 = vrot.slane %v2724, %v2731
  %v2733 = vmul.f32 %v2732, %v2275
  %2734 = vset.pattern.permute.xlu0 28
  %2735 = vperm.xlu0 %2734, %v2684
  %v2736 = vpop.permute.xlu0 %2735
  %v2739 = vunpack.c.l.s4 839922192
  %v2740 = vunpack.c.0.s8 %v2739
  %v2741 = vlaneseq
  %v2742 = vshrl.u32 %v2741, 7
  %v2743 = vsub.s32 %v2740, %v2742
  %v2744 = vrot.slane %v2736, %v2743
  %v2745 = vmul.f32 %v2744, %v2279
  %2746 = vset.pattern.permute.xlu0 29
  %2747 = vperm.xlu0 %2746, %v2684
  %v2748 = vpop.permute.xlu0 %2747
  %v2751 = vunpack.c.l.s4 839922192
  %v2752 = vunpack.c.0.s8 %v2751
  %v2753 = vlaneseq
  %v2754 = vshrl.u32 %v2753, 7
  %v2755 = vsub.s32 %v2752, %v2754
  %v2756 = vrot.slane %v2748, %v2755
  %v2757 = vmul.f32 %v2756, %v2283
  %2758 = vset.pattern.permute.xlu0 30
  %2759 = vperm.xlu0 %2758, %v2684
  %v2760 = vpop.permute.xlu0 %2759
  %v2763 = vunpack.c.l.s4 839922192
  %v2764 = vunpack.c.0.s8 %v2763
  %v2765 = vlaneseq
  %v2766 = vshrl.u32 %v2765, 7
  %v2767 = vsub.s32 %v2764, %v2766
  %v2768 = vrot.slane %v2760, %v2767
  %v2769 = vmul.f32 %v2768, %v2287
  %2770 = vset.pattern.permute.xlu0 31
  %2771 = vperm.xlu0 %2770, %v2684
  %v2772 = vpop.permute.xlu0 %2771
  %v2775 = vunpack.c.l.s4 839922192
  %v2776 = vunpack.c.0.s8 %v2775
  %v2777 = vlaneseq
  %v2778 = vshrl.u32 %v2777, 7
  %v2779 = vsub.s32 %v2776, %v2778
  %v2780 = vrot.slane %v2772, %v2779
  %v2781 = vmul.f32 %v2780, %v2291
  %v2782 = vadd.f32 %v2697, %v2709
  %v2783 = vadd.f32 %v2721, %v2733
  %v2784 = vadd.f32 %v2745, %v2757
  %v2785 = vadd.f32 %v2769, %v2781
  %v2786 = vadd.f32 %v2782, %v2783
  %v2787 = vadd.f32 %v2784, %v2785
  %v2788 = vadd.f32 %v2786, %v2787
  %v2789 = vadd.f32 %v2240, %v2788
  %v2790 = vtanh.pop %v2789
  %v2791 = vmul.f32 %v2790, 0.5
  %v2792 = vadd.f32 %v2791, 0.5
  %v2793 = vmul.f32 %v2792, %v2678
  %2795 = vrot.lane.b32.xlu0 %v2790, 112
  %v2796 = vpop.permute.xlu0 %2795
  %v2798 = vmul.f32 %v2792, %v2796
  %2800 = vrot.lane.b32.xlu0 %v2798, 8
  %v2801 = vpop.permute.xlu0 %2800
  %v2803 = vadd.f32 %v2793, %v2801
  %v2804 = vtanh.pop %v2803
  %2806 = vrot.lane.b32.xlu0 %v2804, 16
  %v2807 = vpop.permute.xlu0 %2806
  %v2809 = vmul.f32 %v2792, %v2807
  %2811 = vset.pattern.permute.xlu0 24
  %2812 = vperm.xlu0 %2811, %v2809
  %v2813 = vpop.permute.xlu0 %2812
  %v2816 = vunpack.c.l.s4 839922192
  %v2817 = vunpack.c.0.s8 %v2816
  %v2818 = vlaneseq
  %v2819 = vshrl.u32 %v2818, 7
  %v2820 = vsub.s32 %v2817, %v2819
  %v2821 = vrot.slane %v2813, %v2820
  %v2822 = vmul.f32 %v2821, %v2263
  %2823 = vset.pattern.permute.xlu0 25
  %2824 = vperm.xlu0 %2823, %v2809
  %v2825 = vpop.permute.xlu0 %2824
  %v2828 = vunpack.c.l.s4 839922192
  %v2829 = vunpack.c.0.s8 %v2828
  %v2830 = vlaneseq
  %v2831 = vshrl.u32 %v2830, 7
  %v2832 = vsub.s32 %v2829, %v2831
  %v2833 = vrot.slane %v2825, %v2832
  %v2834 = vmul.f32 %v2833, %v2267
  %2835 = vset.pattern.permute.xlu0 26
  %2836 = vperm.xlu0 %2835, %v2809
  %v2837 = vpop.permute.xlu0 %2836
  %v2840 = vunpack.c.l.s4 839922192
  %v2841 = vunpack.c.0.s8 %v2840
  %v2842 = vlaneseq
  %v2843 = vshrl.u32 %v2842, 7
  %v2844 = vsub.s32 %v2841, %v2843
  %v2845 = vrot.slane %v2837, %v2844
  %v2846 = vmul.f32 %v2845, %v2271
  %2847 = vset.pattern.permute.xlu0 27
  %2848 = vperm.xlu0 %2847, %v2809
  %v2849 = vpop.permute.xlu0 %2848
  %v2852 = vunpack.c.l.s4 839922192
  %v2853 = vunpack.c.0.s8 %v2852
  %v2854 = vlaneseq
  %v2855 = vshrl.u32 %v2854, 7
  %v2856 = vsub.s32 %v2853, %v2855
  %v2857 = vrot.slane %v2849, %v2856
  %v2858 = vmul.f32 %v2857, %v2275
  %2859 = vset.pattern.permute.xlu0 28
  %2860 = vperm.xlu0 %2859, %v2809
  %v2861 = vpop.permute.xlu0 %2860
  %v2864 = vunpack.c.l.s4 839922192
  %v2865 = vunpack.c.0.s8 %v2864
  %v2866 = vlaneseq
  %v2867 = vshrl.u32 %v2866, 7
  %v2868 = vsub.s32 %v2865, %v2867
  %v2869 = vrot.slane %v2861, %v2868
  %v2870 = vmul.f32 %v2869, %v2279
  %2871 = vset.pattern.permute.xlu0 29
  %2872 = vperm.xlu0 %2871, %v2809
  %v2873 = vpop.permute.xlu0 %2872
  %v2876 = vunpack.c.l.s4 839922192
  %v2877 = vunpack.c.0.s8 %v2876
  %v2878 = vlaneseq
  %v2879 = vshrl.u32 %v2878, 7
  %v2880 = vsub.s32 %v2877, %v2879
  %v2881 = vrot.slane %v2873, %v2880
  %v2882 = vmul.f32 %v2881, %v2283
  %2883 = vset.pattern.permute.xlu0 30
  %2884 = vperm.xlu0 %2883, %v2809
  %v2885 = vpop.permute.xlu0 %2884
  %v2888 = vunpack.c.l.s4 839922192
  %v2889 = vunpack.c.0.s8 %v2888
  %v2890 = vlaneseq
  %v2891 = vshrl.u32 %v2890, 7
  %v2892 = vsub.s32 %v2889, %v2891
  %v2893 = vrot.slane %v2885, %v2892
  %v2894 = vmul.f32 %v2893, %v2287
  %2895 = vset.pattern.permute.xlu0 31
  %2896 = vperm.xlu0 %2895, %v2809
  %v2897 = vpop.permute.xlu0 %2896
  %v2900 = vunpack.c.l.s4 839922192
  %v2901 = vunpack.c.0.s8 %v2900
  %v2902 = vlaneseq
  %v2903 = vshrl.u32 %v2902, 7
  %v2904 = vsub.s32 %v2901, %v2903
  %v2905 = vrot.slane %v2897, %v2904
  %v2906 = vmul.f32 %v2905, %v2291
  %v2907 = vadd.f32 %v2822, %v2834
  %v2908 = vadd.f32 %v2846, %v2858
  %v2909 = vadd.f32 %v2870, %v2882
  %v2910 = vadd.f32 %v2894, %v2906
  %v2911 = vadd.f32 %v2907, %v2908
  %v2912 = vadd.f32 %v2909, %v2910
  %v2913 = vadd.f32 %v2911, %v2912
  %v2914 = vadd.f32 %v2254, %v2913
  %v2915 = vtanh.pop %v2914
  %v2916 = vmul.f32 %v2915, 0.5
  %v2917 = vadd.f32 %v2916, 0.5
  %v2918 = vmul.f32 %v2917, %v2803
  %2920 = vrot.lane.b32.xlu0 %v2915, 112
  %v2921 = vpop.permute.xlu0 %2920
  %v2923 = vmul.f32 %v2917, %v2921
  %2925 = vrot.lane.b32.xlu0 %v2923, 8
  %v2926 = vpop.permute.xlu0 %2925
  %v2928 = vadd.f32 %v2918, %v2926
  %v2929 = vtanh.pop %v2928
  %2931 = vrot.lane.b32.xlu0 %v2929, 16
  %v2932 = vpop.permute.xlu0 %2931
  %v2934 = vmul.f32 %v2917, %v2932
  %2936 = vset.pattern.permute.xlu0 24
  %2937 = vperm.xlu0 %2936, %v2934
  %v2938 = vpop.permute.xlu0 %2937
  %v2941 = vunpack.c.l.s4 839922192
  %v2942 = vunpack.c.0.s8 %v2941
  %v2943 = vlaneseq
  %v2944 = vshrl.u32 %v2943, 7
  %v2945 = vsub.s32 %v2942, %v2944
  %v2946 = vrot.slane %v2938, %v2945
  %v2947 = vmul.f32 %v2946, %v2263
  %2948 = vset.pattern.permute.xlu0 25
  %2949 = vperm.xlu0 %2948, %v2934
  %v2950 = vpop.permute.xlu0 %2949
  %v2953 = vunpack.c.l.s4 839922192
  %v2954 = vunpack.c.0.s8 %v2953
  %v2955 = vlaneseq
  %v2956 = vshrl.u32 %v2955, 7
  %v2957 = vsub.s32 %v2954, %v2956
  %v2958 = vrot.slane %v2950, %v2957
  %v2959 = vmul.f32 %v2958, %v2267
  %2960 = vset.pattern.permute.xlu0 26
  %2961 = vperm.xlu0 %2960, %v2934
  %v2962 = vpop.permute.xlu0 %2961
  %v2965 = vunpack.c.l.s4 839922192
  %v2966 = vunpack.c.0.s8 %v2965
  %v2967 = vlaneseq
  %v2968 = vshrl.u32 %v2967, 7
  %v2969 = vsub.s32 %v2966, %v2968
  %v2970 = vrot.slane %v2962, %v2969
  %v2971 = vmul.f32 %v2970, %v2271
  %2972 = vset.pattern.permute.xlu0 27
  %2973 = vperm.xlu0 %2972, %v2934
  %v2974 = vpop.permute.xlu0 %2973
  %v2977 = vunpack.c.l.s4 839922192
  %v2978 = vunpack.c.0.s8 %v2977
  %v2979 = vlaneseq
  %v2980 = vshrl.u32 %v2979, 7
  %v2981 = vsub.s32 %v2978, %v2980
  %v2982 = vrot.slane %v2974, %v2981
  %v2983 = vmul.f32 %v2982, %v2275
  %2984 = vset.pattern.permute.xlu0 28
  %2985 = vperm.xlu0 %2984, %v2934
  %v2986 = vpop.permute.xlu0 %2985
  %v2989 = vunpack.c.l.s4 839922192
  %v2990 = vunpack.c.0.s8 %v2989
  %v2991 = vlaneseq
  %v2992 = vshrl.u32 %v2991, 7
  %v2993 = vsub.s32 %v2990, %v2992
  %v2994 = vrot.slane %v2986, %v2993
  %v2995 = vmul.f32 %v2994, %v2279
  %2996 = vset.pattern.permute.xlu0 29
  %2997 = vperm.xlu0 %2996, %v2934
  %v2998 = vpop.permute.xlu0 %2997
  %v3001 = vunpack.c.l.s4 839922192
  %v3002 = vunpack.c.0.s8 %v3001
  %v3003 = vlaneseq
  %v3004 = vshrl.u32 %v3003, 7
  %v3005 = vsub.s32 %v3002, %v3004
  %v3006 = vrot.slane %v2998, %v3005
  %v3007 = vmul.f32 %v3006, %v2283
  %3008 = vset.pattern.permute.xlu0 30
  %3009 = vperm.xlu0 %3008, %v2934
  %v3010 = vpop.permute.xlu0 %3009
  %v3013 = vunpack.c.l.s4 839922192
  %v3014 = vunpack.c.0.s8 %v3013
  %v3015 = vlaneseq
  %v3016 = vshrl.u32 %v3015, 7
  %v3017 = vsub.s32 %v3014, %v3016
  %v3018 = vrot.slane %v3010, %v3017
  %v3019 = vmul.f32 %v3018, %v2287
  %3020 = vset.pattern.permute.xlu0 31
  %3021 = vperm.xlu0 %3020, %v2934
  %v3022 = vpop.permute.xlu0 %3021
  %v3025 = vunpack.c.l.s4 839922192
  %v3026 = vunpack.c.0.s8 %v3025
  %v3027 = vlaneseq
  %v3028 = vshrl.u32 %v3027, 7
  %v3029 = vsub.s32 %v3026, %v3028
  %v3030 = vrot.slane %v3022, %v3029
  %v3031 = vmul.f32 %v3030, %v2291
  %v3032 = vadd.f32 %v2947, %v2959
  %v3033 = vadd.f32 %v2971, %v2983
  %v3034 = vadd.f32 %v2995, %v3007
  %v3035 = vadd.f32 %v3019, %v3031
  %v3036 = vadd.f32 %v3032, %v3033
  %v3037 = vadd.f32 %v3034, %v3035
  %v3038 = vadd.f32 %v3036, %v3037
  %v3039 = vadd.f32 %v2245, %v3038
  %v3040 = vtanh.pop %v3039
  %v3041 = vmul.f32 %v3040, 0.5
  %v3042 = vadd.f32 %v3041, 0.5
  %v3043 = vmul.f32 %v3042, %v2928
  %3045 = vrot.lane.b32.xlu0 %v3040, 112
  %v3046 = vpop.permute.xlu0 %3045
  %v3048 = vmul.f32 %v3042, %v3046
  %3050 = vrot.lane.b32.xlu0 %v3048, 8
  %v3051 = vpop.permute.xlu0 %3050
  %v3053 = vadd.f32 %v3043, %v3051
  %v3054 = vtanh.pop %v3053
  %3056 = vrot.lane.b32.xlu0 %v3054, 16
  %v3057 = vpop.permute.xlu0 %3056
  %v3059 = vmul.f32 %v3042, %v3057
  %3061 = vset.pattern.permute.xlu0 24
  %3062 = vperm.xlu0 %3061, %v3059
  %v3063 = vpop.permute.xlu0 %3062
  %v3066 = vunpack.c.l.s4 839922192
  %v3067 = vunpack.c.0.s8 %v3066
  %v3068 = vlaneseq
  %v3069 = vshrl.u32 %v3068, 7
  %v3070 = vsub.s32 %v3067, %v3069
  %v3071 = vrot.slane %v3063, %v3070
  %v3072 = vmul.f32 %v3071, %v2263
  %3073 = vset.pattern.permute.xlu0 25
  %3074 = vperm.xlu0 %3073, %v3059
  %v3075 = vpop.permute.xlu0 %3074
  %v3078 = vunpack.c.l.s4 839922192
  %v3079 = vunpack.c.0.s8 %v3078
  %v3080 = vlaneseq
  %v3081 = vshrl.u32 %v3080, 7
  %v3082 = vsub.s32 %v3079, %v3081
  %v3083 = vrot.slane %v3075, %v3082
  %v3084 = vmul.f32 %v3083, %v2267
  %3085 = vset.pattern.permute.xlu0 26
  %3086 = vperm.xlu0 %3085, %v3059
  %v3087 = vpop.permute.xlu0 %3086
  %v3090 = vunpack.c.l.s4 839922192
  %v3091 = vunpack.c.0.s8 %v3090
  %v3092 = vlaneseq
  %v3093 = vshrl.u32 %v3092, 7
  %v3094 = vsub.s32 %v3091, %v3093
  %v3095 = vrot.slane %v3087, %v3094
  %v3096 = vmul.f32 %v3095, %v2271
  %3097 = vset.pattern.permute.xlu0 27
  %3098 = vperm.xlu0 %3097, %v3059
  %v3099 = vpop.permute.xlu0 %3098
  %v3102 = vunpack.c.l.s4 839922192
  %v3103 = vunpack.c.0.s8 %v3102
  %v3104 = vlaneseq
  %v3105 = vshrl.u32 %v3104, 7
  %v3106 = vsub.s32 %v3103, %v3105
  %v3107 = vrot.slane %v3099, %v3106
  %v3108 = vmul.f32 %v3107, %v2275
  %3109 = vset.pattern.permute.xlu0 28
  %3110 = vperm.xlu0 %3109, %v3059
  %v3111 = vpop.permute.xlu0 %3110
  %v3114 = vunpack.c.l.s4 839922192
  %v3115 = vunpack.c.0.s8 %v3114
  %v3116 = vlaneseq
  %v3117 = vshrl.u32 %v3116, 7
  %v3118 = vsub.s32 %v3115, %v3117
  %v3119 = vrot.slane %v3111, %v3118
  %v3120 = vmul.f32 %v3119, %v2279
  %3121 = vset.pattern.permute.xlu0 29
  %3122 = vperm.xlu0 %3121, %v3059
  %v3123 = vpop.permute.xlu0 %3122
  %v3126 = vunpack.c.l.s4 839922192
  %v3127 = vunpack.c.0.s8 %v3126
  %v3128 = vlaneseq
  %v3129 = vshrl.u32 %v3128, 7
  %v3130 = vsub.s32 %v3127, %v3129
  %v3131 = vrot.slane %v3123, %v3130
  %v3132 = vmul.f32 %v3131, %v2283
  %3133 = vset.pattern.permute.xlu0 30
  %3134 = vperm.xlu0 %3133, %v3059
  %v3135 = vpop.permute.xlu0 %3134
  %v3138 = vunpack.c.l.s4 839922192
  %v3139 = vunpack.c.0.s8 %v3138
  %v3140 = vlaneseq
  %v3141 = vshrl.u32 %v3140, 7
  %v3142 = vsub.s32 %v3139, %v3141
  %v3143 = vrot.slane %v3135, %v3142
  %v3144 = vmul.f32 %v3143, %v2287
  %3145 = vset.pattern.permute.xlu0 31
  %3146 = vperm.xlu0 %3145, %v3059
  %v3147 = vpop.permute.xlu0 %3146
  %v3150 = vunpack.c.l.s4 839922192
  %v3151 = vunpack.c.0.s8 %v3150
  %v3152 = vlaneseq
  %v3153 = vshrl.u32 %v3152, 7
  %v3154 = vsub.s32 %v3151, %v3153
  %v3155 = vrot.slane %v3147, %v3154
  %v3156 = vmul.f32 %v3155, %v2291
  %v3157 = vadd.f32 %v3072, %v3084
  %v3158 = vadd.f32 %v3096, %v3108
  %v3159 = vadd.f32 %v3120, %v3132
  %v3160 = vadd.f32 %v3144, %v3156
  %v3161 = vadd.f32 %v3157, %v3158
  %v3162 = vadd.f32 %v3159, %v3160
  %v3163 = vadd.f32 %v3161, %v3162
  %v3164 = vadd.f32 %v2255, %v3163
  %v3165 = vtanh.pop %v3164
  %v3166 = vmul.f32 %v3165, 0.5
  %v3167 = vadd.f32 %v3166, 0.5
  %v3168 = vmul.f32 %v3167, %v3053
  %3170 = vrot.lane.b32.xlu0 %v3165, 112
  %v3171 = vpop.permute.xlu0 %3170
  %v3173 = vmul.f32 %v3167, %v3171
  %3175 = vrot.lane.b32.xlu0 %v3173, 8
  %v3176 = vpop.permute.xlu0 %3175
  %v3178 = vadd.f32 %v3168, %v3176
  %v3179 = vtanh.pop %v3178
  %3181 = vrot.lane.b32.xlu0 %v3179, 16
  %v3182 = vpop.permute.xlu0 %3181
  %v3184 = vmul.f32 %v3167, %v3182
  %v3185 = vcombine.low %v2434, %v2434
  %v3187 = vcombine.low %v2684, %v2684
  %v3189 = vcombine.low %v2934, %v2934
  %v3192 = vcombine.low %v3184, %v3184
  %v3194 = vsel %vm1068, %v2305, %v3185
  %v3195 = vsel %vm1068, %v2559, %v3187
  %v3196 = vsel %vm1068, %v2809, %v3189
  %v3197 = vsel %vm1068, %v3059, %v3192
  %v3198 = vld [vmem:[%s1 + $0x58] sm:$0xff]
  %v3199 = vld [vmem:[%s1 + $0x60] sm:$0x1]
  %v3200 = vlaneseq
  %v3201 = vshrl.u32 %v3200, 7
  %v3202 = vsub.s32 0, %v3201
  %v3203 = vrot.slane %v3199, %v3202
  %3208 = vrot.lane.b32.xlu0 %v3194, 104
  %v3209 = vpop.permute.xlu0 %3208
  %3210 = vrot.lane.b32.xlu0 %v3195, 104
  %v3211 = vpop.permute.xlu0 %3210
  %3212 = vrot.lane.b32.xlu0 %v3196, 104
  %v3213 = vpop.permute.xlu0 %3212
  %3214 = vrot.lane.b32.xlu0 %v3197, 104
  %v3215 = vpop.permute.xlu0 %3214
  %v3216 = vsel %vm1092, %v3209, 0
  %v3218 = vsel %vm1092, %v3211, 0
  %v3220 = vsel %vm1092, %v3213, 0
  %v3222 = vsel %vm1092, %v3215, 0
  %3224 = vmatprep.subr.mxu0 0.0
  %3225 = vmatpush1.msra.mxu0 0.0
  %3226 = vmatprep.subr.mxu0 0.0
  %3227 = vmatpush1.msra.mxu0 0.0
  %3228 = vmatprep.subr.mxu0 0.0
  %3229 = vmatpush1.msra.mxu0 0.0
  %3230 = vmatprep.subr.mxu0 0.0
  %3231 = vmatpush1.msra.mxu0 0.0
  %3232 = vmatprep.subr.mxu0 0.0
  %3233 = vmatpush1.msra.mxu0 0.0
  %3234 = vmatprep.subr.mxu0 0.0
  %3235 = vmatpush1.msra.mxu0 0.0
  %3236 = vmatprep.subr.mxu0 0.0
  %3237 = vmatpush1.msra.mxu0 0.0
  %3238 = vmatprep.subr.mxu0 0.0
  %3239 = vmatpush1.msra.mxu0 0.0
  %3240 = vmatprep.subr.mxu0 0.0
  %3241 = vmatpush1.msra.mxu0 0.0
  %3242 = vmatprep.subr.mxu0 0.0
  %3243 = vmatpush1.msra.mxu0 0.0
  %3244 = vmatprep.subr.mxu0 0.0
  %3245 = vmatpush1.msra.mxu0 0.0
  %3246 = vmatprep.subr.mxu0 0.0
  %3247 = vmatpush1.msra.mxu0 0.0
  %3248 = vmatprep.subr.mxu0 0.0
  %3249 = vmatpush1.msra.mxu0 0.0
  %3250 = vmatprep.subr.mxu0 0.0
  %3251 = vmatpush1.msra.mxu0 0.0
  %3252 = vmatprep.subr.mxu0 0.0
  %3253 = vmatpush1.msra.mxu0 0.0
  %3254 = vmatprep.subr.mxu0 0.0
  %3255 = vmatpush1.msra.mxu0 %v3198
  %3256 = vmatprep.subr.mxu0 0.0
  %3257 = vmatpush2.msra.mxu0 0.0
  %3258 = vmatprep.subr.mxu0 0.0
  %3259 = vmatpush2.msra.mxu0 0.0
  %3260 = vmatprep.subr.mxu0 0.0
  %3261 = vmatpush2.msra.mxu0 0.0
  %3262 = vmatprep.subr.mxu0 0.0
  %3263 = vmatpush2.msra.mxu0 0.0
  %3264 = vmatprep.subr.mxu0 0.0
  %3265 = vmatpush2.msra.mxu0 0.0
  %3266 = vmatprep.subr.mxu0 0.0
  %3267 = vmatpush2.msra.mxu0 0.0
  %3268 = vmatprep.subr.mxu0 0.0
  %3269 = vmatpush2.msra.mxu0 0.0
  %3270 = vmatprep.subr.mxu0 0.0
  %3271 = vmatpush2.msra.mxu0 0.0
  %3272 = vmatprep.subr.mxu0 0.0
  %3273 = vmatpush2.msra.mxu0 0.0
  %3274 = vmatprep.subr.mxu0 0.0
  %3275 = vmatpush2.msra.mxu0 0.0
  %3276 = vmatprep.subr.mxu0 0.0
  %3277 = vmatpush2.msra.mxu0 0.0
  %3278 = vmatprep.subr.mxu0 0.0
  %3279 = vmatpush2.msra.mxu0 0.0
  %3280 = vmatprep.subr.mxu0 0.0
  %3281 = vmatpush2.msra.mxu0 0.0
  %3282 = vmatprep.subr.mxu0 0.0
  %3283 = vmatpush2.msra.mxu0 0.0
  %3284 = vmatprep.subr.mxu0 0.0
  %3285 = vmatpush2.msra.mxu0 0.0
  %3286 = vmatprep.subr.mxu0 0.0
  %3287 = vmatpush2.msra.mxu0 0.0
  %3288 = vmatprep.mubr.f32.mxu0 0.0
  %3289 = vmatmul.mubr.f32.gmra.mxu0 %v3216
  %v3290 = vpop.f32.mrf.mxu0
  %v3291 = vadd.f32 %v3203, %v3290
  %v3292 = vpop.f32.mrf.mxu0
  %3293 = vmatprep.mubr.f32.mxu0 0.0
  %3294 = vmatmul.mubr.f32.gmra.mxu0 %v3218
  %v3295 = vpop.f32.mrf.mxu0
  %v3296 = vadd.f32 %v3203, %v3295
  %v3297 = vpop.f32.mrf.mxu0
  %3298 = vmatprep.mubr.f32.mxu0 0.0
  %3299 = vmatmul.mubr.f32.gmra.mxu0 %v3220
  %v3300 = vpop.f32.mrf.mxu0
  %v3301 = vadd.f32 %v3203, %v3300
  %v3302 = vpop.f32.mrf.mxu0
  %3303 = vmatprep.mubr.f32.mxu0 0.0
  %3304 = vmatmul.mubr.f32.gmra.mxu0 %v3222
  %v3305 = vpop.f32.mrf.mxu0
  %v3306 = vadd.f32 %v3203, %v3305
  %v3307 = vpop.f32.mrf.mxu0
  %3308 = vdwg.mxu0
  %v3309 = vxor.u32 %v3291, 2147483648
  %v3310 = vxor.u32 %v3296, 2147483648
  %v3311 = vxor.u32 %v3301, 2147483648
  %v3312 = vxor.u32 %v3306, 2147483648
  %v3313 = vmul.f32 %v3309, 1.442695
  %v3314 = vpow.pop %v3313
  %v3315 = vmul.f32 %v3310, 1.442695
  %v3316 = vpow.pop %v3315
  %v3317 = vmul.f32 %v3311, 1.442695
  %v3318 = vpow.pop %v3317
  %v3319 = vmul.f32 %v3312, 1.442695
  %v3320 = vpow.pop %v3319
  %v3321 = vadd.f32 %v3314, 1.0
  %v3322 = vadd.f32 %v3316, 1.0
  %v3323 = vadd.f32 %v3318, 1.0
  %v3324 = vadd.f32 %v3320, 1.0
  %v3325 = vrcp.pop %v3321
  %v3326 = vmul.f32 1.0, %v3325
  %v3327 = vrcp.pop %v3322
  %v3328 = vmul.f32 1.0, %v3327
  %v3329 = vrcp.pop %v3323
  %v3330 = vmul.f32 1.0, %v3329
  %v3331 = vrcp.pop %v3324
  %v3332 = vmul.f32 1.0, %v3331
  %3333 = vst.msk [vmem:[%s2] sm:$0xff] %vm1092, %v3326
  %3334 = vst.msk [vmem:[%s2 + $0x8] sm:$0xff] %vm1092, %v3328
  %3335 = vst.msk [vmem:[%s2 + $0x10] sm:$0xff] %vm1092, %v3330
  %3336 = vst.msk [vmem:[%s2 + $0x18] sm:$0xff] %vm1092, %v3332
  // Predicated region
  $region10: #{tg_recovery_forward.1} parent=0 // pred_check
    _
  $region11: #{tg_recovery_forward.1} parent=0 // pred_check_branch
    %3338 = sbr.rel (0) target = $region13
  $region12: #{tg_recovery_forward.1} parent=0 // pred_region
    _
  $region13: #{tg_recovery_forward.1} parent=0 // pred_fallthru
    _
  // Predicated region
  $region14: #{tg_recovery_forward.1} parent=0 // pred_check
    _
  $region15: #{tg_recovery_forward.1} parent=0 // pred_check_branch
    %3340 = sbr.rel (0) target = $region17
  $region16: #{tg_recovery_forward.1} parent=0 // pred_region
    _
  $region17: #{tg_recovery_forward.1} parent=0 // pred_fallthru
    _

</llo_original>
